<compile_context>
chip_gen: v6e
topology: v6e:2x2x1
jax: 0.10.0
libtpu: 0.0.40
codegen_flags: <defaults>
</compile_context>

<pallas_src>
import jax
import jax.numpy as jnp
import numpy as np
from jax import lax
from jax.experimental import pallas as pl
from jax.experimental.pallas import tpu as pltpu

BN_EPS = 1e-5
P_CH, V_CH = 32, 3          # policy / value head conv channels (fixed by the module)


def _round_up(v, m):
    return ((v + m - 1) // m) * m


# ----------------------------------------------------------------------------
# Fused Pallas kernel
# ----------------------------------------------------------------------------
def _make_fused_kernel(n, h, w, n_hidden, n_res_blocks):
    hw = h * w
    L = n * hw                              # lane dimension (batch folded in)
    n_conv = 1 + 2 * n_res_blocks           # stem + res-block convs (heads merged separately)
    shifts = [dh * w + dw for dh in (-1, 0, 1) for dw in (-1, 0, 1)]

    def kernel(*refs):
        base = 4 + 2 * n_conv
        mask_ref, pmask_ref, vmask_ref, x_ref = refs[:4]
        conv_refs = refs[4:base]                           # (wk, shift) pairs
        wh_ref, sh_ref = refs[base:base + 2]               # merged head conv
        wp_hbm, bp_ref, wv_ref, bv_ref = refs[base + 2:base + 6]
        pol_ref, val_ref = refs[base + 6:base + 8]
        wp_vmem, wp_sem = refs[base + 8:base + 10]

        # Stream the (dominant) policy-linear weight HBM -> VMEM while the
        # backbone runs on the MXU/VPU; waited on just before the policy matmul.
        wp_copy = pltpu.make_async_copy(wp_hbm, wp_vmem, wp_sem)
        wp_copy.start()

        mask_big = mask_ref[...]                           # (9*nh, L) f32, hoisted

        def conv_bn(w_ref, s_ref, act, relu=True, residual=None):
            """3x3 conv (pad=1) with folded BN scale + shift (+res) (+ReLU).

            act: (n_hidden, L) float32 value; returns (Cout, L) float32."""
            taps = []
            for s in shifts:
                r = (-s) % L                               # y[:, l] = act[:, l+s] (circular)
                taps.append(act if r == 0 else pltpu.roll(act, r, axis=1))
            patches = jnp.concatenate(taps, axis=0)        # (9*nh, L)
            patches = (patches * mask_big).astype(jnp.bfloat16)
            y = jnp.dot(w_ref[...], patches,
                        preferred_element_type=jnp.float32)
            y = y + s_ref[...]                             # folded BN shift
            if residual is not None:
                y = y + residual
            if relu:
                y = jnp.maximum(y, 0.0)
            return y

        # Backbone (activations never leave VMEM, kept f32 between layers).
        act = conv_bn(conv_refs[0], conv_refs[1], x_ref[...])
        for i in range(n_res_blocks):
            res = act
            mid = conv_bn(conv_refs[2 + 4 * i], conv_refs[3 + 4 * i], act)
            act = conv_bn(conv_refs[4 + 4 * i], conv_refs[5 + 4 * i], mid,
                          residual=res)

        # Merged policy+value head conv: one shared im2col, one MXU push.
        heads = conv_bn(wh_ref, sh_ref, act)               # (40, L)
        ph = heads[:P_CH]                                  # (32, L)
        vh = heads[P_CH:P_CH + V_CH]                       # (3, L)

        # Lane-aligned "full flatten": each source row lands at a 128-aligned
        # lane offset; batch separation via a precomputed per-batch lane mask.
        p_full = jnp.concatenate([ph[c:c + 1, :] for c in range(P_CH)], axis=1)  # (1, 32*L)
        v_full = jnp.concatenate([vh[c:c + 1, :] for c in range(V_CH)], axis=1)  # (1, 3*L)
        pflat = (p_full * pmask_ref[...]).astype(jnp.bfloat16)    # (n, 32*L)
        vflat = (v_full * vmask_ref[...]).astype(jnp.bfloat16)    # (n, 3*L)

        val = jnp.tanh(jnp.dot(vflat, wv_ref[...],
                               preferred_element_type=jnp.float32) + bv_ref[...])

        wp_copy.wait()                                     # weight now VMEM-resident
        pol = jnp.dot(pflat, wp_vmem[...],
                      preferred_element_type=jnp.float32) + bp_ref[...]

        pol_ref[...] = pol.astype(pol_ref.dtype)           # (n, 128) lane-dense store
        val_ref[...] = val.astype(val_ref.dtype)

    return kernel


# ----------------------------------------------------------------------------
# Wrapper helpers (layout / padding / masks)
# ----------------------------------------------------------------------------
def _build_masks(n, h, w):
    """(9, N*H*W) validity masks for the 3x3 taps (zero-padding conv).

    They also zero every lane where a circular lane-roll wraps (board edges and
    cross-batch wrap), which makes pltpu.roll-based tap construction exact."""
    hw = h * w
    m = np.zeros((9, n * hw), np.float32)
    q = np.arange(n * hw) % hw
    yy, xx = q // w, q % w
    k = 0
    for dh in (-1, 0, 1):
        for dw in (-1, 0, 1):
            ok = (yy + dh >= 0) & (yy + dh < h) & (xx + dw >= 0) & (xx + dw < w)
            m[k, :] = ok.astype(np.float32)
            k += 1
    return m


def _batch_mask(n, hw, c):
    """(N, c*N*HW) 0/1 mask selecting batch b's lanes of the full-flattened row."""
    L = n * hw
    j = np.arange(c * L)
    owner = (j % L) // hw
    return (owner[None, :] == np.arange(n)[:, None]).astype(np.float32)


def _tile_linear_weight(w_pt, c, hw, n, out_pad):
    """PyTorch (out, c*hw) linear weight -> (c*N*hw, out_pad) bf16, replicated
    over the batch so it multiplies the batch-masked full-flattened activation."""
    out_dim, in_dim = w_pt.shape
    assert in_dim == c * hw
    w3 = jnp.transpose(w_pt.reshape(out_dim, c, hw), (1, 2, 0))     # (c, hw, out)
    w4 = jnp.broadcast_to(w3[:, None], (c, n, hw, out_dim))
    w4 = w4.reshape(c * n * hw, out_dim)
    return jnp.pad(w4, ((0, 0), (0, out_pad - out_dim))).astype(jnp.bfloat16)


def _full_spec(shape):
    nd = len(shape)
    return pl.BlockSpec(shape, lambda i, _nd=nd: (0,) * _nd)


# ----------------------------------------------------------------------------
# Forward pass
# ----------------------------------------------------------------------------
def resnet_forward(params, x_nchw):
    n, cin, h, w = x_nchw.shape
    hw = h * w
    L = n * hw
    nh = params["start"]["wk"].shape[0]                    # n_hidden
    n_res_blocks = len(params["blocks"])
    n_actions = params["plin"]["w_pt"].shape[0]
    a_pad = params["plin"]["bk"].shape[1]
    v_pad = params["vlin"]["bk"].shape[1]
    assert cin <= nh

    # NCHW -> (C, N*HW) transposed layout, input channels zero-padded to n_hidden.
    x_t = jnp.transpose(x_nchw, (1, 0, 2, 3)).reshape(cin, L)
    x_t = jnp.pad(x_t, ((0, nh - cin), (0, 0)))

    # Tap masks pre-broadcast over the (padded) input channels: (9*nh, L).
    mask_big = jnp.asarray(np.repeat(_build_masks(n, h, w), nh, axis=0))

    # Per-batch lane masks for the full-flattened head activations.
    pmask = jnp.asarray(_batch_mask(n, hw, P_CH))          # (n, 32*L)
    vmask = jnp.asarray(_batch_mask(n, hw, V_CH))          # (n, 3*L)

    # Merged policy/value head conv weight & shift (rows padded to multiple of 8).
    wh = jnp.concatenate([params["pconv"]["wk"], params["vconv"]["wk"]], axis=0)
    sh = jnp.concatenate([params["pconv"]["shift_k"], params["vconv"]["shift_k"]],
                         axis=0)
    rows_pad = _round_up(wh.shape[0], 8)
    wh = jnp.pad(wh, ((0, rows_pad - wh.shape[0]), (0, 0)))
    sh = jnp.pad(sh, ((0, rows_pad - sh.shape[0]), (0, 0)))

    # Head-linear weights in the batch-replicated layout for the fused flatten.
    wp = _tile_linear_weight(params["plin"]["w_pt"], P_CH, hw, n, a_pad)  # (32*L, a_pad)
    wv = _tile_linear_weight(params["vlin"]["w_pt"], V_CH, hw, n, v_pad)  # (3*L,  v_pad)

    conv_layers = ([params["start"]]
                   + [blk[c] for blk in params["blocks"] for c in ("c1", "c2")])
    args = [mask_big, pmask, vmask, x_t]
    for layer in conv_layers:
        args += [layer["wk"], layer["shift_k"]]
    args += [wh, sh, wp, params["plin"]["bk"], wv, params["vlin"]["bk"]]

    in_specs = [_full_spec(a.shape) for a in args]
    wp_idx = 4 + 2 * len(conv_layers) + 2
    # The policy-linear weight stays in HBM; the kernel streams it into a VMEM
    # scratch with an explicit async copy, overlapped with the backbone.
    in_specs[wp_idx] = pl.BlockSpec(memory_space=pl.ANY)

    kernel = _make_fused_kernel(n, h, w, nh, n_res_blocks)
    pol_pad, val_pad = pl.pallas_call(
        kernel,
        out_shape=(jax.ShapeDtypeStruct((n, a_pad), jnp.float32),
                   jax.ShapeDtypeStruct((n, v_pad), jnp.float32)),
        grid=(1,),
        in_specs=in_specs,
        out_specs=(_full_spec((n, a_pad)), _full_spec((n, v_pad))),
        scratch_shapes=[
            pltpu.VMEM((P_CH * L, a_pad), jnp.bfloat16),   # policy-weight buffer
            pltpu.SemaphoreType.DMA(()),
        ],
        compiler_params=pltpu.CompilerParams(
            dimension_semantics=("arbitrary",),
            vmem_limit_bytes=32 * 1024 * 1024),
    )(*args)
    return pol_pad[:, :n_actions], val_pad[:, :1]


# ----------------------------------------------------------------------------
# Parameter construction (PyTorch shapes -> kernel layout)
# ----------------------------------------------------------------------------
def _conv_bn_params(key, cin, cout, c_pad):
    k = jax.random.split(key, 6)
    w_pt = 0.1 * jax.random.normal(k[0], (cout, cin, 3, 3), jnp.float32)
    b_pt = 0.1 * jax.random.normal(k[1], (cout,), jnp.float32)
    gamma = 1.0 + 0.1 * jax.random.normal(k[2], (cout,), jnp.float32)
    beta = 0.1 * jax.random.normal(k[3], (cout,), jnp.float32)
    mean = 0.1 * jax.random.normal(k[4], (cout,), jnp.float32)
    var = 1.0 + 0.1 * jnp.abs(jax.random.normal(k[5], (cout,), jnp.float32))
    scale = gamma / jnp.sqrt(var + BN_EPS)
    shift = beta + scale * (b_pt - mean)
    # Kernel weight: (Cout, 9*c_pad) bf16, column index (kh*3+kw)*c_pad + cin,
    # with the eval-mode BN scale folded in.
    wk = jnp.transpose(w_pt, (0, 2, 3, 1))                 # (cout, kh, kw, cin)
    wk = jnp.pad(wk, ((0, 0), (0, 0), (0, 0), (0, c_pad - cin)))
    wk = (wk.reshape(cout, 9 * c_pad) * scale[:, None]).astype(jnp.bfloat16)
    return dict(w_pt=w_pt, b_pt=b_pt, gamma=gamma, beta=beta, mean=mean,
                var=var, wk=wk, shift_k=shift.reshape(cout, 1))


def _linear_params(key, in_dim, out_dim, out_pad):
    k1, k2 = jax.random.split(key)
    w_pt = 0.1 * jax.random.normal(k1, (out_dim, in_dim), jnp.float32)
    b = 0.1 * jax.random.normal(k2, (out_dim,), jnp.float32)
    bk = jnp.pad(b, (0, out_pad - out_dim)).reshape(1, out_pad)
    return dict(w_pt=w_pt, b=b, bk=bk)


def init_params(key, *, n_hidden, n_res_blocks, h, w, n_actions):
    assert n_hidden % 8 == 0, "n_hidden must be a multiple of 8 (sublane tile)"
    keys = jax.random.split(key, 5 + 2 * n_res_blocks)
    a_pad = _round_up(n_actions, 128)
    return {
        "start": _conv_bn_params(keys[0], 3, n_hidden, n_hidden),
        "blocks": [
            {"c1": _conv_bn_params(keys[1 + 2 * i], n_hidden, n_hidden, n_hidden),
             "c2": _conv_bn_params(keys[2 + 2 * i], n_hidden, n_hidden, n_hidden)}
            for i in range(n_res_blocks)
        ],
        "pconv": _conv_bn_params(keys[1 + 2 * n_res_blocks], n_hidden, P_CH, n_hidden),
        "plin": _linear_params(keys[2 + 2 * n_res_blocks], P_CH * h * w,
                               n_actions, a_pad),
        "vconv": _conv_bn_params(keys[3 + 2 * n_res_blocks], n_hidden, V_CH, n_hidden),
        "vlin": _linear_params(keys[4 + 2 * n_res_blocks], V_CH * h * w, 1, 128),
    }


# ----------------------------------------------------------------------------
# Pure-JAX reference (eval-mode BN), float32 / HIGHEST precision
# ----------------------------------------------------------------------------
def _ref_conv_bn(x, p, relu=True, residual=None):
    y = lax.conv_general_dilated(
        x, p["w_pt"], window_strides=(1, 1), padding=((1, 1), (1, 1)),
        dimension_numbers=("NCHW", "OIHW", "NCHW"),
        precision=lax.Precision.HIGHEST)
    y = y + p["b_pt"][None, :, None, None]
    y = ((y - p["mean"][None, :, None, None])
         / jnp.sqrt(p["var"][None, :, None, None] + BN_EPS)
         * p["gamma"][None, :, None, None] + p["beta"][None, :, None, None])
    if residual is not None:
        y = y + residual
    if relu:
        y = jnp.maximum(y, 0.0)
    return y


def resnet_reference(params, x_nchw):
    x = _ref_conv_bn(x_nchw, params["start"])
    for blk in params["blocks"]:
        res = x
        mid = _ref_conv_bn(x, blk["c1"])
        x = _ref_conv_bn(mid, blk["c2"], residual=res)
    n = x.shape[0]
    ph = _ref_conv_bn(x, params["pconv"])
    policy = jnp.dot(ph.reshape(n, -1), params["plin"]["w_pt"].T,
                     precision=lax.Precision.HIGHEST) + params["plin"]["b"]
    vh = _ref_conv_bn(x, params["vconv"])
    value = jnp.tanh(jnp.dot(vh.reshape(n, -1), params["vlin"]["w_pt"].T,
                             precision=lax.Precision.HIGHEST)
                     + params["vlin"]["b"])
    return policy, value


# ----------------------------------------------------------------------------
if __name__ == "__main__":
    # Small GridGame: 8x8 board, 65 actions (64 cells + pass), batch of 2.
    N, H, W = 2, 8, 8
    N_HIDDEN, N_RES_BLOCKS, N_ACTIONS = 16, 2, 65

    key = jax.random.PRNGKey(0)
    k_params, k_x = jax.random.split(key)
    params = init_params(k_params, n_hidden=N_HIDDEN,
                         n_res_blocks=N_RES_BLOCKS, h=H, w=W,
                         n_actions=N_ACTIONS)
    x = jax.random.normal(k_x, (N, 3, H, W), jnp.float32)   # NCHW like PyTorch

    policy, value = jax.block_until_ready(jax.jit(resnet_forward)(params, x))
    assert policy.shape == (N, N_ACTIONS) and value.shape == (N, 1)

    # The kernel uses bf16 MXU operands (f32 accumulation); the reference is
    # f32/HIGHEST, so the tolerance is absolute-scale rather than per-logit.
    policy_ref, value_ref = resnet_reference(params, x)
    np.testing.assert_allclose(np.asarray(policy), np.asarray(policy_ref),
                               rtol=5e-2, atol=1e-1)
    np.testing.assert_allclose(np.asarray(value), np.asarray(value_ref),
                               rtol=5e-2, atol=1e-1)

    print("KERNEL_OK")
</pallas_src>

<mosaic_0001>
module attributes {stable_mosaic.version = 11 : i64} {
  func.func @kernel(%arg0: i32, %arg1: memref<144x128xf32, #tpu.memory_space<vmem>>, %arg2: memref<2x4096xf32, #tpu.memory_space<vmem>>, %arg3: memref<2x384xf32, #tpu.memory_space<vmem>>, %arg4: memref<16x128xf32, #tpu.memory_space<vmem>>, %arg5: memref<16x144xbf16, #tpu.memory_space<vmem>>, %arg6: memref<16x1xf32, #tpu.memory_space<vmem>>, %arg7: memref<16x144xbf16, #tpu.memory_space<vmem>>, %arg8: memref<16x1xf32, #tpu.memory_space<vmem>>, %arg9: memref<16x144xbf16, #tpu.memory_space<vmem>>, %arg10: memref<16x1xf32, #tpu.memory_space<vmem>>, %arg11: memref<16x144xbf16, #tpu.memory_space<vmem>>, %arg12: memref<16x1xf32, #tpu.memory_space<vmem>>, %arg13: memref<16x144xbf16, #tpu.memory_space<vmem>>, %arg14: memref<16x1xf32, #tpu.memory_space<vmem>>, %arg15: memref<40x144xbf16, #tpu.memory_space<vmem>>, %arg16: memref<40x1xf32, #tpu.memory_space<vmem>>, %arg17: memref<4096x128xbf16, #tpu.memory_space<any>>, %arg18: memref<1x128xf32, #tpu.memory_space<vmem>>, %arg19: memref<384x128xbf16, #tpu.memory_space<vmem>>, %arg20: memref<1x128xf32, #tpu.memory_space<vmem>>, %arg21: memref<2x128xf32, #tpu.memory_space<vmem>>, %arg22: memref<2x128xf32, #tpu.memory_space<vmem>>, %arg23: memref<4096x128xbf16, #tpu.memory_space<vmem>>, %arg24: memref<!tpu.dma_semaphore, #tpu.memory_space<semaphore_mem>>) attributes {dimension_semantics = [#tpu.dimension_semantics<arbitrary>], iteration_bounds = array<i64: 1>, scalar_prefetch = 0 : i64, scratch_operands = 2 : i64, tpu.core_type = #tpu.core_type<tc>, window_params = [{pipeline_mode = #tpu.pipeline_mode<synchronous>, transform_indices = @transform_0, window_bounds = array<i64: 144, 128>}, {pipeline_mode = #tpu.pipeline_mode<synchronous>, transform_indices = @transform_1, window_bounds = array<i64: 2, 4096>}, {pipeline_mode = #tpu.pipeline_mode<synchronous>, transform_indices = @transform_2, window_bounds = array<i64: 2, 384>}, {pipeline_mode = #tpu.pipeline_mode<synchronous>, transform_indices = @transform_3, window_bounds = array<i64: 16, 128>}, {pipeline_mode = #tpu.pipeline_mode<synchronous>, transform_indices = @transform_4, window_bounds = array<i64: 16, 144>}, {pipeline_mode = #tpu.pipeline_mode<synchronous>, transform_indices = @transform_5, window_bounds = array<i64: 16, 1>}, {pipeline_mode = #tpu.pipeline_mode<synchronous>, transform_indices = @transform_6, window_bounds = array<i64: 16, 144>}, {pipeline_mode = #tpu.pipeline_mode<synchronous>, transform_indices = @transform_7, window_bounds = array<i64: 16, 1>}, {pipeline_mode = #tpu.pipeline_mode<synchronous>, transform_indices = @transform_8, window_bounds = array<i64: 16, 144>}, {pipeline_mode = #tpu.pipeline_mode<synchronous>, transform_indices = @transform_9, window_bounds = array<i64: 16, 1>}, {pipeline_mode = #tpu.pipeline_mode<synchronous>, transform_indices = @transform_10, window_bounds = array<i64: 16, 144>}, {pipeline_mode = #tpu.pipeline_mode<synchronous>, transform_indices = @transform_11, window_bounds = array<i64: 16, 1>}, {pipeline_mode = #tpu.pipeline_mode<synchronous>, transform_indices = @transform_12, window_bounds = array<i64: 16, 144>}, {pipeline_mode = #tpu.pipeline_mode<synchronous>, transform_indices = @transform_13, window_bounds = array<i64: 16, 1>}, {pipeline_mode = #tpu.pipeline_mode<synchronous>, transform_indices = @transform_14, window_bounds = array<i64: 40, 144>}, {pipeline_mode = #tpu.pipeline_mode<synchronous>, transform_indices = @transform_15, window_bounds = array<i64: 40, 1>}, {}, {pipeline_mode = #tpu.pipeline_mode<synchronous>, transform_indices = @transform_17, window_bounds = array<i64: 1, 128>}, {pipeline_mode = #tpu.pipeline_mode<synchronous>, transform_indices = @transform_18, window_bounds = array<i64: 384, 128>}, {pipeline_mode = #tpu.pipeline_mode<synchronous>, transform_indices = @transform_19, window_bounds = array<i64: 1, 128>}, {pipeline_mode = #tpu.pipeline_mode<synchronous>, transform_indices = @transform_20, window_bounds = array<i64: 2, 128>}, {pipeline_mode = #tpu.pipeline_mode<synchronous>, transform_indices = @transform_21, window_bounds = array<i64: 2, 128>}]} {
    tpu.enqueue_dma source(%arg17 : memref<4096x128xbf16, #tpu.memory_space<any>>) target(%arg23 : memref<4096x128xbf16, #tpu.memory_space<vmem>>) target_semaphore(%arg24 : memref<!tpu.dma_semaphore, #tpu.memory_space<semaphore_mem>>)
    %c0 = arith.constant 0 : index
    %c0_0 = arith.constant 0 : index
    %0 = vector.load %arg1[%c0, %c0_0] : memref<144x128xf32, #tpu.memory_space<vmem>>, vector<144x128xf32>
    %c0_1 = arith.constant 0 : index
    %c0_2 = arith.constant 0 : index
    %1 = vector.load %arg4[%c0_1, %c0_2] : memref<16x128xf32, #tpu.memory_space<vmem>>, vector<16x128xf32>
    %c9_i32 = arith.constant 9 : i32
    %2 = tpu.dynamic_rotate %1 by %c9_i32 dim 1 : vector<16x128xf32>, i32 -> vector<16x128xf32>
    %c8_i32 = arith.constant 8 : i32
    %3 = tpu.dynamic_rotate %1 by %c8_i32 dim 1 : vector<16x128xf32>, i32 -> vector<16x128xf32>
    %c7_i32 = arith.constant 7 : i32
    %4 = tpu.dynamic_rotate %1 by %c7_i32 dim 1 : vector<16x128xf32>, i32 -> vector<16x128xf32>
    %c1_i32 = arith.constant 1 : i32
    %5 = tpu.dynamic_rotate %1 by %c1_i32 dim 1 : vector<16x128xf32>, i32 -> vector<16x128xf32>
    %c127_i32 = arith.constant 127 : i32
    %6 = tpu.dynamic_rotate %1 by %c127_i32 dim 1 : vector<16x128xf32>, i32 -> vector<16x128xf32>
    %c121_i32 = arith.constant 121 : i32
    %7 = tpu.dynamic_rotate %1 by %c121_i32 dim 1 : vector<16x128xf32>, i32 -> vector<16x128xf32>
    %c120_i32 = arith.constant 120 : i32
    %8 = tpu.dynamic_rotate %1 by %c120_i32 dim 1 : vector<16x128xf32>, i32 -> vector<16x128xf32>
    %c119_i32 = arith.constant 119 : i32
    %9 = tpu.dynamic_rotate %1 by %c119_i32 dim 1 : vector<16x128xf32>, i32 -> vector<16x128xf32>
    %10 = tpu.concatenate %2, %3, %4, %5, %1, %6, %7, %8, %9 in 0 : vector<16x128xf32>, vector<16x128xf32>, vector<16x128xf32>, vector<16x128xf32>, vector<16x128xf32>, vector<16x128xf32>, vector<16x128xf32>, vector<16x128xf32>, vector<16x128xf32> -> vector<144x128xf32>
    %11 = arith.mulf %10, %0 : vector<144x128xf32>
    %12 = arith.truncf %11 : vector<144x128xf32> to vector<144x128xbf16>
    %c0_3 = arith.constant 0 : index
    %c0_4 = arith.constant 0 : index
    %13 = vector.load %arg5[%c0_3, %c0_4] : memref<16x144xbf16, #tpu.memory_space<vmem>>, vector<16x144xbf16>
    %cst = arith.constant dense<0.000000e+00> : vector<16x128xf32>
    %14 = tpu.matmul %13, %12, %cst {dimension_numbers = #tpu.dot_dimension_numbers<[1], [0], [0], [1], [0, 0, 1, 1], [], []>} : vector<16x144xbf16>, vector<144x128xbf16>, vector<16x128xf32> -> vector<16x128xf32>
    %c0_5 = arith.constant 0 : index
    %c0_6 = arith.constant 0 : index
    %15 = vector.load %arg6[%c0_5, %c0_6] : memref<16x1xf32, #tpu.memory_space<vmem>>, vector<16x1xf32>
    %16 = vector.broadcast %15 : vector<16x1xf32> to vector<16x128xf32>
    %17 = arith.addf %14, %16 : vector<16x128xf32>
    %cst_7 = arith.constant 0.000000e+00 : f32
    %18 = vector.broadcast %cst_7 : f32 to vector<16x128xf32>
    %19 = arith.maximumf %17, %18 : vector<16x128xf32>
    %c9_i32_8 = arith.constant 9 : i32
    %20 = tpu.dynamic_rotate %19 by %c9_i32_8 dim 1 : vector<16x128xf32>, i32 -> vector<16x128xf32>
    %c8_i32_9 = arith.constant 8 : i32
    %21 = tpu.dynamic_rotate %19 by %c8_i32_9 dim 1 : vector<16x128xf32>, i32 -> vector<16x128xf32>
    %c7_i32_10 = arith.constant 7 : i32
    %22 = tpu.dynamic_rotate %19 by %c7_i32_10 dim 1 : vector<16x128xf32>, i32 -> vector<16x128xf32>
    %c1_i32_11 = arith.constant 1 : i32
    %23 = tpu.dynamic_rotate %19 by %c1_i32_11 dim 1 : vector<16x128xf32>, i32 -> vector<16x128xf32>
    %c127_i32_12 = arith.constant 127 : i32
    %24 = tpu.dynamic_rotate %19 by %c127_i32_12 dim 1 : vector<16x128xf32>, i32 -> vector<16x128xf32>
    %c121_i32_13 = arith.constant 121 : i32
    %25 = tpu.dynamic_rotate %19 by %c121_i32_13 dim 1 : vector<16x128xf32>, i32 -> vector<16x128xf32>
    %c120_i32_14 = arith.constant 120 : i32
    %26 = tpu.dynamic_rotate %19 by %c120_i32_14 dim 1 : vector<16x128xf32>, i32 -> vector<16x128xf32>
    %c119_i32_15 = arith.constant 119 : i32
    %27 = tpu.dynamic_rotate %19 by %c119_i32_15 dim 1 : vector<16x128xf32>, i32 -> vector<16x128xf32>
    %28 = tpu.concatenate %20, %21, %22, %23, %19, %24, %25, %26, %27 in 0 : vector<16x128xf32>, vector<16x128xf32>, vector<16x128xf32>, vector<16x128xf32>, vector<16x128xf32>, vector<16x128xf32>, vector<16x128xf32>, vector<16x128xf32>, vector<16x128xf32> -> vector<144x128xf32>
    %29 = arith.mulf %28, %0 : vector<144x128xf32>
    %30 = arith.truncf %29 : vector<144x128xf32> to vector<144x128xbf16>
    %c0_16 = arith.constant 0 : index
    %c0_17 = arith.constant 0 : index
    %31 = vector.load %arg7[%c0_16, %c0_17] : memref<16x144xbf16, #tpu.memory_space<vmem>>, vector<16x144xbf16>
    %cst_18 = arith.constant dense<0.000000e+00> : vector<16x128xf32>
    %32 = tpu.matmul %31, %30, %cst_18 {dimension_numbers = #tpu.dot_dimension_numbers<[1], [0], [0], [1], [0, 0, 1, 1], [], []>} : vector<16x144xbf16>, vector<144x128xbf16>, vector<16x128xf32> -> vector<16x128xf32>
    %c0_19 = arith.constant 0 : index
    %c0_20 = arith.constant 0 : index
    %33 = vector.load %arg8[%c0_19, %c0_20] : memref<16x1xf32, #tpu.memory_space<vmem>>, vector<16x1xf32>
    %34 = vector.broadcast %33 : vector<16x1xf32> to vector<16x128xf32>
    %35 = arith.addf %32, %34 : vector<16x128xf32>
    %cst_21 = arith.constant 0.000000e+00 : f32
    %36 = vector.broadcast %cst_21 : f32 to vector<16x128xf32>
    %37 = arith.maximumf %35, %36 : vector<16x128xf32>
    %c9_i32_22 = arith.constant 9 : i32
    %38 = tpu.dynamic_rotate %37 by %c9_i32_22 dim 1 : vector<16x128xf32>, i32 -> vector<16x128xf32>
    %c8_i32_23 = arith.constant 8 : i32
    %39 = tpu.dynamic_rotate %37 by %c8_i32_23 dim 1 : vector<16x128xf32>, i32 -> vector<16x128xf32>
    %c7_i32_24 = arith.constant 7 : i32
    %40 = tpu.dynamic_rotate %37 by %c7_i32_24 dim 1 : vector<16x128xf32>, i32 -> vector<16x128xf32>
    %c1_i32_25 = arith.constant 1 : i32
    %41 = tpu.dynamic_rotate %37 by %c1_i32_25 dim 1 : vector<16x128xf32>, i32 -> vector<16x128xf32>
    %c127_i32_26 = arith.constant 127 : i32
    %42 = tpu.dynamic_rotate %37 by %c127_i32_26 dim 1 : vector<16x128xf32>, i32 -> vector<16x128xf32>
    %c121_i32_27 = arith.constant 121 : i32
    %43 = tpu.dynamic_rotate %37 by %c121_i32_27 dim 1 : vector<16x128xf32>, i32 -> vector<16x128xf32>
    %c120_i32_28 = arith.constant 120 : i32
    %44 = tpu.dynamic_rotate %37 by %c120_i32_28 dim 1 : vector<16x128xf32>, i32 -> vector<16x128xf32>
    %c119_i32_29 = arith.constant 119 : i32
    %45 = tpu.dynamic_rotate %37 by %c119_i32_29 dim 1 : vector<16x128xf32>, i32 -> vector<16x128xf32>
    %46 = tpu.concatenate %38, %39, %40, %41, %37, %42, %43, %44, %45 in 0 : vector<16x128xf32>, vector<16x128xf32>, vector<16x128xf32>, vector<16x128xf32>, vector<16x128xf32>, vector<16x128xf32>, vector<16x128xf32>, vector<16x128xf32>, vector<16x128xf32> -> vector<144x128xf32>
    %47 = arith.mulf %46, %0 : vector<144x128xf32>
    %48 = arith.truncf %47 : vector<144x128xf32> to vector<144x128xbf16>
    %c0_30 = arith.constant 0 : index
    %c0_31 = arith.constant 0 : index
    %49 = vector.load %arg9[%c0_30, %c0_31] : memref<16x144xbf16, #tpu.memory_space<vmem>>, vector<16x144xbf16>
    %cst_32 = arith.constant dense<0.000000e+00> : vector<16x128xf32>
    %50 = tpu.matmul %49, %48, %cst_32 {dimension_numbers = #tpu.dot_dimension_numbers<[1], [0], [0], [1], [0, 0, 1, 1], [], []>} : vector<16x144xbf16>, vector<144x128xbf16>, vector<16x128xf32> -> vector<16x128xf32>
    %c0_33 = arith.constant 0 : index
    %c0_34 = arith.constant 0 : index
    %51 = vector.load %arg10[%c0_33, %c0_34] : memref<16x1xf32, #tpu.memory_space<vmem>>, vector<16x1xf32>
    %52 = vector.broadcast %51 : vector<16x1xf32> to vector<16x128xf32>
    %53 = arith.addf %50, %52 : vector<16x128xf32>
    %54 = arith.addf %53, %19 : vector<16x128xf32>
    %cst_35 = arith.constant 0.000000e+00 : f32
    %55 = vector.broadcast %cst_35 : f32 to vector<16x128xf32>
    %56 = arith.maximumf %54, %55 : vector<16x128xf32>
    %c9_i32_36 = arith.constant 9 : i32
    %57 = tpu.dynamic_rotate %56 by %c9_i32_36 dim 1 : vector<16x128xf32>, i32 -> vector<16x128xf32>
    %c8_i32_37 = arith.constant 8 : i32
    %58 = tpu.dynamic_rotate %56 by %c8_i32_37 dim 1 : vector<16x128xf32>, i32 -> vector<16x128xf32>
    %c7_i32_38 = arith.constant 7 : i32
    %59 = tpu.dynamic_rotate %56 by %c7_i32_38 dim 1 : vector<16x128xf32>, i32 -> vector<16x128xf32>
    %c1_i32_39 = arith.constant 1 : i32
    %60 = tpu.dynamic_rotate %56 by %c1_i32_39 dim 1 : vector<16x128xf32>, i32 -> vector<16x128xf32>
    %c127_i32_40 = arith.constant 127 : i32
    %61 = tpu.dynamic_rotate %56 by %c127_i32_40 dim 1 : vector<16x128xf32>, i32 -> vector<16x128xf32>
    %c121_i32_41 = arith.constant 121 : i32
    %62 = tpu.dynamic_rotate %56 by %c121_i32_41 dim 1 : vector<16x128xf32>, i32 -> vector<16x128xf32>
    %c120_i32_42 = arith.constant 120 : i32
    %63 = tpu.dynamic_rotate %56 by %c120_i32_42 dim 1 : vector<16x128xf32>, i32 -> vector<16x128xf32>
    %c119_i32_43 = arith.constant 119 : i32
    %64 = tpu.dynamic_rotate %56 by %c119_i32_43 dim 1 : vector<16x128xf32>, i32 -> vector<16x128xf32>
    %65 = tpu.concatenate %57, %58, %59, %60, %56, %61, %62, %63, %64 in 0 : vector<16x128xf32>, vector<16x128xf32>, vector<16x128xf32>, vector<16x128xf32>, vector<16x128xf32>, vector<16x128xf32>, vector<16x128xf32>, vector<16x128xf32>, vector<16x128xf32> -> vector<144x128xf32>
    %66 = arith.mulf %65, %0 : vector<144x128xf32>
    %67 = arith.truncf %66 : vector<144x128xf32> to vector<144x128xbf16>
    %c0_44 = arith.constant 0 : index
    %c0_45 = arith.constant 0 : index
    %68 = vector.load %arg11[%c0_44, %c0_45] : memref<16x144xbf16, #tpu.memory_space<vmem>>, vector<16x144xbf16>
    %cst_46 = arith.constant dense<0.000000e+00> : vector<16x128xf32>
    %69 = tpu.matmul %68, %67, %cst_46 {dimension_numbers = #tpu.dot_dimension_numbers<[1], [0], [0], [1], [0, 0, 1, 1], [], []>} : vector<16x144xbf16>, vector<144x128xbf16>, vector<16x128xf32> -> vector<16x128xf32>
    %c0_47 = arith.constant 0 : index
    %c0_48 = arith.constant 0 : index
    %70 = vector.load %arg12[%c0_47, %c0_48] : memref<16x1xf32, #tpu.memory_space<vmem>>, vector<16x1xf32>
    %71 = vector.broadcast %70 : vector<16x1xf32> to vector<16x128xf32>
    %72 = arith.addf %69, %71 : vector<16x128xf32>
    %cst_49 = arith.constant 0.000000e+00 : f32
    %73 = vector.broadcast %cst_49 : f32 to vector<16x128xf32>
    %74 = arith.maximumf %72, %73 : vector<16x128xf32>
    %c9_i32_50 = arith.constant 9 : i32
    %75 = tpu.dynamic_rotate %74 by %c9_i32_50 dim 1 : vector<16x128xf32>, i32 -> vector<16x128xf32>
    %c8_i32_51 = arith.constant 8 : i32
    %76 = tpu.dynamic_rotate %74 by %c8_i32_51 dim 1 : vector<16x128xf32>, i32 -> vector<16x128xf32>
    %c7_i32_52 = arith.constant 7 : i32
    %77 = tpu.dynamic_rotate %74 by %c7_i32_52 dim 1 : vector<16x128xf32>, i32 -> vector<16x128xf32>
    %c1_i32_53 = arith.constant 1 : i32
    %78 = tpu.dynamic_rotate %74 by %c1_i32_53 dim 1 : vector<16x128xf32>, i32 -> vector<16x128xf32>
    %c127_i32_54 = arith.constant 127 : i32
    %79 = tpu.dynamic_rotate %74 by %c127_i32_54 dim 1 : vector<16x128xf32>, i32 -> vector<16x128xf32>
    %c121_i32_55 = arith.constant 121 : i32
    %80 = tpu.dynamic_rotate %74 by %c121_i32_55 dim 1 : vector<16x128xf32>, i32 -> vector<16x128xf32>
    %c120_i32_56 = arith.constant 120 : i32
    %81 = tpu.dynamic_rotate %74 by %c120_i32_56 dim 1 : vector<16x128xf32>, i32 -> vector<16x128xf32>
    %c119_i32_57 = arith.constant 119 : i32
    %82 = tpu.dynamic_rotate %74 by %c119_i32_57 dim 1 : vector<16x128xf32>, i32 -> vector<16x128xf32>
    %83 = tpu.concatenate %75, %76, %77, %78, %74, %79, %80, %81, %82 in 0 : vector<16x128xf32>, vector<16x128xf32>, vector<16x128xf32>, vector<16x128xf32>, vector<16x128xf32>, vector<16x128xf32>, vector<16x128xf32>, vector<16x128xf32>, vector<16x128xf32> -> vector<144x128xf32>
    %84 = arith.mulf %83, %0 : vector<144x128xf32>
    %85 = arith.truncf %84 : vector<144x128xf32> to vector<144x128xbf16>
    %c0_58 = arith.constant 0 : index
    %c0_59 = arith.constant 0 : index
    %86 = vector.load %arg13[%c0_58, %c0_59] : memref<16x144xbf16, #tpu.memory_space<vmem>>, vector<16x144xbf16>
    %cst_60 = arith.constant dense<0.000000e+00> : vector<16x128xf32>
    %87 = tpu.matmul %86, %85, %cst_60 {dimension_numbers = #tpu.dot_dimension_numbers<[1], [0], [0], [1], [0, 0, 1, 1], [], []>} : vector<16x144xbf16>, vector<144x128xbf16>, vector<16x128xf32> -> vector<16x128xf32>
    %c0_61 = arith.constant 0 : index
    %c0_62 = arith.constant 0 : index
    %88 = vector.load %arg14[%c0_61, %c0_62] : memref<16x1xf32, #tpu.memory_space<vmem>>, vector<16x1xf32>
    %89 = vector.broadcast %88 : vector<16x1xf32> to vector<16x128xf32>
    %90 = arith.addf %87, %89 : vector<16x128xf32>
    %91 = arith.addf %90, %56 : vector<16x128xf32>
    %cst_63 = arith.constant 0.000000e+00 : f32
    %92 = vector.broadcast %cst_63 : f32 to vector<16x128xf32>
    %93 = arith.maximumf %91, %92 : vector<16x128xf32>
    %c9_i32_64 = arith.constant 9 : i32
    %94 = tpu.dynamic_rotate %93 by %c9_i32_64 dim 1 : vector<16x128xf32>, i32 -> vector<16x128xf32>
    %c8_i32_65 = arith.constant 8 : i32
    %95 = tpu.dynamic_rotate %93 by %c8_i32_65 dim 1 : vector<16x128xf32>, i32 -> vector<16x128xf32>
    %c7_i32_66 = arith.constant 7 : i32
    %96 = tpu.dynamic_rotate %93 by %c7_i32_66 dim 1 : vector<16x128xf32>, i32 -> vector<16x128xf32>
    %c1_i32_67 = arith.constant 1 : i32
    %97 = tpu.dynamic_rotate %93 by %c1_i32_67 dim 1 : vector<16x128xf32>, i32 -> vector<16x128xf32>
    %c127_i32_68 = arith.constant 127 : i32
    %98 = tpu.dynamic_rotate %93 by %c127_i32_68 dim 1 : vector<16x128xf32>, i32 -> vector<16x128xf32>
    %c121_i32_69 = arith.constant 121 : i32
    %99 = tpu.dynamic_rotate %93 by %c121_i32_69 dim 1 : vector<16x128xf32>, i32 -> vector<16x128xf32>
    %c120_i32_70 = arith.constant 120 : i32
    %100 = tpu.dynamic_rotate %93 by %c120_i32_70 dim 1 : vector<16x128xf32>, i32 -> vector<16x128xf32>
    %c119_i32_71 = arith.constant 119 : i32
    %101 = tpu.dynamic_rotate %93 by %c119_i32_71 dim 1 : vector<16x128xf32>, i32 -> vector<16x128xf32>
    %102 = tpu.concatenate %94, %95, %96, %97, %93, %98, %99, %100, %101 in 0 : vector<16x128xf32>, vector<16x128xf32>, vector<16x128xf32>, vector<16x128xf32>, vector<16x128xf32>, vector<16x128xf32>, vector<16x128xf32>, vector<16x128xf32>, vector<16x128xf32> -> vector<144x128xf32>
    %103 = arith.mulf %102, %0 : vector<144x128xf32>
    %104 = arith.truncf %103 : vector<144x128xf32> to vector<144x128xbf16>
    %c0_72 = arith.constant 0 : index
    %c0_73 = arith.constant 0 : index
    %105 = vector.load %arg15[%c0_72, %c0_73] : memref<40x144xbf16, #tpu.memory_space<vmem>>, vector<40x144xbf16>
    %cst_74 = arith.constant dense<0.000000e+00> : vector<40x128xf32>
    %106 = tpu.matmul %105, %104, %cst_74 {dimension_numbers = #tpu.dot_dimension_numbers<[1], [0], [0], [1], [0, 0, 1, 1], [], []>} : vector<40x144xbf16>, vector<144x128xbf16>, vector<40x128xf32> -> vector<40x128xf32>
    %c0_75 = arith.constant 0 : index
    %c0_76 = arith.constant 0 : index
    %107 = vector.load %arg16[%c0_75, %c0_76] : memref<40x1xf32, #tpu.memory_space<vmem>>, vector<40x1xf32>
    %108 = vector.broadcast %107 : vector<40x1xf32> to vector<40x128xf32>
    %109 = arith.addf %106, %108 : vector<40x128xf32>
    %cst_77 = arith.constant 0.000000e+00 : f32
    %110 = vector.broadcast %cst_77 : f32 to vector<40x128xf32>
    %111 = arith.maximumf %109, %110 : vector<40x128xf32>
    %112 = vector.extract_strided_slice %111 {offsets = [0, 0], sizes = [32, 128], strides = [1, 1]} : vector<40x128xf32> to vector<32x128xf32>
    %113 = vector.extract_strided_slice %111 {offsets = [32, 0], sizes = [3, 128], strides = [1, 1]} : vector<40x128xf32> to vector<3x128xf32>
    %114 = vector.extract_strided_slice %112 {offsets = [0, 0], sizes = [1, 128], strides = [1, 1]} : vector<32x128xf32> to vector<1x128xf32>
    %115 = vector.extract_strided_slice %112 {offsets = [1, 0], sizes = [1, 128], strides = [1, 1]} : vector<32x128xf32> to vector<1x128xf32>
    %116 = vector.extract_strided_slice %112 {offsets = [2, 0], sizes = [1, 128], strides = [1, 1]} : vector<32x128xf32> to vector<1x128xf32>
    %117 = vector.extract_strided_slice %112 {offsets = [3, 0], sizes = [1, 128], strides = [1, 1]} : vector<32x128xf32> to vector<1x128xf32>
    %118 = vector.extract_strided_slice %112 {offsets = [4, 0], sizes = [1, 128], strides = [1, 1]} : vector<32x128xf32> to vector<1x128xf32>
    %119 = vector.extract_strided_slice %112 {offsets = [5, 0], sizes = [1, 128], strides = [1, 1]} : vector<32x128xf32> to vector<1x128xf32>
    %120 = vector.extract_strided_slice %112 {offsets = [6, 0], sizes = [1, 128], strides = [1, 1]} : vector<32x128xf32> to vector<1x128xf32>
    %121 = vector.extract_strided_slice %112 {offsets = [7, 0], sizes = [1, 128], strides = [1, 1]} : vector<32x128xf32> to vector<1x128xf32>
    %122 = vector.extract_strided_slice %112 {offsets = [8, 0], sizes = [1, 128], strides = [1, 1]} : vector<32x128xf32> to vector<1x128xf32>
    %123 = vector.extract_strided_slice %112 {offsets = [9, 0], sizes = [1, 128], strides = [1, 1]} : vector<32x128xf32> to vector<1x128xf32>
    %124 = vector.extract_strided_slice %112 {offsets = [10, 0], sizes = [1, 128], strides = [1, 1]} : vector<32x128xf32> to vector<1x128xf32>
    %125 = vector.extract_strided_slice %112 {offsets = [11, 0], sizes = [1, 128], strides = [1, 1]} : vector<32x128xf32> to vector<1x128xf32>
    %126 = vector.extract_strided_slice %112 {offsets = [12, 0], sizes = [1, 128], strides = [1, 1]} : vector<32x128xf32> to vector<1x128xf32>
    %127 = vector.extract_strided_slice %112 {offsets = [13, 0], sizes = [1, 128], strides = [1, 1]} : vector<32x128xf32> to vector<1x128xf32>
    %128 = vector.extract_strided_slice %112 {offsets = [14, 0], sizes = [1, 128], strides = [1, 1]} : vector<32x128xf32> to vector<1x128xf32>
    %129 = vector.extract_strided_slice %112 {offsets = [15, 0], sizes = [1, 128], strides = [1, 1]} : vector<32x128xf32> to vector<1x128xf32>
    %130 = vector.extract_strided_slice %112 {offsets = [16, 0], sizes = [1, 128], strides = [1, 1]} : vector<32x128xf32> to vector<1x128xf32>
    %131 = vector.extract_strided_slice %112 {offsets = [17, 0], sizes = [1, 128], strides = [1, 1]} : vector<32x128xf32> to vector<1x128xf32>
    %132 = vector.extract_strided_slice %112 {offsets = [18, 0], sizes = [1, 128], strides = [1, 1]} : vector<32x128xf32> to vector<1x128xf32>
    %133 = vector.extract_strided_slice %112 {offsets = [19, 0], sizes = [1, 128], strides = [1, 1]} : vector<32x128xf32> to vector<1x128xf32>
    %134 = vector.extract_strided_slice %112 {offsets = [20, 0], sizes = [1, 128], strides = [1, 1]} : vector<32x128xf32> to vector<1x128xf32>
    %135 = vector.extract_strided_slice %112 {offsets = [21, 0], sizes = [1, 128], strides = [1, 1]} : vector<32x128xf32> to vector<1x128xf32>
    %136 = vector.extract_strided_slice %112 {offsets = [22, 0], sizes = [1, 128], strides = [1, 1]} : vector<32x128xf32> to vector<1x128xf32>
    %137 = vector.extract_strided_slice %112 {offsets = [23, 0], sizes = [1, 128], strides = [1, 1]} : vector<32x128xf32> to vector<1x128xf32>
    %138 = vector.extract_strided_slice %112 {offsets = [24, 0], sizes = [1, 128], strides = [1, 1]} : vector<32x128xf32> to vector<1x128xf32>
    %139 = vector.extract_strided_slice %112 {offsets = [25, 0], sizes = [1, 128], strides = [1, 1]} : vector<32x128xf32> to vector<1x128xf32>
    %140 = vector.extract_strided_slice %112 {offsets = [26, 0], sizes = [1, 128], strides = [1, 1]} : vector<32x128xf32> to vector<1x128xf32>
    %141 = vector.extract_strided_slice %112 {offsets = [27, 0], sizes = [1, 128], strides = [1, 1]} : vector<32x128xf32> to vector<1x128xf32>
    %142 = vector.extract_strided_slice %112 {offsets = [28, 0], sizes = [1, 128], strides = [1, 1]} : vector<32x128xf32> to vector<1x128xf32>
    %143 = vector.extract_strided_slice %112 {offsets = [29, 0], sizes = [1, 128], strides = [1, 1]} : vector<32x128xf32> to vector<1x128xf32>
    %144 = vector.extract_strided_slice %112 {offsets = [30, 0], sizes = [1, 128], strides = [1, 1]} : vector<32x128xf32> to vector<1x128xf32>
    %145 = vector.extract_strided_slice %112 {offsets = [31, 0], sizes = [1, 128], strides = [1, 1]} : vector<32x128xf32> to vector<1x128xf32>
    %146 = tpu.concatenate %114, %115, %116, %117, %118, %119, %120, %121, %122, %123, %124, %125, %126, %127, %128, %129 in 1 : vector<1x128xf32>, vector<1x128xf32>, vector<1x128xf32>, vector<1x128xf32>, vector<1x128xf32>, vector<1x128xf32>, vector<1x128xf32>, vector<1x128xf32>, vector<1x128xf32>, vector<1x128xf32>, vector<1x128xf32>, vector<1x128xf32>, vector<1x128xf32>, vector<1x128xf32>, vector<1x128xf32>, vector<1x128xf32> -> vector<1x2048xf32>
    %147 = tpu.concatenate %130, %131, %132, %133, %134, %135, %136, %137, %138, %139, %140, %141, %142, %143, %144, %145 in 1 : vector<1x128xf32>, vector<1x128xf32>, vector<1x128xf32>, vector<1x128xf32>, vector<1x128xf32>, vector<1x128xf32>, vector<1x128xf32>, vector<1x128xf32>, vector<1x128xf32>, vector<1x128xf32>, vector<1x128xf32>, vector<1x128xf32>, vector<1x128xf32>, vector<1x128xf32>, vector<1x128xf32>, vector<1x128xf32> -> vector<1x2048xf32>
    %148 = tpu.concatenate %146, %147 in 1 : vector<1x2048xf32>, vector<1x2048xf32> -> vector<1x4096xf32>
    %149 = vector.extract_strided_slice %113 {offsets = [0, 0], sizes = [1, 128], strides = [1, 1]} : vector<3x128xf32> to vector<1x128xf32>
    %150 = vector.extract_strided_slice %113 {offsets = [1, 0], sizes = [1, 128], strides = [1, 1]} : vector<3x128xf32> to vector<1x128xf32>
    %151 = vector.extract_strided_slice %113 {offsets = [2, 0], sizes = [1, 128], strides = [1, 1]} : vector<3x128xf32> to vector<1x128xf32>
    %152 = tpu.concatenate %149, %150, %151 in 1 : vector<1x128xf32>, vector<1x128xf32>, vector<1x128xf32> -> vector<1x384xf32>
    %c0_78 = arith.constant 0 : index
    %c0_79 = arith.constant 0 : index
    %153 = vector.load %arg2[%c0_78, %c0_79] : memref<2x4096xf32, #tpu.memory_space<vmem>>, vector<2x4096xf32>
    %154 = vector.broadcast %148 : vector<1x4096xf32> to vector<2x4096xf32>
    %155 = arith.mulf %154, %153 : vector<2x4096xf32>
    %156 = arith.truncf %155 : vector<2x4096xf32> to vector<2x4096xbf16>
    %c0_80 = arith.constant 0 : index
    %c0_81 = arith.constant 0 : index
    %157 = vector.load %arg3[%c0_80, %c0_81] : memref<2x384xf32, #tpu.memory_space<vmem>>, vector<2x384xf32>
    %158 = vector.broadcast %152 : vector<1x384xf32> to vector<2x384xf32>
    %159 = arith.mulf %158, %157 : vector<2x384xf32>
    %160 = arith.truncf %159 : vector<2x384xf32> to vector<2x384xbf16>
    %c0_82 = arith.constant 0 : index
    %c0_83 = arith.constant 0 : index
    %161 = vector.load %arg19[%c0_82, %c0_83] : memref<384x128xbf16, #tpu.memory_space<vmem>>, vector<384x128xbf16>
    %cst_84 = arith.constant dense<0.000000e+00> : vector<2x128xf32>
    %162 = tpu.matmul %160, %161, %cst_84 {dimension_numbers = #tpu.dot_dimension_numbers<[1], [0], [0], [1], [0, 0, 1, 1], [], []>} : vector<2x384xbf16>, vector<384x128xbf16>, vector<2x128xf32> -> vector<2x128xf32>
    %c0_85 = arith.constant 0 : index
    %c0_86 = arith.constant 0 : index
    %163 = vector.load %arg20[%c0_85, %c0_86] : memref<1x128xf32, #tpu.memory_space<vmem>>, vector<1x128xf32>
    %164 = vector.broadcast %163 : vector<1x128xf32> to vector<2x128xf32>
    %165 = arith.addf %162, %164 : vector<2x128xf32>
    %166 = math.tanh %165 : vector<2x128xf32>
    tpu.wait_dma2 semaphore(%arg24 : memref<!tpu.dma_semaphore, #tpu.memory_space<semaphore_mem>>) src(%arg17 : memref<4096x128xbf16, #tpu.memory_space<any>>) dst(%arg23 : memref<4096x128xbf16, #tpu.memory_space<vmem>>)
    %c0_87 = arith.constant 0 : index
    %c0_88 = arith.constant 0 : index
    %167 = vector.load %arg23[%c0_87, %c0_88] : memref<4096x128xbf16, #tpu.memory_space<vmem>>, vector<4096x128xbf16>
    %cst_89 = arith.constant dense<0.000000e+00> : vector<2x128xf32>
    %168 = tpu.matmul %156, %167, %cst_89 {dimension_numbers = #tpu.dot_dimension_numbers<[1], [0], [0], [1], [0, 0, 1, 1], [], []>} : vector<2x4096xbf16>, vector<4096x128xbf16>, vector<2x128xf32> -> vector<2x128xf32>
    %c0_90 = arith.constant 0 : index
    %c0_91 = arith.constant 0 : index
    %169 = vector.load %arg18[%c0_90, %c0_91] : memref<1x128xf32, #tpu.memory_space<vmem>>, vector<1x128xf32>
    %170 = vector.broadcast %169 : vector<1x128xf32> to vector<2x128xf32>
    %171 = arith.addf %168, %170 : vector<2x128xf32>
    %c0_92 = arith.constant 0 : index
    %c0_93 = arith.constant 0 : index
    %172 = vector.load %arg21[%c0_92, %c0_93] : memref<2x128xf32, #tpu.memory_space<vmem>>, vector<2x128xf32>
    tpu.vector_store %arg21[%c0_92, %c0_93], %171 {strides = array<i32>} : memref<2x128xf32, #tpu.memory_space<vmem>>, vector<2x128xf32>,
    %c0_94 = arith.constant 0 : index
    %c0_95 = arith.constant 0 : index
    %173 = vector.load %arg22[%c0_94, %c0_95] : memref<2x128xf32, #tpu.memory_space<vmem>>, vector<2x128xf32>
    tpu.vector_store %arg22[%c0_94, %c0_95], %166 {strides = array<i32>} : memref<2x128xf32, #tpu.memory_space<vmem>>, vector<2x128xf32>,
    return
  }
  func.func @transform_0(%arg0: i32) -> (i32, i32) {
    %c0_i32 = arith.constant 0 : i32
    %c0_i32_0 = arith.constant 0 : i32
    %c0_i32_1 = arith.constant 0 : i32
    return %c0_i32, %c0_i32_0 : i32, i32
  }
  func.func @transform_1(%arg0: i32) -> (i32, i32) {
    %c0_i32 = arith.constant 0 : i32
    %c0_i32_0 = arith.constant 0 : i32
    %c0_i32_1 = arith.constant 0 : i32
    return %c0_i32, %c0_i32_0 : i32, i32
  }
  func.func @transform_2(%arg0: i32) -> (i32, i32) {
    %c0_i32 = arith.constant 0 : i32
    %c0_i32_0 = arith.constant 0 : i32
    %c0_i32_1 = arith.constant 0 : i32
    return %c0_i32, %c0_i32_0 : i32, i32
  }
  func.func @transform_3(%arg0: i32) -> (i32, i32) {
    %c0_i32 = arith.constant 0 : i32
    %c0_i32_0 = arith.constant 0 : i32
    %c0_i32_1 = arith.constant 0 : i32
    return %c0_i32, %c0_i32_0 : i32, i32
  }
  func.func @transform_4(%arg0: i32) -> (i32, i32) {
    %c0_i32 = arith.constant 0 : i32
    %c0_i32_0 = arith.constant 0 : i32
    %c0_i32_1 = arith.constant 0 : i32
    return %c0_i32, %c0_i32_0 : i32, i32
  }
  func.func @transform_5(%arg0: i32) -> (i32, i32) {
    %c0_i32 = arith.constant 0 : i32
    %c0_i32_0 = arith.constant 0 : i32
    %c0_i32_1 = arith.constant 0 : i32
    return %c0_i32, %c0_i32_0 : i32, i32
  }
  func.func @transform_6(%arg0: i32) -> (i32, i32) {
    %c0_i32 = arith.constant 0 : i32
    %c0_i32_0 = arith.constant 0 : i32
    %c0_i32_1 = arith.constant 0 : i32
    return %c0_i32, %c0_i32_0 : i32, i32
  }
  func.func @transform_7(%arg0: i32) -> (i32, i32) {
    %c0_i32 = arith.constant 0 : i32
    %c0_i32_0 = arith.constant 0 : i32
    %c0_i32_1 = arith.constant 0 : i32
    return %c0_i32, %c0_i32_0 : i32, i32
  }
  func.func @transform_8(%arg0: i32) -> (i32, i32) {
    %c0_i32 = arith.constant 0 : i32
    %c0_i32_0 = arith.constant 0 : i32
    %c0_i32_1 = arith.constant 0 : i32
    return %c0_i32, %c0_i32_0 : i32, i32
  }
  func.func @transform_9(%arg0: i32) -> (i32, i32) {
    %c0_i32 = arith.constant 0 : i32
    %c0_i32_0 = arith.constant 0 : i32
    %c0_i32_1 = arith.constant 0 : i32
    return %c0_i32, %c0_i32_0 : i32, i32
  }
  func.func @transform_10(%arg0: i32) -> (i32, i32) {
    %c0_i32 = arith.constant 0 : i32
    %c0_i32_0 = arith.constant 0 : i32
    %c0_i32_1 = arith.constant 0 : i32
    return %c0_i32, %c0_i32_0 : i32, i32
  }
  func.func @transform_11(%arg0: i32) -> (i32, i32) {
    %c0_i32 = arith.constant 0 : i32
    %c0_i32_0 = arith.constant 0 : i32
    %c0_i32_1 = arith.constant 0 : i32
    return %c0_i32, %c0_i32_0 : i32, i32
  }
  func.func @transform_12(%arg0: i32) -> (i32, i32) {
    %c0_i32 = arith.constant 0 : i32
    %c0_i32_0 = arith.constant 0 : i32
    %c0_i32_1 = arith.constant 0 : i32
    return %c0_i32, %c0_i32_0 : i32, i32
  }
  func.func @transform_13(%arg0: i32) -> (i32, i32) {
    %c0_i32 = arith.constant 0 : i32
    %c0_i32_0 = arith.constant 0 : i32
    %c0_i32_1 = arith.constant 0 : i32
    return %c0_i32, %c0_i32_0 : i32, i32
  }
  func.func @transform_14(%arg0: i32) -> (i32, i32) {
    %c0_i32 = arith.constant 0 : i32
    %c0_i32_0 = arith.constant 0 : i32
    %c0_i32_1 = arith.constant 0 : i32
    return %c0_i32, %c0_i32_0 : i32, i32
  }
  func.func @transform_15(%arg0: i32) -> (i32, i32) {
    %c0_i32 = arith.constant 0 : i32
    %c0_i32_0 = arith.constant 0 : i32
    %c0_i32_1 = arith.constant 0 : i32
    return %c0_i32, %c0_i32_0 : i32, i32
  }
  func.func @transform_17(%arg0: i32) -> (i32, i32) {
    %c0_i32 = arith.constant 0 : i32
    %c0_i32_0 = arith.constant 0 : i32
    %c0_i32_1 = arith.constant 0 : i32
    return %c0_i32, %c0_i32_0 : i32, i32
  }
  func.func @transform_18(%arg0: i32) -> (i32, i32) {
    %c0_i32 = arith.constant 0 : i32
    %c0_i32_0 = arith.constant 0 : i32
    %c0_i32_1 = arith.constant 0 : i32
    return %c0_i32, %c0_i32_0 : i32, i32
  }
  func.func @transform_19(%arg0: i32) -> (i32, i32) {
    %c0_i32 = arith.constant 0 : i32
    %c0_i32_0 = arith.constant 0 : i32
    %c0_i32_1 = arith.constant 0 : i32
    return %c0_i32, %c0_i32_0 : i32, i32
  }
  func.func @transform_20(%arg0: i32) -> (i32, i32) {
    %c0_i32 = arith.constant 0 : i32
    %c0_i32_0 = arith.constant 0 : i32
    %c0_i32_1 = arith.constant 0 : i32
    return %c0_i32, %c0_i32_0 : i32, i32
  }
  func.func @transform_21(%arg0: i32) -> (i32, i32) {
    %c0_i32 = arith.constant 0 : i32
    %c0_i32_0 = arith.constant 0 : i32
    %c0_i32_1 = arith.constant 0 : i32
    return %c0_i32, %c0_i32_0 : i32, i32
  }
}

</mosaic_0001>

<llo_original>
// kernel: resnet_forward.1
$region0: #{resnet_forward.1}
  #allocation0 [shape = 'u32[]', space=smem, size = 0x4, offset = 0x4, fixed_abs, tag = 'smem constant byte address 0x4 - core index']
  #allocation1 [shape = 'u32[144,128]{1,0:T(1,128)}', space=vmem, size = 0x12000, scoped, tag = 'internal scratch']
  #allocation2 [shape = 'bf16[4096,128]{1,0:T(8,128)(2,1)}', space=vmem, size = 0x100000, scoped, tag = 'scratch operand']
  #allocation3 [shape = 's32[1]{0}', space=sflag, size = 0x4, scoped, tag = 'scratch operand']
  #allocation6 [shape = 's32[]', space=sflag, size = 0x4, offset = 0, fixed_abs, tag = 'sflag constant byte address 0x0 - dummy sync flag']
  %s0 = inlined_call_operand.vmem [shape: f32[144,128], index: 0, kind: input, shape index: {}]
  %s1 = inlined_call_operand.vmem [shape: f32[2,4096], index: 1, kind: input, shape index: {}]
  %s2 = inlined_call_operand.vmem [shape: f32[2,384], index: 2, kind: input, shape index: {}]
  %s3 = inlined_call_operand.vmem [shape: f32[16,128], index: 3, kind: input, shape index: {}]
  %s4 = inlined_call_operand.vmem [shape: bf16[16,144], index: 4, kind: input, shape index: {}]
  %s5 = inlined_call_operand.vmem [shape: f32[16,1], index: 5, kind: input, shape index: {}]
  %s6 = inlined_call_operand.vmem [shape: bf16[16,144], index: 6, kind: input, shape index: {}]
  %s7 = inlined_call_operand.vmem [shape: f32[16,1], index: 7, kind: input, shape index: {}]
  %s8 = inlined_call_operand.vmem [shape: bf16[16,144], index: 8, kind: input, shape index: {}]
  %s9 = inlined_call_operand.vmem [shape: f32[16,1], index: 9, kind: input, shape index: {}]
  %s10 = inlined_call_operand.vmem [shape: bf16[16,144], index: 10, kind: input, shape index: {}]
  %s11 = inlined_call_operand.vmem [shape: f32[16,1], index: 11, kind: input, shape index: {}]
  %s12 = inlined_call_operand.vmem [shape: bf16[16,144], index: 12, kind: input, shape index: {}]
  %s13 = inlined_call_operand.vmem [shape: f32[16,1], index: 13, kind: input, shape index: {}]
  %s14 = inlined_call_operand.vmem [shape: bf16[40,144], index: 14, kind: input, shape index: {}]
  %s15 = inlined_call_operand.vmem [shape: f32[40,1], index: 15, kind: input, shape index: {}]
  %s16 = inlined_call_operand.vmem [shape: bf16[4096,128], index: 16, kind: input, shape index: {}]
  %s17 = inlined_call_operand.vmem [shape: f32[1,128], index: 17, kind: input, shape index: {}]
  %s18 = inlined_call_operand.vmem [shape: bf16[384,128], index: 18, kind: input, shape index: {}]
  %s19 = inlined_call_operand.vmem [shape: f32[1,128], index: 19, kind: input, shape index: {}]
  %s20 = inlined_call_operand.hbm [shape: f32[2,128], index: 20, kind: output, shape index: {0}]
  %s21 = inlined_call_operand.vmem [shape: f32[2,128], index: 21, kind: output, shape index: {1}]
  %22 = xla_tuple %s20, %s21
  %s23 = sld [smem:[#allocation0]]
  $region128: #{resnet_forward.1} parent=0
    _
  %s25 = ssub.s32 1, %s23
  %s26 = scalar_select 0, %s25, %s23
  $region1: #{resnet_forward.1} parent=0
    #allocation4 [shape = 'u8[1024]{0}', space=vmem, size = 0x400, scoped, tag = 'output window, operand 0, single buffered']
    #allocation5 [shape = 's32[1]{0}', space=sflag, size = 0x4, scoped, tag = 'scoped memory for resnet_forward.1']
    %27 = vsyncpa [#allocation5], 0
    // Predicated region
    $region2: #{resnet_forward.1} parent=1 // pred_check
      _
    $region3: #{resnet_forward.1} parent=1 // pred_check_branch
      %29 = sbr.rel (0) target = $region5
    $region4: #{resnet_forward.1} parent=1 // pred_region
      _
    $region5: #{resnet_forward.1} parent=1 // pred_fallthru
      _
    // Predicated region
    $region6: #{resnet_forward.1} parent=1 // pred_check
      _
    $region7: #{resnet_forward.1} parent=1 // pred_check_branch
      %31 = sbr.rel (0) target = $region9
    $region8: #{resnet_forward.1} parent=1 // pred_region
      _
    $region9: #{resnet_forward.1} parent=1 // pred_fallthru
      _
    // Predicated region
    $region10: #{resnet_forward.1} parent=1 // pred_check
      _
    $region11: #{resnet_forward.1} parent=1 // pred_check_branch
      %33 = sbr.rel (0) target = $region13
    $region12: #{resnet_forward.1} parent=1 // pred_region
      _
    $region13: #{resnet_forward.1} parent=1 // pred_fallthru
      _
    // Predicated region
    $region14: #{resnet_forward.1} parent=1 // pred_check
      _
    $region15: #{resnet_forward.1} parent=1 // pred_check_branch
      %35 = sbr.rel (0) target = $region17
    $region16: #{resnet_forward.1} parent=1 // pred_region
      _
    $region17: #{resnet_forward.1} parent=1 // pred_fallthru
      _
    // Predicated region
    $region18: #{resnet_forward.1} parent=1 // pred_check
      _
    $region19: #{resnet_forward.1} parent=1 // pred_check_branch
      %37 = sbr.rel (0) target = $region21
    $region20: #{resnet_forward.1} parent=1 // pred_region
      _
    $region21: #{resnet_forward.1} parent=1 // pred_fallthru
      _
    // Predicated region
    $region22: #{resnet_forward.1} parent=1 // pred_check
      _
    $region23: #{resnet_forward.1} parent=1 // pred_check_branch
      %39 = sbr.rel (0) target = $region25
    $region24: #{resnet_forward.1} parent=1 // pred_region
      _
    $region25: #{resnet_forward.1} parent=1 // pred_fallthru
      _
    // Predicated region
    $region26: #{resnet_forward.1} parent=1 // pred_check
      _
    $region27: #{resnet_forward.1} parent=1 // pred_check_branch
      %41 = sbr.rel (0) target = $region29
    $region28: #{resnet_forward.1} parent=1 // pred_region
      _
    $region29: #{resnet_forward.1} parent=1 // pred_fallthru
      _
    // Predicated region
    $region30: #{resnet_forward.1} parent=1 // pred_check
      _
    $region31: #{resnet_forward.1} parent=1 // pred_check_branch
      %43 = sbr.rel (0) target = $region33
    $region32: #{resnet_forward.1} parent=1 // pred_region
      _
    $region33: #{resnet_forward.1} parent=1 // pred_fallthru
      _
    // Predicated region
    $region34: #{resnet_forward.1} parent=1 // pred_check
      _
    $region35: #{resnet_forward.1} parent=1 // pred_check_branch
      %45 = sbr.rel (0) target = $region37
    $region36: #{resnet_forward.1} parent=1 // pred_region
      _
    $region37: #{resnet_forward.1} parent=1 // pred_fallthru
      _
    // Predicated region
    $region38: #{resnet_forward.1} parent=1 // pred_check
      _
    $region39: #{resnet_forward.1} parent=1 // pred_check_branch
      %47 = sbr.rel (0) target = $region41
    $region40: #{resnet_forward.1} parent=1 // pred_region
      _
    $region41: #{resnet_forward.1} parent=1 // pred_fallthru
      _
    // Predicated region
    $region42: #{resnet_forward.1} parent=1 // pred_check
      _
    $region43: #{resnet_forward.1} parent=1 // pred_check_branch
      %49 = sbr.rel (0) target = $region45
    $region44: #{resnet_forward.1} parent=1 // pred_region
      _
    $region45: #{resnet_forward.1} parent=1 // pred_fallthru
      _
    // Predicated region
    $region46: #{resnet_forward.1} parent=1 // pred_check
      _
    $region47: #{resnet_forward.1} parent=1 // pred_check_branch
      %51 = sbr.rel (0) target = $region49
    $region48: #{resnet_forward.1} parent=1 // pred_region
      _
    $region49: #{resnet_forward.1} parent=1 // pred_fallthru
      _
    // Predicated region
    $region50: #{resnet_forward.1} parent=1 // pred_check
      _
    $region51: #{resnet_forward.1} parent=1 // pred_check_branch
      %53 = sbr.rel (0) target = $region53
    $region52: #{resnet_forward.1} parent=1 // pred_region
      _
    $region53: #{resnet_forward.1} parent=1 // pred_fallthru
      _
    // Predicated region
    $region54: #{resnet_forward.1} parent=1 // pred_check
      _
    $region55: #{resnet_forward.1} parent=1 // pred_check_branch
      %55 = sbr.rel (0) target = $region57
    $region56: #{resnet_forward.1} parent=1 // pred_region
      _
    $region57: #{resnet_forward.1} parent=1 // pred_fallthru
      _
    // Predicated region
    $region58: #{resnet_forward.1} parent=1 // pred_check
      _
    $region59: #{resnet_forward.1} parent=1 // pred_check_branch
      %57 = sbr.rel (0) target = $region61
    $region60: #{resnet_forward.1} parent=1 // pred_region
      _
    $region61: #{resnet_forward.1} parent=1 // pred_fallthru
      _
    // Predicated region
    $region62: #{resnet_forward.1} parent=1 // pred_check
      _
    $region63: #{resnet_forward.1} parent=1 // pred_check_branch
      %59 = sbr.rel (0) target = $region65
    $region64: #{resnet_forward.1} parent=1 // pred_region
      _
    $region65: #{resnet_forward.1} parent=1 // pred_fallthru
      _
    // Predicated region
    $region66: #{resnet_forward.1} parent=1 // pred_check
      _
    $region67: #{resnet_forward.1} parent=1 // pred_check_branch
      %61 = sbr.rel (0) target = $region69
    $region68: #{resnet_forward.1} parent=1 // pred_region
      _
    $region69: #{resnet_forward.1} parent=1 // pred_fallthru
      _
    // Predicated region
    $region70: #{resnet_forward.1} parent=1 // pred_check
      _
    $region71: #{resnet_forward.1} parent=1 // pred_check_branch
      %63 = sbr.rel (0) target = $region73
    $region72: #{resnet_forward.1} parent=1 // pred_region
      _
    $region73: #{resnet_forward.1} parent=1 // pred_fallthru
      _
    // Predicated region
    $region74: #{resnet_forward.1} parent=1 // pred_check
      _
    $region75: #{resnet_forward.1} parent=1 // pred_check_branch
      %65 = sbr.rel (0) target = $region77
    $region76: #{resnet_forward.1} parent=1 // pred_region
      _
    $region77: #{resnet_forward.1} parent=1 // pred_fallthru
      _
    %p68 = scmp.lt.u32.totalorder 2048, 8
    %p69 = pneg %p68
    // Predicated region
    $region78: #{resnet_forward.1} parent=1 // pred_check
      _
    $region79: #{resnet_forward.1} parent=1 // pred_check_branch
      %71 = sbr.rel (%p68) target = $region81
    $region80: #{resnet_forward.1} parent=1 // pred_region
      %s87 = sand.u32 2048, 7
      %p88 = scmp.eq.s32.totalorder %s87, 0
      // Predicated region
      $region93: #{resnet_forward.1} parent=80 // pred_check
        %p89 = pneg %p88
      $region94: #{resnet_forward.1} parent=80 // pred_check_branch
        %91 = sbr.rel (%p89) target = $region96
      $region95: #{resnet_forward.1} parent=80 // pred_region
        loop: start=0, step=1, limit=1
        $region97: #{resnet_forward.1} parent=95 // loop_pre_header
          _
        $region98: #{resnet_forward.1} parent=95 // loop_header
          %s93 = sphi 0, %s97
          %p94 = scmp.ge.s32.totalorder %s93, 1
          %s98 = sphi %s16, %s16
          %s99 = sphi [#allocation2], [#allocation2]
        $region99: #{resnet_forward.1} parent=95 // loop_header_branch
          %96 = sbr.rel (%p94) target = $region103
        $region100: #{resnet_forward.1} parent=95 // loop_body
          %v100 = vld [vmem:[%s98] sm:$0xff]
          %101 = vst [vmem:[%s99] sm:$0xff] %v100
          %v102 = vld [vmem:[%s98 + $0x8] sm:$0xff]
          %103 = vst [vmem:[%s99 + $0x8] sm:$0xff] %v102
          %v104 = vld [vmem:[%s98 + $0x10] sm:$0xff]
          %105 = vst [vmem:[%s99 + $0x10] sm:$0xff] %v104
          %v106 = vld [vmem:[%s98 + $0x18] sm:$0xff]
          %107 = vst [vmem:[%s99 + $0x18] sm:$0xff] %v106
          %v108 = vld [vmem:[%s98 + $0x20] sm:$0xff]
          %109 = vst [vmem:[%s99 + $0x20] sm:$0xff] %v108
          %v110 = vld [vmem:[%s98 + $0x28] sm:$0xff]
          %111 = vst [vmem:[%s99 + $0x28] sm:$0xff] %v110
          %v112 = vld [vmem:[%s98 + $0x30] sm:$0xff]
          %113 = vst [vmem:[%s99 + $0x30] sm:$0xff] %v112
          %v114 = vld [vmem:[%s98 + $0x38] sm:$0xff]
          %115 = vst [vmem:[%s99 + $0x38] sm:$0xff] %v114
          %v116 = vld [vmem:[%s98 + $0x40] sm:$0xff]
          %117 = vst [vmem:[%s99 + $0x40] sm:$0xff] %v116
          %v118 = vld [vmem:[%s98 + $0x48] sm:$0xff]
          %119 = vst [vmem:[%s99 + $0x48] sm:$0xff] %v118
          %v120 = vld [vmem:[%s98 + $0x50] sm:$0xff]
          %121 = vst [vmem:[%s99 + $0x50] sm:$0xff] %v120
          %v122 = vld [vmem:[%s98 + $0x58] sm:$0xff]
          %123 = vst [vmem:[%s99 + $0x58] sm:$0xff] %v122
          %v124 = vld [vmem:[%s98 + $0x60] sm:$0xff]
          %125 = vst [vmem:[%s99 + $0x60] sm:$0xff] %v124
          %v126 = vld [vmem:[%s98 + $0x68] sm:$0xff]
          %127 = vst [vmem:[%s99 + $0x68] sm:$0xff] %v126
          %v128 = vld [vmem:[%s98 + $0x70] sm:$0xff]
          %129 = vst [vmem:[%s99 + $0x70] sm:$0xff] %v128
          %v130 = vld [vmem:[%s98 + $0x78] sm:$0xff]
          %131 = vst [vmem:[%s99 + $0x78] sm:$0xff] %v130
          %v132 = vld [vmem:[%s98 + $0x80] sm:$0xff]
          %133 = vst [vmem:[%s99 + $0x80] sm:$0xff] %v132
          %v134 = vld [vmem:[%s98 + $0x88] sm:$0xff]
          %135 = vst [vmem:[%s99 + $0x88] sm:$0xff] %v134
          %v136 = vld [vmem:[%s98 + $0x90] sm:$0xff]
          %137 = vst [vmem:[%s99 + $0x90] sm:$0xff] %v136
          %v138 = vld [vmem:[%s98 + $0x98] sm:$0xff]
          %139 = vst [vmem:[%s99 + $0x98] sm:$0xff] %v138
          %v140 = vld [vmem:[%s98 + $0xa0] sm:$0xff]
          %141 = vst [vmem:[%s99 + $0xa0] sm:$0xff] %v140
          %v142 = vld [vmem:[%s98 + $0xa8] sm:$0xff]
          %143 = vst [vmem:[%s99 + $0xa8] sm:$0xff] %v142
          %v144 = vld [vmem:[%s98 + $0xb0] sm:$0xff]
          %145 = vst [vmem:[%s99 + $0xb0] sm:$0xff] %v144
          %v146 = vld [vmem:[%s98 + $0xb8] sm:$0xff]
          %147 = vst [vmem:[%s99 + $0xb8] sm:$0xff] %v146
          %v148 = vld [vmem:[%s98 + $0xc0] sm:$0xff]
          %149 = vst [vmem:[%s99 + $0xc0] sm:$0xff] %v148
          %v150 = vld [vmem:[%s98 + $0xc8] sm:$0xff]
          %151 = vst [vmem:[%s99 + $0xc8] sm:$0xff] %v150
          %v152 = vld [vmem:[%s98 + $0xd0] sm:$0xff]
          %153 = vst [vmem:[%s99 + $0xd0] sm:$0xff] %v152
          %v154 = vld [vmem:[%s98 + $0xd8] sm:$0xff]
          %155 = vst [vmem:[%s99 + $0xd8] sm:$0xff] %v154
          %v156 = vld [vmem:[%s98 + $0xe0] sm:$0xff]
          %157 = vst [vmem:[%s99 + $0xe0] sm:$0xff] %v156
          %v158 = vld [vmem:[%s98 + $0xe8] sm:$0xff]
          %159 = vst [vmem:[%s99 + $0xe8] sm:$0xff] %v158
          %v160 = vld [vmem:[%s98 + $0xf0] sm:$0xff]
          %161 = vst [vmem:[%s99 + $0xf0] sm:$0xff] %v160
          %v162 = vld [vmem:[%s98 + $0xf8] sm:$0xff]
          %163 = vst [vmem:[%s99 + $0xf8] sm:$0xff] %v162
          %v164 = vld [vmem:[%s98 + $0x100] sm:$0xff]
          %165 = vst [vmem:[%s99 + $0x100] sm:$0xff] %v164
          %v166 = vld [vmem:[%s98 + $0x108] sm:$0xff]
          %167 = vst [vmem:[%s99 + $0x108] sm:$0xff] %v166
          %v168 = vld [vmem:[%s98 + $0x110] sm:$0xff]
          %169 = vst [vmem:[%s99 + $0x110] sm:$0xff] %v168
          %v170 = vld [vmem:[%s98 + $0x118] sm:$0xff]
          %171 = vst [vmem:[%s99 + $0x118] sm:$0xff] %v170
          %v172 = vld [vmem:[%s98 + $0x120] sm:$0xff]
          %173 = vst [vmem:[%s99 + $0x120] sm:$0xff] %v172
          %v174 = vld [vmem:[%s98 + $0x128] sm:$0xff]
          %175 = vst [vmem:[%s99 + $0x128] sm:$0xff] %v174
          %v176 = vld [vmem:[%s98 + $0x130] sm:$0xff]
          %177 = vst [vmem:[%s99 + $0x130] sm:$0xff] %v176
          %v178 = vld [vmem:[%s98 + $0x138] sm:$0xff]
          %179 = vst [vmem:[%s99 + $0x138] sm:$0xff] %v178
          %v180 = vld [vmem:[%s98 + $0x140] sm:$0xff]
          %181 = vst [vmem:[%s99 + $0x140] sm:$0xff] %v180
          %v182 = vld [vmem:[%s98 + $0x148] sm:$0xff]
          %183 = vst [vmem:[%s99 + $0x148] sm:$0xff] %v182
          %v184 = vld [vmem:[%s98 + $0x150] sm:$0xff]
          %185 = vst [vmem:[%s99 + $0x150] sm:$0xff] %v184
          %v186 = vld [vmem:[%s98 + $0x158] sm:$0xff]
          %187 = vst [vmem:[%s99 + $0x158] sm:$0xff] %v186
          %v188 = vld [vmem:[%s98 + $0x160] sm:$0xff]
          %189 = vst [vmem:[%s99 + $0x160] sm:$0xff] %v188
          %v190 = vld [vmem:[%s98 + $0x168] sm:$0xff]
          %191 = vst [vmem:[%s99 + $0x168] sm:$0xff] %v190
          %v192 = vld [vmem:[%s98 + $0x170] sm:$0xff]
          %193 = vst [vmem:[%s99 + $0x170] sm:$0xff] %v192
          %v194 = vld [vmem:[%s98 + $0x178] sm:$0xff]
          %195 = vst [vmem:[%s99 + $0x178] sm:$0xff] %v194
          %v196 = vld [vmem:[%s98 + $0x180] sm:$0xff]
          %197 = vst [vmem:[%s99 + $0x180] sm:$0xff] %v196
          %v198 = vld [vmem:[%s98 + $0x188] sm:$0xff]
          %199 = vst [vmem:[%s99 + $0x188] sm:$0xff] %v198
          %v200 = vld [vmem:[%s98 + $0x190] sm:$0xff]
          %201 = vst [vmem:[%s99 + $0x190] sm:$0xff] %v200
          %v202 = vld [vmem:[%s98 + $0x198] sm:$0xff]
          %203 = vst [vmem:[%s99 + $0x198] sm:$0xff] %v202
          %v204 = vld [vmem:[%s98 + $0x1a0] sm:$0xff]
          %205 = vst [vmem:[%s99 + $0x1a0] sm:$0xff] %v204
          %v206 = vld [vmem:[%s98 + $0x1a8] sm:$0xff]
          %207 = vst [vmem:[%s99 + $0x1a8] sm:$0xff] %v206
          %v208 = vld [vmem:[%s98 + $0x1b0] sm:$0xff]
          %209 = vst [vmem:[%s99 + $0x1b0] sm:$0xff] %v208
          %v210 = vld [vmem:[%s98 + $0x1b8] sm:$0xff]
          %211 = vst [vmem:[%s99 + $0x1b8] sm:$0xff] %v210
          %v212 = vld [vmem:[%s98 + $0x1c0] sm:$0xff]
          %213 = vst [vmem:[%s99 + $0x1c0] sm:$0xff] %v212
          %v214 = vld [vmem:[%s98 + $0x1c8] sm:$0xff]
          %215 = vst [vmem:[%s99 + $0x1c8] sm:$0xff] %v214
          %v216 = vld [vmem:[%s98 + $0x1d0] sm:$0xff]
          %217 = vst [vmem:[%s99 + $0x1d0] sm:$0xff] %v216
          %v218 = vld [vmem:[%s98 + $0x1d8] sm:$0xff]
          %219 = vst [vmem:[%s99 + $0x1d8] sm:$0xff] %v218
          %v220 = vld [vmem:[%s98 + $0x1e0] sm:$0xff]
          %221 = vst [vmem:[%s99 + $0x1e0] sm:$0xff] %v220
          %v222 = vld [vmem:[%s98 + $0x1e8] sm:$0xff]
          %223 = vst [vmem:[%s99 + $0x1e8] sm:$0xff] %v222
          %v224 = vld [vmem:[%s98 + $0x1f0] sm:$0xff]
          %225 = vst [vmem:[%s99 + $0x1f0] sm:$0xff] %v224
          %v226 = vld [vmem:[%s98 + $0x1f8] sm:$0xff]
          %227 = vst [vmem:[%s99 + $0x1f8] sm:$0xff] %v226
          %v228 = vld [vmem:[%s98 + $0x200] sm:$0xff]
          %229 = vst [vmem:[%s99 + $0x200] sm:$0xff] %v228
          %v230 = vld [vmem:[%s98 + $0x208] sm:$0xff]
          %231 = vst [vmem:[%s99 + $0x208] sm:$0xff] %v230
          %v232 = vld [vmem:[%s98 + $0x210] sm:$0xff]
          %233 = vst [vmem:[%s99 + $0x210] sm:$0xff] %v232
          %v234 = vld [vmem:[%s98 + $0x218] sm:$0xff]
          %235 = vst [vmem:[%s99 + $0x218] sm:$0xff] %v234
          %v236 = vld [vmem:[%s98 + $0x220] sm:$0xff]
          %237 = vst [vmem:[%s99 + $0x220] sm:$0xff] %v236
          %v238 = vld [vmem:[%s98 + $0x228] sm:$0xff]
          %239 = vst [vmem:[%s99 + $0x228] sm:$0xff] %v238
          %v240 = vld [vmem:[%s98 + $0x230] sm:$0xff]
          %241 = vst [vmem:[%s99 + $0x230] sm:$0xff] %v240
          %v242 = vld [vmem:[%s98 + $0x238] sm:$0xff]
          %243 = vst [vmem:[%s99 + $0x238] sm:$0xff] %v242
          %v244 = vld [vmem:[%s98 + $0x240] sm:$0xff]
          %245 = vst [vmem:[%s99 + $0x240] sm:$0xff] %v244
          %v246 = vld [vmem:[%s98 + $0x248] sm:$0xff]
          %247 = vst [vmem:[%s99 + $0x248] sm:$0xff] %v246
          %v248 = vld [vmem:[%s98 + $0x250] sm:$0xff]
          %249 = vst [vmem:[%s99 + $0x250] sm:$0xff] %v248
          %v250 = vld [vmem:[%s98 + $0x258] sm:$0xff]
          %251 = vst [vmem:[%s99 + $0x258] sm:$0xff] %v250
          %v252 = vld [vmem:[%s98 + $0x260] sm:$0xff]
          %253 = vst [vmem:[%s99 + $0x260] sm:$0xff] %v252
          %v254 = vld [vmem:[%s98 + $0x268] sm:$0xff]
          %255 = vst [vmem:[%s99 + $0x268] sm:$0xff] %v254
          %v256 = vld [vmem:[%s98 + $0x270] sm:$0xff]
          %257 = vst [vmem:[%s99 + $0x270] sm:$0xff] %v256
          %v258 = vld [vmem:[%s98 + $0x278] sm:$0xff]
          %259 = vst [vmem:[%s99 + $0x278] sm:$0xff] %v258
          %v260 = vld [vmem:[%s98 + $0x280] sm:$0xff]
          %261 = vst [vmem:[%s99 + $0x280] sm:$0xff] %v260
          %v262 = vld [vmem:[%s98 + $0x288] sm:$0xff]
          %263 = vst [vmem:[%s99 + $0x288] sm:$0xff] %v262
          %v264 = vld [vmem:[%s98 + $0x290] sm:$0xff]
          %265 = vst [vmem:[%s99 + $0x290] sm:$0xff] %v264
          %v266 = vld [vmem:[%s98 + $0x298] sm:$0xff]
          %267 = vst [vmem:[%s99 + $0x298] sm:$0xff] %v266
          %v268 = vld [vmem:[%s98 + $0x2a0] sm:$0xff]
          %269 = vst [vmem:[%s99 + $0x2a0] sm:$0xff] %v268
          %v270 = vld [vmem:[%s98 + $0x2a8] sm:$0xff]
          %271 = vst [vmem:[%s99 + $0x2a8] sm:$0xff] %v270
          %v272 = vld [vmem:[%s98 + $0x2b0] sm:$0xff]
          %273 = vst [vmem:[%s99 + $0x2b0] sm:$0xff] %v272
          %v274 = vld [vmem:[%s98 + $0x2b8] sm:$0xff]
          %275 = vst [vmem:[%s99 + $0x2b8] sm:$0xff] %v274
          %v276 = vld [vmem:[%s98 + $0x2c0] sm:$0xff]
          %277 = vst [vmem:[%s99 + $0x2c0] sm:$0xff] %v276
          %v278 = vld [vmem:[%s98 + $0x2c8] sm:$0xff]
          %279 = vst [vmem:[%s99 + $0x2c8] sm:$0xff] %v278
          %v280 = vld [vmem:[%s98 + $0x2d0] sm:$0xff]
          %281 = vst [vmem:[%s99 + $0x2d0] sm:$0xff] %v280
          %v282 = vld [vmem:[%s98 + $0x2d8] sm:$0xff]
          %283 = vst [vmem:[%s99 + $0x2d8] sm:$0xff] %v282
          %v284 = vld [vmem:[%s98 + $0x2e0] sm:$0xff]
          %285 = vst [vmem:[%s99 + $0x2e0] sm:$0xff] %v284
          %v286 = vld [vmem:[%s98 + $0x2e8] sm:$0xff]
          %287 = vst [vmem:[%s99 + $0x2e8] sm:$0xff] %v286
          %v288 = vld [vmem:[%s98 + $0x2f0] sm:$0xff]
          %289 = vst [vmem:[%s99 + $0x2f0] sm:$0xff] %v288
          %v290 = vld [vmem:[%s98 + $0x2f8] sm:$0xff]
          %291 = vst [vmem:[%s99 + $0x2f8] sm:$0xff] %v290
          %v292 = vld [vmem:[%s98 + $0x300] sm:$0xff]
          %293 = vst [vmem:[%s99 + $0x300] sm:$0xff] %v292
          %v294 = vld [vmem:[%s98 + $0x308] sm:$0xff]
          %295 = vst [vmem:[%s99 + $0x308] sm:$0xff] %v294
          %v296 = vld [vmem:[%s98 + $0x310] sm:$0xff]
          %297 = vst [vmem:[%s99 + $0x310] sm:$0xff] %v296
          %v298 = vld [vmem:[%s98 + $0x318] sm:$0xff]
          %299 = vst [vmem:[%s99 + $0x318] sm:$0xff] %v298
          %v300 = vld [vmem:[%s98 + $0x320] sm:$0xff]
          %301 = vst [vmem:[%s99 + $0x320] sm:$0xff] %v300
          %v302 = vld [vmem:[%s98 + $0x328] sm:$0xff]
          %303 = vst [vmem:[%s99 + $0x328] sm:$0xff] %v302
          %v304 = vld [vmem:[%s98 + $0x330] sm:$0xff]
          %305 = vst [vmem:[%s99 + $0x330] sm:$0xff] %v304
          %v306 = vld [vmem:[%s98 + $0x338] sm:$0xff]
          %307 = vst [vmem:[%s99 + $0x338] sm:$0xff] %v306
          %v308 = vld [vmem:[%s98 + $0x340] sm:$0xff]
          %309 = vst [vmem:[%s99 + $0x340] sm:$0xff] %v308
          %v310 = vld [vmem:[%s98 + $0x348] sm:$0xff]
          %311 = vst [vmem:[%s99 + $0x348] sm:$0xff] %v310
          %v312 = vld [vmem:[%s98 + $0x350] sm:$0xff]
          %313 = vst [vmem:[%s99 + $0x350] sm:$0xff] %v312
          %v314 = vld [vmem:[%s98 + $0x358] sm:$0xff]
          %315 = vst [vmem:[%s99 + $0x358] sm:$0xff] %v314
          %v316 = vld [vmem:[%s98 + $0x360] sm:$0xff]
          %317 = vst [vmem:[%s99 + $0x360] sm:$0xff] %v316
          %v318 = vld [vmem:[%s98 + $0x368] sm:$0xff]
          %319 = vst [vmem:[%s99 + $0x368] sm:$0xff] %v318
          %v320 = vld [vmem:[%s98 + $0x370] sm:$0xff]
          %321 = vst [vmem:[%s99 + $0x370] sm:$0xff] %v320
          %v322 = vld [vmem:[%s98 + $0x378] sm:$0xff]
          %323 = vst [vmem:[%s99 + $0x378] sm:$0xff] %v322
          %v324 = vld [vmem:[%s98 + $0x380] sm:$0xff]
          %325 = vst [vmem:[%s99 + $0x380] sm:$0xff] %v324
          %v326 = vld [vmem:[%s98 + $0x388] sm:$0xff]
          %327 = vst [vmem:[%s99 + $0x388] sm:$0xff] %v326
          %v328 = vld [vmem:[%s98 + $0x390] sm:$0xff]
          %329 = vst [vmem:[%s99 + $0x390] sm:$0xff] %v328
          %v330 = vld [vmem:[%s98 + $0x398] sm:$0xff]
          %331 = vst [vmem:[%s99 + $0x398] sm:$0xff] %v330
          %v332 = vld [vmem:[%s98 + $0x3a0] sm:$0xff]
          %333 = vst [vmem:[%s99 + $0x3a0] sm:$0xff] %v332
          %v334 = vld [vmem:[%s98 + $0x3a8] sm:$0xff]
          %335 = vst [vmem:[%s99 + $0x3a8] sm:$0xff] %v334
          %v336 = vld [vmem:[%s98 + $0x3b0] sm:$0xff]
          %337 = vst [vmem:[%s99 + $0x3b0] sm:$0xff] %v336
          %v338 = vld [vmem:[%s98 + $0x3b8] sm:$0xff]
          %339 = vst [vmem:[%s99 + $0x3b8] sm:$0xff] %v338
          %v340 = vld [vmem:[%s98 + $0x3c0] sm:$0xff]
          %341 = vst [vmem:[%s99 + $0x3c0] sm:$0xff] %v340
          %v342 = vld [vmem:[%s98 + $0x3c8] sm:$0xff]
          %343 = vst [vmem:[%s99 + $0x3c8] sm:$0xff] %v342
          %v344 = vld [vmem:[%s98 + $0x3d0] sm:$0xff]
          %345 = vst [vmem:[%s99 + $0x3d0] sm:$0xff] %v344
          %v346 = vld [vmem:[%s98 + $0x3d8] sm:$0xff]
          %347 = vst [vmem:[%s99 + $0x3d8] sm:$0xff] %v346
          %v348 = vld [vmem:[%s98 + $0x3e0] sm:$0xff]
          %349 = vst [vmem:[%s99 + $0x3e0] sm:$0xff] %v348
          %v350 = vld [vmem:[%s98 + $0x3e8] sm:$0xff]
          %351 = vst [vmem:[%s99 + $0x3e8] sm:$0xff] %v350
          %v352 = vld [vmem:[%s98 + $0x3f0] sm:$0xff]
          %353 = vst [vmem:[%s99 + $0x3f0] sm:$0xff] %v352
          %v354 = vld [vmem:[%s98 + $0x3f8] sm:$0xff]
          %355 = vst [vmem:[%s99 + $0x3f8] sm:$0xff] %v354
          %v356 = vld [vmem:[%s98 + $0x400] sm:$0xff]
          %357 = vst [vmem:[%s99 + $0x400] sm:$0xff] %v356
          %v358 = vld [vmem:[%s98 + $0x408] sm:$0xff]
          %359 = vst [vmem:[%s99 + $0x408] sm:$0xff] %v358
          %v360 = vld [vmem:[%s98 + $0x410] sm:$0xff]
          %361 = vst [vmem:[%s99 + $0x410] sm:$0xff] %v360
          %v362 = vld [vmem:[%s98 + $0x418] sm:$0xff]
          %363 = vst [vmem:[%s99 + $0x418] sm:$0xff] %v362
          %v364 = vld [vmem:[%s98 + $0x420] sm:$0xff]
          %365 = vst [vmem:[%s99 + $0x420] sm:$0xff] %v364
          %v366 = vld [vmem:[%s98 + $0x428] sm:$0xff]
          %367 = vst [vmem:[%s99 + $0x428] sm:$0xff] %v366
          %v368 = vld [vmem:[%s98 + $0x430] sm:$0xff]
          %369 = vst [vmem:[%s99 + $0x430] sm:$0xff] %v368
          %v370 = vld [vmem:[%s98 + $0x438] sm:$0xff]
          %371 = vst [vmem:[%s99 + $0x438] sm:$0xff] %v370
          %v372 = vld [vmem:[%s98 + $0x440] sm:$0xff]
          %373 = vst [vmem:[%s99 + $0x440] sm:$0xff] %v372
          %v374 = vld [vmem:[%s98 + $0x448] sm:$0xff]
          %375 = vst [vmem:[%s99 + $0x448] sm:$0xff] %v374
          %v376 = vld [vmem:[%s98 + $0x450] sm:$0xff]
          %377 = vst [vmem:[%s99 + $0x450] sm:$0xff] %v376
          %v378 = vld [vmem:[%s98 + $0x458] sm:$0xff]
          %379 = vst [vmem:[%s99 + $0x458] sm:$0xff] %v378
          %v380 = vld [vmem:[%s98 + $0x460] sm:$0xff]
          %381 = vst [vmem:[%s99 + $0x460] sm:$0xff] %v380
          %v382 = vld [vmem:[%s98 + $0x468] sm:$0xff]
          %383 = vst [vmem:[%s99 + $0x468] sm:$0xff] %v382
          %v384 = vld [vmem:[%s98 + $0x470] sm:$0xff]
          %385 = vst [vmem:[%s99 + $0x470] sm:$0xff] %v384
          %v386 = vld [vmem:[%s98 + $0x478] sm:$0xff]
          %387 = vst [vmem:[%s99 + $0x478] sm:$0xff] %v386
          %v388 = vld [vmem:[%s98 + $0x480] sm:$0xff]
          %389 = vst [vmem:[%s99 + $0x480] sm:$0xff] %v388
          %v390 = vld [vmem:[%s98 + $0x488] sm:$0xff]
          %391 = vst [vmem:[%s99 + $0x488] sm:$0xff] %v390
          %v392 = vld [vmem:[%s98 + $0x490] sm:$0xff]
          %393 = vst [vmem:[%s99 + $0x490] sm:$0xff] %v392
          %v394 = vld [vmem:[%s98 + $0x498] sm:$0xff]
          %395 = vst [vmem:[%s99 + $0x498] sm:$0xff] %v394
          %v396 = vld [vmem:[%s98 + $0x4a0] sm:$0xff]
          %397 = vst [vmem:[%s99 + $0x4a0] sm:$0xff] %v396
          %v398 = vld [vmem:[%s98 + $0x4a8] sm:$0xff]
          %399 = vst [vmem:[%s99 + $0x4a8] sm:$0xff] %v398
          %v400 = vld [vmem:[%s98 + $0x4b0] sm:$0xff]
          %401 = vst [vmem:[%s99 + $0x4b0] sm:$0xff] %v400
          %v402 = vld [vmem:[%s98 + $0x4b8] sm:$0xff]
          %403 = vst [vmem:[%s99 + $0x4b8] sm:$0xff] %v402
          %v404 = vld [vmem:[%s98 + $0x4c0] sm:$0xff]
          %405 = vst [vmem:[%s99 + $0x4c0] sm:$0xff] %v404
          %v406 = vld [vmem:[%s98 + $0x4c8] sm:$0xff]
          %407 = vst [vmem:[%s99 + $0x4c8] sm:$0xff] %v406
          %v408 = vld [vmem:[%s98 + $0x4d0] sm:$0xff]
          %409 = vst [vmem:[%s99 + $0x4d0] sm:$0xff] %v408
          %v410 = vld [vmem:[%s98 + $0x4d8] sm:$0xff]
          %411 = vst [vmem:[%s99 + $0x4d8] sm:$0xff] %v410
          %v412 = vld [vmem:[%s98 + $0x4e0] sm:$0xff]
          %413 = vst [vmem:[%s99 + $0x4e0] sm:$0xff] %v412
          %v414 = vld [vmem:[%s98 + $0x4e8] sm:$0xff]
          %415 = vst [vmem:[%s99 + $0x4e8] sm:$0xff] %v414
          %v416 = vld [vmem:[%s98 + $0x4f0] sm:$0xff]
          %417 = vst [vmem:[%s99 + $0x4f0] sm:$0xff] %v416
          %v418 = vld [vmem:[%s98 + $0x4f8] sm:$0xff]
          %419 = vst [vmem:[%s99 + $0x4f8] sm:$0xff] %v418
          %v420 = vld [vmem:[%s98 + $0x500] sm:$0xff]
          %421 = vst [vmem:[%s99 + $0x500] sm:$0xff] %v420
          %v422 = vld [vmem:[%s98 + $0x508] sm:$0xff]
          %423 = vst [vmem:[%s99 + $0x508] sm:$0xff] %v422
          %v424 = vld [vmem:[%s98 + $0x510] sm:$0xff]
          %425 = vst [vmem:[%s99 + $0x510] sm:$0xff] %v424
          %v426 = vld [vmem:[%s98 + $0x518] sm:$0xff]
          %427 = vst [vmem:[%s99 + $0x518] sm:$0xff] %v426
          %v428 = vld [vmem:[%s98 + $0x520] sm:$0xff]
          %429 = vst [vmem:[%s99 + $0x520] sm:$0xff] %v428
          %v430 = vld [vmem:[%s98 + $0x528] sm:$0xff]
          %431 = vst [vmem:[%s99 + $0x528] sm:$0xff] %v430
          %v432 = vld [vmem:[%s98 + $0x530] sm:$0xff]
          %433 = vst [vmem:[%s99 + $0x530] sm:$0xff] %v432
          %v434 = vld [vmem:[%s98 + $0x538] sm:$0xff]
          %435 = vst [vmem:[%s99 + $0x538] sm:$0xff] %v434
          %v436 = vld [vmem:[%s98 + $0x540] sm:$0xff]
          %437 = vst [vmem:[%s99 + $0x540] sm:$0xff] %v436
          %v438 = vld [vmem:[%s98 + $0x548] sm:$0xff]
          %439 = vst [vmem:[%s99 + $0x548] sm:$0xff] %v438
          %v440 = vld [vmem:[%s98 + $0x550] sm:$0xff]
          %441 = vst [vmem:[%s99 + $0x550] sm:$0xff] %v440
          %v442 = vld [vmem:[%s98 + $0x558] sm:$0xff]
          %443 = vst [vmem:[%s99 + $0x558] sm:$0xff] %v442
          %v444 = vld [vmem:[%s98 + $0x560] sm:$0xff]
          %445 = vst [vmem:[%s99 + $0x560] sm:$0xff] %v444
          %v446 = vld [vmem:[%s98 + $0x568] sm:$0xff]
          %447 = vst [vmem:[%s99 + $0x568] sm:$0xff] %v446
          %v448 = vld [vmem:[%s98 + $0x570] sm:$0xff]
          %449 = vst [vmem:[%s99 + $0x570] sm:$0xff] %v448
          %v450 = vld [vmem:[%s98 + $0x578] sm:$0xff]
          %451 = vst [vmem:[%s99 + $0x578] sm:$0xff] %v450
          %v452 = vld [vmem:[%s98 + $0x580] sm:$0xff]
          %453 = vst [vmem:[%s99 + $0x580] sm:$0xff] %v452
          %v454 = vld [vmem:[%s98 + $0x588] sm:$0xff]
          %455 = vst [vmem:[%s99 + $0x588] sm:$0xff] %v454
          %v456 = vld [vmem:[%s98 + $0x590] sm:$0xff]
          %457 = vst [vmem:[%s99 + $0x590] sm:$0xff] %v456
          %v458 = vld [vmem:[%s98 + $0x598] sm:$0xff]
          %459 = vst [vmem:[%s99 + $0x598] sm:$0xff] %v458
          %v460 = vld [vmem:[%s98 + $0x5a0] sm:$0xff]
          %461 = vst [vmem:[%s99 + $0x5a0] sm:$0xff] %v460
          %v462 = vld [vmem:[%s98 + $0x5a8] sm:$0xff]
          %463 = vst [vmem:[%s99 + $0x5a8] sm:$0xff] %v462
          %v464 = vld [vmem:[%s98 + $0x5b0] sm:$0xff]
          %465 = vst [vmem:[%s99 + $0x5b0] sm:$0xff] %v464
          %v466 = vld [vmem:[%s98 + $0x5b8] sm:$0xff]
          %467 = vst [vmem:[%s99 + $0x5b8] sm:$0xff] %v466
          %v468 = vld [vmem:[%s98 + $0x5c0] sm:$0xff]
          %469 = vst [vmem:[%s99 + $0x5c0] sm:$0xff] %v468
          %v470 = vld [vmem:[%s98 + $0x5c8] sm:$0xff]
          %471 = vst [vmem:[%s99 + $0x5c8] sm:$0xff] %v470
          %v472 = vld [vmem:[%s98 + $0x5d0] sm:$0xff]
          %473 = vst [vmem:[%s99 + $0x5d0] sm:$0xff] %v472
          %v474 = vld [vmem:[%s98 + $0x5d8] sm:$0xff]
          %475 = vst [vmem:[%s99 + $0x5d8] sm:$0xff] %v474
          %v476 = vld [vmem:[%s98 + $0x5e0] sm:$0xff]
          %477 = vst [vmem:[%s99 + $0x5e0] sm:$0xff] %v476
          %v478 = vld [vmem:[%s98 + $0x5e8] sm:$0xff]
          %479 = vst [vmem:[%s99 + $0x5e8] sm:$0xff] %v478
          %v480 = vld [vmem:[%s98 + $0x5f0] sm:$0xff]
          %481 = vst [vmem:[%s99 + $0x5f0] sm:$0xff] %v480
          %v482 = vld [vmem:[%s98 + $0x5f8] sm:$0xff]
          %483 = vst [vmem:[%s99 + $0x5f8] sm:$0xff] %v482
          %v484 = vld [vmem:[%s98 + $0x600] sm:$0xff]
          %485 = vst [vmem:[%s99 + $0x600] sm:$0xff] %v484
          %v486 = vld [vmem:[%s98 + $0x608] sm:$0xff]
          %487 = vst [vmem:[%s99 + $0x608] sm:$0xff] %v486
          %v488 = vld [vmem:[%s98 + $0x610] sm:$0xff]
          %489 = vst [vmem:[%s99 + $0x610] sm:$0xff] %v488
          %v490 = vld [vmem:[%s98 + $0x618] sm:$0xff]
          %491 = vst [vmem:[%s99 + $0x618] sm:$0xff] %v490
          %v492 = vld [vmem:[%s98 + $0x620] sm:$0xff]
          %493 = vst [vmem:[%s99 + $0x620] sm:$0xff] %v492
          %v494 = vld [vmem:[%s98 + $0x628] sm:$0xff]
          %495 = vst [vmem:[%s99 + $0x628] sm:$0xff] %v494
          %v496 = vld [vmem:[%s98 + $0x630] sm:$0xff]
          %497 = vst [vmem:[%s99 + $0x630] sm:$0xff] %v496
          %v498 = vld [vmem:[%s98 + $0x638] sm:$0xff]
          %499 = vst [vmem:[%s99 + $0x638] sm:$0xff] %v498
          %v500 = vld [vmem:[%s98 + $0x640] sm:$0xff]
          %501 = vst [vmem:[%s99 + $0x640] sm:$0xff] %v500
          %v502 = vld [vmem:[%s98 + $0x648] sm:$0xff]
          %503 = vst [vmem:[%s99 + $0x648] sm:$0xff] %v502
          %v504 = vld [vmem:[%s98 + $0x650] sm:$0xff]
          %505 = vst [vmem:[%s99 + $0x650] sm:$0xff] %v504
          %v506 = vld [vmem:[%s98 + $0x658] sm:$0xff]
          %507 = vst [vmem:[%s99 + $0x658] sm:$0xff] %v506
          %v508 = vld [vmem:[%s98 + $0x660] sm:$0xff]
          %509 = vst [vmem:[%s99 + $0x660] sm:$0xff] %v508
          %v510 = vld [vmem:[%s98 + $0x668] sm:$0xff]
          %511 = vst [vmem:[%s99 + $0x668] sm:$0xff] %v510
          %v512 = vld [vmem:[%s98 + $0x670] sm:$0xff]
          %513 = vst [vmem:[%s99 + $0x670] sm:$0xff] %v512
          %v514 = vld [vmem:[%s98 + $0x678] sm:$0xff]
          %515 = vst [vmem:[%s99 + $0x678] sm:$0xff] %v514
          %v516 = vld [vmem:[%s98 + $0x680] sm:$0xff]
          %517 = vst [vmem:[%s99 + $0x680] sm:$0xff] %v516
          %v518 = vld [vmem:[%s98 + $0x688] sm:$0xff]
          %519 = vst [vmem:[%s99 + $0x688] sm:$0xff] %v518
          %v520 = vld [vmem:[%s98 + $0x690] sm:$0xff]
          %521 = vst [vmem:[%s99 + $0x690] sm:$0xff] %v520
          %v522 = vld [vmem:[%s98 + $0x698] sm:$0xff]
          %523 = vst [vmem:[%s99 + $0x698] sm:$0xff] %v522
          %v524 = vld [vmem:[%s98 + $0x6a0] sm:$0xff]
          %525 = vst [vmem:[%s99 + $0x6a0] sm:$0xff] %v524
          %v526 = vld [vmem:[%s98 + $0x6a8] sm:$0xff]
          %527 = vst [vmem:[%s99 + $0x6a8] sm:$0xff] %v526
          %v528 = vld [vmem:[%s98 + $0x6b0] sm:$0xff]
          %529 = vst [vmem:[%s99 + $0x6b0] sm:$0xff] %v528
          %v530 = vld [vmem:[%s98 + $0x6b8] sm:$0xff]
          %531 = vst [vmem:[%s99 + $0x6b8] sm:$0xff] %v530
          %v532 = vld [vmem:[%s98 + $0x6c0] sm:$0xff]
          %533 = vst [vmem:[%s99 + $0x6c0] sm:$0xff] %v532
          %v534 = vld [vmem:[%s98 + $0x6c8] sm:$0xff]
          %535 = vst [vmem:[%s99 + $0x6c8] sm:$0xff] %v534
          %v536 = vld [vmem:[%s98 + $0x6d0] sm:$0xff]
          %537 = vst [vmem:[%s99 + $0x6d0] sm:$0xff] %v536
          %v538 = vld [vmem:[%s98 + $0x6d8] sm:$0xff]
          %539 = vst [vmem:[%s99 + $0x6d8] sm:$0xff] %v538
          %v540 = vld [vmem:[%s98 + $0x6e0] sm:$0xff]
          %541 = vst [vmem:[%s99 + $0x6e0] sm:$0xff] %v540
          %v542 = vld [vmem:[%s98 + $0x6e8] sm:$0xff]
          %543 = vst [vmem:[%s99 + $0x6e8] sm:$0xff] %v542
          %v544 = vld [vmem:[%s98 + $0x6f0] sm:$0xff]
          %545 = vst [vmem:[%s99 + $0x6f0] sm:$0xff] %v544
          %v546 = vld [vmem:[%s98 + $0x6f8] sm:$0xff]
          %547 = vst [vmem:[%s99 + $0x6f8] sm:$0xff] %v546
          %v548 = vld [vmem:[%s98 + $0x700] sm:$0xff]
          %549 = vst [vmem:[%s99 + $0x700] sm:$0xff] %v548
          %v550 = vld [vmem:[%s98 + $0x708] sm:$0xff]
          %551 = vst [vmem:[%s99 + $0x708] sm:$0xff] %v550
          %v552 = vld [vmem:[%s98 + $0x710] sm:$0xff]
          %553 = vst [vmem:[%s99 + $0x710] sm:$0xff] %v552
          %v554 = vld [vmem:[%s98 + $0x718] sm:$0xff]
          %555 = vst [vmem:[%s99 + $0x718] sm:$0xff] %v554
          %v556 = vld [vmem:[%s98 + $0x720] sm:$0xff]
          %557 = vst [vmem:[%s99 + $0x720] sm:$0xff] %v556
          %v558 = vld [vmem:[%s98 + $0x728] sm:$0xff]
          %559 = vst [vmem:[%s99 + $0x728] sm:$0xff] %v558
          %v560 = vld [vmem:[%s98 + $0x730] sm:$0xff]
          %561 = vst [vmem:[%s99 + $0x730] sm:$0xff] %v560
          %v562 = vld [vmem:[%s98 + $0x738] sm:$0xff]
          %563 = vst [vmem:[%s99 + $0x738] sm:$0xff] %v562
          %v564 = vld [vmem:[%s98 + $0x740] sm:$0xff]
          %565 = vst [vmem:[%s99 + $0x740] sm:$0xff] %v564
          %v566 = vld [vmem:[%s98 + $0x748] sm:$0xff]
          %567 = vst [vmem:[%s99 + $0x748] sm:$0xff] %v566
          %v568 = vld [vmem:[%s98 + $0x750] sm:$0xff]
          %569 = vst [vmem:[%s99 + $0x750] sm:$0xff] %v568
          %v570 = vld [vmem:[%s98 + $0x758] sm:$0xff]
          %571 = vst [vmem:[%s99 + $0x758] sm:$0xff] %v570
          %v572 = vld [vmem:[%s98 + $0x760] sm:$0xff]
          %573 = vst [vmem:[%s99 + $0x760] sm:$0xff] %v572
          %v574 = vld [vmem:[%s98 + $0x768] sm:$0xff]
          %575 = vst [vmem:[%s99 + $0x768] sm:$0xff] %v574
          %v576 = vld [vmem:[%s98 + $0x770] sm:$0xff]
          %577 = vst [vmem:[%s99 + $0x770] sm:$0xff] %v576
          %v578 = vld [vmem:[%s98 + $0x778] sm:$0xff]
          %579 = vst [vmem:[%s99 + $0x778] sm:$0xff] %v578
          %v580 = vld [vmem:[%s98 + $0x780] sm:$0xff]
          %581 = vst [vmem:[%s99 + $0x780] sm:$0xff] %v580
          %v582 = vld [vmem:[%s98 + $0x788] sm:$0xff]
          %583 = vst [vmem:[%s99 + $0x788] sm:$0xff] %v582
          %v584 = vld [vmem:[%s98 + $0x790] sm:$0xff]
          %585 = vst [vmem:[%s99 + $0x790] sm:$0xff] %v584
          %v586 = vld [vmem:[%s98 + $0x798] sm:$0xff]
          %587 = vst [vmem:[%s99 + $0x798] sm:$0xff] %v586
          %v588 = vld [vmem:[%s98 + $0x7a0] sm:$0xff]
          %589 = vst [vmem:[%s99 + $0x7a0] sm:$0xff] %v588
          %v590 = vld [vmem:[%s98 + $0x7a8] sm:$0xff]
          %591 = vst [vmem:[%s99 + $0x7a8] sm:$0xff] %v590
          %v592 = vld [vmem:[%s98 + $0x7b0] sm:$0xff]
          %593 = vst [vmem:[%s99 + $0x7b0] sm:$0xff] %v592
          %v594 = vld [vmem:[%s98 + $0x7b8] sm:$0xff]
          %595 = vst [vmem:[%s99 + $0x7b8] sm:$0xff] %v594
          %v596 = vld [vmem:[%s98 + $0x7c0] sm:$0xff]
          %597 = vst [vmem:[%s99 + $0x7c0] sm:$0xff] %v596
          %v598 = vld [vmem:[%s98 + $0x7c8] sm:$0xff]
          %599 = vst [vmem:[%s99 + $0x7c8] sm:$0xff] %v598
          %v600 = vld [vmem:[%s98 + $0x7d0] sm:$0xff]
          %601 = vst [vmem:[%s99 + $0x7d0] sm:$0xff] %v600
          %v602 = vld [vmem:[%s98 + $0x7d8] sm:$0xff]
          %603 = vst [vmem:[%s99 + $0x7d8] sm:$0xff] %v602
          %v604 = vld [vmem:[%s98 + $0x7e0] sm:$0xff]
          %605 = vst [vmem:[%s99 + $0x7e0] sm:$0xff] %v604
          %v606 = vld [vmem:[%s98 + $0x7e8] sm:$0xff]
          %607 = vst [vmem:[%s99 + $0x7e8] sm:$0xff] %v606
          %v608 = vld [vmem:[%s98 + $0x7f0] sm:$0xff]
          %609 = vst [vmem:[%s99 + $0x7f0] sm:$0xff] %v608
          %v610 = vld [vmem:[%s98 + $0x7f8] sm:$0xff]
          %611 = vst [vmem:[%s99 + $0x7f8] sm:$0xff] %v610
        $region101: #{resnet_forward.1} parent=95 // loop_footer
          %s97 = sadd.s32 1, %s93
        $region102: #{resnet_forward.1} parent=95 // loop_footer_branch
          %92 = sbr.rel target = $region98
        $region103: #{resnet_forward.1} parent=95 // loop_exit
          _
      $region96: #{resnet_forward.1} parent=80 // pred_fallthru
        _
      %p612 = pneg %p88
      // Predicated region
      $region104: #{resnet_forward.1} parent=80 // pred_check
        _
      $region105: #{resnet_forward.1} parent=80 // pred_check_branch
        %614 = sbr.rel (%p88) target = $region107
      $region106: #{resnet_forward.1} parent=80 // pred_region
        %s615 = sand.u32 2048, 7
      $region107: #{resnet_forward.1} parent=80 // pred_fallthru
        _
    $region81: #{resnet_forward.1} parent=1 // pred_fallthru
      _
    // Predicated region
    $region82: #{resnet_forward.1} parent=1 // pred_check
      %p72 = pneg %p68
    $region83: #{resnet_forward.1} parent=1 // pred_check_branch
      %74 = sbr.rel (%p72) target = $region85
    $region84: #{resnet_forward.1} parent=1 // pred_region
      %s75 = sshll.u32 1, 2048
      %s76 = ssub.s32 %s75, 1
      loop: start=0, step=1, limit=1
      $region86: #{resnet_forward.1} parent=84 // loop_pre_header
        _
      $region87: #{resnet_forward.1} parent=84 // loop_header
        %s78 = sphi 0, %s82
        %p79 = scmp.ge.s32.totalorder %s78, 1
        %s83 = sphi %s16, %s16
        %s84 = sphi [#allocation2], [#allocation2]
      $region88: #{resnet_forward.1} parent=84 // loop_header_branch
        %81 = sbr.rel (%p79) target = $region92
      $region89: #{resnet_forward.1} parent=84 // loop_body
        %v85 = vld [vmem:[%s83] sm:%s76]
        %86 = vst [vmem:[%s84] sm:%s76] %v85
      $region90: #{resnet_forward.1} parent=84 // loop_footer
        %s82 = sadd.s32 1, %s78
      $region91: #{resnet_forward.1} parent=84 // loop_footer_branch
        %77 = sbr.rel target = $region87
      $region92: #{resnet_forward.1} parent=84 // loop_exit
        _
    $region85: #{resnet_forward.1} parent=1 // pred_fallthru
      _
    // Predicated region
    $region108: #{resnet_forward.1} parent=1 // pred_check
      _
    $region109: #{resnet_forward.1} parent=1 // pred_check_branch
      %618 = sbr.rel (0) target = $region111
    $region110: #{resnet_forward.1} parent=1 // pred_region
      %619 = vsyncadd [#allocation3], 32768
    $region111: #{resnet_forward.1} parent=1 // pred_fallthru
      _
    %v620 = vld [vmem:[%s0] sm:$0xff]
    %v621 = vld [vmem:[%s0 + $0x8] sm:$0xff]
    %v622 = vld [vmem:[%s0 + $0x10] sm:$0xff]
    %v623 = vld [vmem:[%s0 + $0x18] sm:$0xff]
    %v624 = vld [vmem:[%s0 + $0x20] sm:$0xff]
    %v625 = vld [vmem:[%s0 + $0x28] sm:$0xff]
    %v626 = vld [vmem:[%s0 + $0x30] sm:$0xff]
    %v627 = vld [vmem:[%s0 + $0x38] sm:$0xff]
    %v628 = vld [vmem:[%s0 + $0x40] sm:$0xff]
    %v629 = vld [vmem:[%s0 + $0x48] sm:$0xff]
    %v630 = vld [vmem:[%s0 + $0x50] sm:$0xff]
    %v631 = vld [vmem:[%s0 + $0x58] sm:$0xff]
    %v632 = vld [vmem:[%s0 + $0x60] sm:$0xff]
    %v633 = vld [vmem:[%s0 + $0x68] sm:$0xff]
    %v634 = vld [vmem:[%s0 + $0x70] sm:$0xff]
    %v635 = vld [vmem:[%s0 + $0x78] sm:$0xff]
    %v636 = vld [vmem:[%s0 + $0x80] sm:$0xff]
    %v637 = vld [vmem:[%s0 + $0x88] sm:$0xff]
    %v638 = vld [vmem:[%s3] sm:$0xff]
    %v639 = vld [vmem:[%s3 + $0x8] sm:$0xff]
    %640 = vrot.lane.b32.xlu0 %v638, 9
    %v641 = vpop.permute.xlu0 %640
    %642 = vrot.lane.b32.xlu0 %v639, 9
    %v643 = vpop.permute.xlu0 %642
    %644 = vrot.lane.b32.xlu0 %v638, 8
    %v645 = vpop.permute.xlu0 %644
    %646 = vrot.lane.b32.xlu0 %v639, 8
    %v647 = vpop.permute.xlu0 %646
    %648 = vrot.lane.b32.xlu0 %v638, 7
    %v649 = vpop.permute.xlu0 %648
    %650 = vrot.lane.b32.xlu0 %v639, 7
    %v651 = vpop.permute.xlu0 %650
    %652 = vrot.lane.b32.xlu0 %v638, 1
    %v653 = vpop.permute.xlu0 %652
    %654 = vrot.lane.b32.xlu0 %v639, 1
    %v655 = vpop.permute.xlu0 %654
    %656 = vrot.lane.b32.xlu0 %v638, 127
    %v657 = vpop.permute.xlu0 %656
    %658 = vrot.lane.b32.xlu0 %v639, 127
    %v659 = vpop.permute.xlu0 %658
    %660 = vrot.lane.b32.xlu0 %v638, 121
    %v661 = vpop.permute.xlu0 %660
    %662 = vrot.lane.b32.xlu0 %v639, 121
    %v663 = vpop.permute.xlu0 %662
    %664 = vrot.lane.b32.xlu0 %v638, 120
    %v665 = vpop.permute.xlu0 %664
    %666 = vrot.lane.b32.xlu0 %v639, 120
    %v667 = vpop.permute.xlu0 %666
    %668 = vrot.lane.b32.xlu0 %v638, 119
    %v669 = vpop.permute.xlu0 %668
    %670 = vrot.lane.b32.xlu0 %v639, 119
    %v671 = vpop.permute.xlu0 %670
    %v672 = vmul.f32 %v641, %v620
    %v673 = vmul.f32 %v643, %v621
    %v674 = vmul.f32 %v645, %v622
    %v675 = vmul.f32 %v647, %v623
    %v676 = vmul.f32 %v649, %v624
    %v677 = vmul.f32 %v651, %v625
    %v678 = vmul.f32 %v653, %v626
    %v679 = vmul.f32 %v655, %v627
    %v680 = vmul.f32 %v638, %v628
    %v681 = vmul.f32 %v639, %v629
    %v682 = vmul.f32 %v657, %v630
    %v683 = vmul.f32 %v659, %v631
    %v684 = vmul.f32 %v661, %v632
    %v685 = vmul.f32 %v663, %v633
    %v686 = vmul.f32 %v665, %v634
    %v687 = vmul.f32 %v667, %v635
    %v688 = vmul.f32 %v669, %v636
    %v689 = vmul.f32 %v671, %v637
    %v690 = vpack.c.bf16 %v673, %v672
    %v691 = vpack.c.bf16 %v675, %v674
    %v692 = vpack.c.bf16 %v677, %v676
    %v693 = vpack.c.bf16 %v679, %v678
    %v694 = vpack.c.bf16 %v681, %v680
    %v695 = vpack.c.bf16 %v683, %v682
    %v696 = vpack.c.bf16 %v685, %v684
    %v697 = vpack.c.bf16 %v687, %v686
    %v698 = vpack.c.bf16 %v689, %v688
    %v699 = vld [vmem:[%s4] sm:$0xff]
    %v700 = vld [vmem:[%s4 + $0x8] sm:$0xff]
    %v701 = vld [vmem:[%s5] sm:$0xff]
    %v702 = vld [vmem:[%s5 + $0x8] sm:$0xff]
    %704 = vset.pattern.permute.xlu0 0
    %705 = vperm.xlu0 %704, %v701
    %v706 = vpop.permute.xlu0 %705
    %709 = vset.pattern.permute.xlu0 0
    %710 = vperm.xlu0 %709, %v702
    %v711 = vpop.permute.xlu0 %710
    %v715 = vunpack.c.l.b16 %v699
    %v716 = vunpack.c.h.b16 %v699
    %v717 = vunpack.c.l.b16 %v700
    %v718 = vunpack.c.h.b16 %v700
    %v719 = vpack.c.b16 %v717, %v715
    %v720 = vpack.c.b16 %v718, %v716
    %vm722 = vcmask 130048
    %v724 = vsel %vm722, %v720, 0
    %726 = vmatprep.subr.bf16.mxu0 0
    %727 = vmatpush1.bf16.msra.mxu0 %v697
    %728 = vmatprep.subr.bf16.mxu0 0
    %729 = vmatpush1.bf16.msra.mxu0 %v696
    %730 = vmatprep.subr.bf16.mxu0 0
    %731 = vmatpush1.bf16.msra.mxu0 %v695
    %732 = vmatprep.subr.bf16.mxu0 0
    %733 = vmatpush1.bf16.msra.mxu0 %v694
    %734 = vmatprep.subr.bf16.mxu0 0
    %735 = vmatpush1.bf16.msra.mxu0 %v693
    %736 = vmatprep.subr.bf16.mxu0 0
    %737 = vmatpush1.bf16.msra.mxu0 %v692
    %738 = vmatprep.subr.bf16.mxu0 0
    %739 = vmatpush1.bf16.msra.mxu0 %v691
    %740 = vmatprep.subr.bf16.mxu0 0
    %741 = vmatpush1.bf16.msra.mxu0 %v690
    %742 = vmatprep.subr.bf16.mxu0 0
    %743 = vmatpush2.bf16.msra.mxu0 0
    %744 = vmatprep.subr.bf16.mxu0 0
    %745 = vmatpush2.bf16.msra.mxu0 0
    %746 = vmatprep.subr.bf16.mxu0 0
    %747 = vmatpush2.bf16.msra.mxu0 0
    %748 = vmatprep.subr.bf16.mxu0 0
    %749 = vmatpush2.bf16.msra.mxu0 0
    %750 = vmatprep.subr.bf16.mxu0 0
    %751 = vmatpush2.bf16.msra.mxu0 0
    %752 = vmatprep.subr.bf16.mxu0 0
    %753 = vmatpush2.bf16.msra.mxu0 0
    %754 = vmatprep.subr.bf16.mxu0 0
    %755 = vmatpush2.bf16.msra.mxu0 0
    %756 = vmatprep.subr.bf16.mxu0 0
    %757 = vmatpush2.bf16.msra.mxu0 %v698
    %758 = vmatprep.mubr.bf16.mxu0 %v724
    %759 = vmatmul.mubr.bf16.gmra.mxu0 %v719
    %v760 = vpop.f32.mrf.mxu0
    %v761 = vadd.f32 %v706, %v760
    %v762 = vpop.f32.mrf.mxu0
    %v763 = vpop.f32.mrf.mxu0
    %v764 = vadd.f32 %v711, %v763
    %v765 = vpop.f32.mrf.mxu0
    %766 = vdwg.mxu0
    %v767 = vmax.f32 %v761, 0.0
    %v768 = vmax.f32 %v764, 0.0
    %769 = vrot.lane.b32.xlu0 %v767, 9
    %v770 = vpop.permute.xlu0 %769
    %771 = vrot.lane.b32.xlu0 %v768, 9
    %v772 = vpop.permute.xlu0 %771
    %773 = vrot.lane.b32.xlu0 %v767, 8
    %v774 = vpop.permute.xlu0 %773
    %775 = vrot.lane.b32.xlu0 %v768, 8
    %v776 = vpop.permute.xlu0 %775
    %777 = vrot.lane.b32.xlu0 %v767, 7
    %v778 = vpop.permute.xlu0 %777
    %779 = vrot.lane.b32.xlu0 %v768, 7
    %v780 = vpop.permute.xlu0 %779
    %781 = vrot.lane.b32.xlu0 %v767, 1
    %v782 = vpop.permute.xlu0 %781
    %783 = vrot.lane.b32.xlu0 %v768, 1
    %v784 = vpop.permute.xlu0 %783
    %785 = vrot.lane.b32.xlu0 %v767, 127
    %v786 = vpop.permute.xlu0 %785
    %787 = vrot.lane.b32.xlu0 %v768, 127
    %v788 = vpop.permute.xlu0 %787
    %789 = vrot.lane.b32.xlu0 %v767, 121
    %v790 = vpop.permute.xlu0 %789
    %791 = vrot.lane.b32.xlu0 %v768, 121
    %v792 = vpop.permute.xlu0 %791
    %793 = vrot.lane.b32.xlu0 %v767, 120
    %v794 = vpop.permute.xlu0 %793
    %795 = vrot.lane.b32.xlu0 %v768, 120
    %v796 = vpop.permute.xlu0 %795
    %797 = vrot.lane.b32.xlu0 %v767, 119
    %v798 = vpop.permute.xlu0 %797
    %799 = vrot.lane.b32.xlu0 %v768, 119
    %v800 = vpop.permute.xlu0 %799
    %v801 = vmul.f32 %v770, %v620
    %v802 = vmul.f32 %v772, %v621
    %v803 = vmul.f32 %v774, %v622
    %v804 = vmul.f32 %v776, %v623
    %v805 = vmul.f32 %v778, %v624
    %v806 = vmul.f32 %v780, %v625
    %v807 = vmul.f32 %v782, %v626
    %v808 = vmul.f32 %v784, %v627
    %v809 = vmul.f32 %v767, %v628
    %v810 = vmul.f32 %v768, %v629
    %v811 = vmul.f32 %v786, %v630
    %v812 = vmul.f32 %v788, %v631
    %v813 = vmul.f32 %v790, %v632
    %v814 = vmul.f32 %v792, %v633
    %v815 = vmul.f32 %v794, %v634
    %v816 = vmul.f32 %v796, %v635
    %v817 = vmul.f32 %v798, %v636
    %v818 = vmul.f32 %v800, %v637
    %v819 = vpack.c.bf16 %v802, %v801
    %v820 = vpack.c.bf16 %v804, %v803
    %v821 = vpack.c.bf16 %v806, %v805
    %v822 = vpack.c.bf16 %v808, %v807
    %v823 = vpack.c.bf16 %v810, %v809
    %v824 = vpack.c.bf16 %v812, %v811
    %v825 = vpack.c.bf16 %v814, %v813
    %v826 = vpack.c.bf16 %v816, %v815
    %v827 = vpack.c.bf16 %v818, %v817
    %v828 = vld [vmem:[%s6] sm:$0xff]
    %v829 = vld [vmem:[%s6 + $0x8] sm:$0xff]
    %v830 = vld [vmem:[%s7] sm:$0xff]
    %v831 = vld [vmem:[%s7 + $0x8] sm:$0xff]
    %833 = vset.pattern.permute.xlu0 0
    %834 = vperm.xlu0 %833, %v830
    %v835 = vpop.permute.xlu0 %834
    %838 = vset.pattern.permute.xlu0 0
    %839 = vperm.xlu0 %838, %v831
    %v840 = vpop.permute.xlu0 %839
    %v844 = vunpack.c.l.b16 %v828
    %v845 = vunpack.c.h.b16 %v828
    %v846 = vunpack.c.l.b16 %v829
    %v847 = vunpack.c.h.b16 %v829
    %v848 = vpack.c.b16 %v846, %v844
    %v849 = vpack.c.b16 %v847, %v845
    %v852 = vsel %vm722, %v849, 0
    %854 = vmatprep.subr.bf16.mxu0 0
    %855 = vmatpush1.bf16.msra.mxu0 %v826
    %856 = vmatprep.subr.bf16.mxu0 0
    %857 = vmatpush1.bf16.msra.mxu0 %v825
    %858 = vmatprep.subr.bf16.mxu0 0
    %859 = vmatpush1.bf16.msra.mxu0 %v824
    %860 = vmatprep.subr.bf16.mxu0 0
    %861 = vmatpush1.bf16.msra.mxu0 %v823
    %862 = vmatprep.subr.bf16.mxu0 0
    %863 = vmatpush1.bf16.msra.mxu0 %v822
    %864 = vmatprep.subr.bf16.mxu0 0
    %865 = vmatpush1.bf16.msra.mxu0 %v821
    %866 = vmatprep.subr.bf16.mxu0 0
    %867 = vmatpush1.bf16.msra.mxu0 %v820
    %868 = vmatprep.subr.bf16.mxu0 0
    %869 = vmatpush1.bf16.msra.mxu0 %v819
    %870 = vmatprep.subr.bf16.mxu0 0
    %871 = vmatpush2.bf16.msra.mxu0 0
    %872 = vmatprep.subr.bf16.mxu0 0
    %873 = vmatpush2.bf16.msra.mxu0 0
    %874 = vmatprep.subr.bf16.mxu0 0
    %875 = vmatpush2.bf16.msra.mxu0 0
    %876 = vmatprep.subr.bf16.mxu0 0
    %877 = vmatpush2.bf16.msra.mxu0 0
    %878 = vmatprep.subr.bf16.mxu0 0
    %879 = vmatpush2.bf16.msra.mxu0 0
    %880 = vmatprep.subr.bf16.mxu0 0
    %881 = vmatpush2.bf16.msra.mxu0 0
    %882 = vmatprep.subr.bf16.mxu0 0
    %883 = vmatpush2.bf16.msra.mxu0 0
    %884 = vmatprep.subr.bf16.mxu0 0
    %885 = vmatpush2.bf16.msra.mxu0 %v827
    %886 = vmatprep.mubr.bf16.mxu0 %v852
    %887 = vmatmul.mubr.bf16.gmra.mxu0 %v848
    %v888 = vpop.f32.mrf.mxu0
    %v889 = vadd.f32 %v835, %v888
    %v890 = vpop.f32.mrf.mxu0
    %v891 = vpop.f32.mrf.mxu0
    %v892 = vadd.f32 %v840, %v891
    %v893 = vpop.f32.mrf.mxu0
    %894 = vdwg.mxu0
    %v895 = vmax.f32 %v889, 0.0
    %v896 = vmax.f32 %v892, 0.0
    %897 = vrot.lane.b32.xlu0 %v895, 9
    %v898 = vpop.permute.xlu0 %897
    %899 = vrot.lane.b32.xlu0 %v896, 9
    %v900 = vpop.permute.xlu0 %899
    %901 = vrot.lane.b32.xlu0 %v895, 8
    %v902 = vpop.permute.xlu0 %901
    %903 = vrot.lane.b32.xlu0 %v896, 8
    %v904 = vpop.permute.xlu0 %903
    %905 = vrot.lane.b32.xlu0 %v895, 7
    %v906 = vpop.permute.xlu0 %905
    %907 = vrot.lane.b32.xlu0 %v896, 7
    %v908 = vpop.permute.xlu0 %907
    %909 = vrot.lane.b32.xlu0 %v895, 1
    %v910 = vpop.permute.xlu0 %909
    %911 = vrot.lane.b32.xlu0 %v896, 1
    %v912 = vpop.permute.xlu0 %911
    %913 = vrot.lane.b32.xlu0 %v895, 127
    %v914 = vpop.permute.xlu0 %913
    %915 = vrot.lane.b32.xlu0 %v896, 127
    %v916 = vpop.permute.xlu0 %915
    %917 = vrot.lane.b32.xlu0 %v895, 121
    %v918 = vpop.permute.xlu0 %917
    %919 = vrot.lane.b32.xlu0 %v896, 121
    %v920 = vpop.permute.xlu0 %919
    %921 = vrot.lane.b32.xlu0 %v895, 120
    %v922 = vpop.permute.xlu0 %921
    %923 = vrot.lane.b32.xlu0 %v896, 120
    %v924 = vpop.permute.xlu0 %923
    %925 = vrot.lane.b32.xlu0 %v895, 119
    %v926 = vpop.permute.xlu0 %925
    %927 = vrot.lane.b32.xlu0 %v896, 119
    %v928 = vpop.permute.xlu0 %927
    %v929 = vmul.f32 %v898, %v620
    %v930 = vmul.f32 %v900, %v621
    %v931 = vmul.f32 %v902, %v622
    %v932 = vmul.f32 %v904, %v623
    %v933 = vmul.f32 %v906, %v624
    %v934 = vmul.f32 %v908, %v625
    %v935 = vmul.f32 %v910, %v626
    %v936 = vmul.f32 %v912, %v627
    %v937 = vmul.f32 %v895, %v628
    %v938 = vmul.f32 %v896, %v629
    %v939 = vmul.f32 %v914, %v630
    %v940 = vmul.f32 %v916, %v631
    %v941 = vmul.f32 %v918, %v632
    %v942 = vmul.f32 %v920, %v633
    %v943 = vmul.f32 %v922, %v634
    %v944 = vmul.f32 %v924, %v635
    %v945 = vmul.f32 %v926, %v636
    %v946 = vmul.f32 %v928, %v637
    %v947 = vpack.c.bf16 %v930, %v929
    %v948 = vpack.c.bf16 %v932, %v931
    %v949 = vpack.c.bf16 %v934, %v933
    %v950 = vpack.c.bf16 %v936, %v935
    %v951 = vpack.c.bf16 %v938, %v937
    %v952 = vpack.c.bf16 %v940, %v939
    %v953 = vpack.c.bf16 %v942, %v941
    %v954 = vpack.c.bf16 %v944, %v943
    %v955 = vpack.c.bf16 %v946, %v945
    %v956 = vld [vmem:[%s8] sm:$0xff]
    %v957 = vld [vmem:[%s8 + $0x8] sm:$0xff]
    %v958 = vld [vmem:[%s9] sm:$0xff]
    %v959 = vld [vmem:[%s9 + $0x8] sm:$0xff]
    %961 = vset.pattern.permute.xlu0 0
    %962 = vperm.xlu0 %961, %v958
    %v963 = vpop.permute.xlu0 %962
    %966 = vset.pattern.permute.xlu0 0
    %967 = vperm.xlu0 %966, %v959
    %v968 = vpop.permute.xlu0 %967
    %v972 = vunpack.c.l.b16 %v956
    %v973 = vunpack.c.h.b16 %v956
    %v974 = vunpack.c.l.b16 %v957
    %v975 = vunpack.c.h.b16 %v957
    %v976 = vpack.c.b16 %v974, %v972
    %v977 = vpack.c.b16 %v975, %v973
    %v980 = vsel %vm722, %v977, 0
    %982 = vmatprep.subr.bf16.mxu0 0
    %983 = vmatpush1.bf16.msra.mxu0 %v954
    %984 = vmatprep.subr.bf16.mxu0 0
    %985 = vmatpush1.bf16.msra.mxu0 %v953
    %986 = vmatprep.subr.bf16.mxu0 0
    %987 = vmatpush1.bf16.msra.mxu0 %v952
    %988 = vmatprep.subr.bf16.mxu0 0
    %989 = vmatpush1.bf16.msra.mxu0 %v951
    %990 = vmatprep.subr.bf16.mxu0 0
    %991 = vmatpush1.bf16.msra.mxu0 %v950
    %992 = vmatprep.subr.bf16.mxu0 0
    %993 = vmatpush1.bf16.msra.mxu0 %v949
    %994 = vmatprep.subr.bf16.mxu0 0
    %995 = vmatpush1.bf16.msra.mxu0 %v948
    %996 = vmatprep.subr.bf16.mxu0 0
    %997 = vmatpush1.bf16.msra.mxu0 %v947
    %998 = vmatprep.subr.bf16.mxu0 0
    %999 = vmatpush2.bf16.msra.mxu0 0
    %1000 = vmatprep.subr.bf16.mxu0 0
    %1001 = vmatpush2.bf16.msra.mxu0 0
    %1002 = vmatprep.subr.bf16.mxu0 0
    %1003 = vmatpush2.bf16.msra.mxu0 0
    %1004 = vmatprep.subr.bf16.mxu0 0
    %1005 = vmatpush2.bf16.msra.mxu0 0
    %1006 = vmatprep.subr.bf16.mxu0 0
    %1007 = vmatpush2.bf16.msra.mxu0 0
    %1008 = vmatprep.subr.bf16.mxu0 0
    %1009 = vmatpush2.bf16.msra.mxu0 0
    %1010 = vmatprep.subr.bf16.mxu0 0
    %1011 = vmatpush2.bf16.msra.mxu0 0
    %1012 = vmatprep.subr.bf16.mxu0 0
    %1013 = vmatpush2.bf16.msra.mxu0 %v955
    %1014 = vmatprep.mubr.bf16.mxu0 %v980
    %1015 = vmatmul.mubr.bf16.gmra.mxu0 %v976
    %v1016 = vpop.f32.mrf.mxu0
    %v1017 = vadd.f32 %v963, %v1016
    %v1018 = vpop.f32.mrf.mxu0
    %v1019 = vpop.f32.mrf.mxu0
    %v1020 = vadd.f32 %v968, %v1019
    %v1021 = vpop.f32.mrf.mxu0
    %1022 = vdwg.mxu0
    %v1023 = vadd.f32 %v1017, %v767
    %v1024 = vadd.f32 %v1020, %v768
    %v1025 = vmax.f32 %v1023, 0.0
    %v1026 = vmax.f32 %v1024, 0.0
    %1027 = vrot.lane.b32.xlu0 %v1025, 9
    %v1028 = vpop.permute.xlu0 %1027
    %1029 = vrot.lane.b32.xlu0 %v1026, 9
    %v1030 = vpop.permute.xlu0 %1029
    %1031 = vrot.lane.b32.xlu0 %v1025, 8
    %v1032 = vpop.permute.xlu0 %1031
    %1033 = vrot.lane.b32.xlu0 %v1026, 8
    %v1034 = vpop.permute.xlu0 %1033
    %1035 = vrot.lane.b32.xlu0 %v1025, 7
    %v1036 = vpop.permute.xlu0 %1035
    %1037 = vrot.lane.b32.xlu0 %v1026, 7
    %v1038 = vpop.permute.xlu0 %1037
    %1039 = vrot.lane.b32.xlu0 %v1025, 1
    %v1040 = vpop.permute.xlu0 %1039
    %1041 = vrot.lane.b32.xlu0 %v1026, 1
    %v1042 = vpop.permute.xlu0 %1041
    %1043 = vrot.lane.b32.xlu0 %v1025, 127
    %v1044 = vpop.permute.xlu0 %1043
    %1045 = vrot.lane.b32.xlu0 %v1026, 127
    %v1046 = vpop.permute.xlu0 %1045
    %1047 = vrot.lane.b32.xlu0 %v1025, 121
    %v1048 = vpop.permute.xlu0 %1047
    %1049 = vrot.lane.b32.xlu0 %v1026, 121
    %v1050 = vpop.permute.xlu0 %1049
    %1051 = vrot.lane.b32.xlu0 %v1025, 120
    %v1052 = vpop.permute.xlu0 %1051
    %1053 = vrot.lane.b32.xlu0 %v1026, 120
    %v1054 = vpop.permute.xlu0 %1053
    %1055 = vrot.lane.b32.xlu0 %v1025, 119
    %v1056 = vpop.permute.xlu0 %1055
    %1057 = vrot.lane.b32.xlu0 %v1026, 119
    %v1058 = vpop.permute.xlu0 %1057
    %v1059 = vmul.f32 %v1028, %v620
    %v1060 = vmul.f32 %v1030, %v621
    %v1061 = vmul.f32 %v1032, %v622
    %v1062 = vmul.f32 %v1034, %v623
    %v1063 = vmul.f32 %v1036, %v624
    %v1064 = vmul.f32 %v1038, %v625
    %v1065 = vmul.f32 %v1040, %v626
    %v1066 = vmul.f32 %v1042, %v627
    %v1067 = vmul.f32 %v1025, %v628
    %v1068 = vmul.f32 %v1026, %v629
    %v1069 = vmul.f32 %v1044, %v630
    %v1070 = vmul.f32 %v1046, %v631
    %v1071 = vmul.f32 %v1048, %v632
    %v1072 = vmul.f32 %v1050, %v633
    %v1073 = vmul.f32 %v1052, %v634
    %v1074 = vmul.f32 %v1054, %v635
    %v1075 = vmul.f32 %v1056, %v636
    %v1076 = vmul.f32 %v1058, %v637
    %v1077 = vpack.c.bf16 %v1060, %v1059
    %v1078 = vpack.c.bf16 %v1062, %v1061
    %v1079 = vpack.c.bf16 %v1064, %v1063
    %v1080 = vpack.c.bf16 %v1066, %v1065
    %v1081 = vpack.c.bf16 %v1068, %v1067
    %v1082 = vpack.c.bf16 %v1070, %v1069
    %v1083 = vpack.c.bf16 %v1072, %v1071
    %v1084 = vpack.c.bf16 %v1074, %v1073
    %v1085 = vpack.c.bf16 %v1076, %v1075
    %v1086 = vld [vmem:[%s10] sm:$0xff]
    %v1087 = vld [vmem:[%s10 + $0x8] sm:$0xff]
    %v1088 = vld [vmem:[%s11] sm:$0xff]
    %v1089 = vld [vmem:[%s11 + $0x8] sm:$0xff]
    %1091 = vset.pattern.permute.xlu0 0
    %1092 = vperm.xlu0 %1091, %v1088
    %v1093 = vpop.permute.xlu0 %1092
    %1096 = vset.pattern.permute.xlu0 0
    %1097 = vperm.xlu0 %1096, %v1089
    %v1098 = vpop.permute.xlu0 %1097
    %v1102 = vunpack.c.l.b16 %v1086
    %v1103 = vunpack.c.h.b16 %v1086
    %v1104 = vunpack.c.l.b16 %v1087
    %v1105 = vunpack.c.h.b16 %v1087
    %v1106 = vpack.c.b16 %v1104, %v1102
    %v1107 = vpack.c.b16 %v1105, %v1103
    %v1110 = vsel %vm722, %v1107, 0
    %1112 = vmatprep.subr.bf16.mxu0 0
    %1113 = vmatpush1.bf16.msra.mxu0 %v1084
    %1114 = vmatprep.subr.bf16.mxu0 0
    %1115 = vmatpush1.bf16.msra.mxu0 %v1083
    %1116 = vmatprep.subr.bf16.mxu0 0
    %1117 = vmatpush1.bf16.msra.mxu0 %v1082
    %1118 = vmatprep.subr.bf16.mxu0 0
    %1119 = vmatpush1.bf16.msra.mxu0 %v1081
    %1120 = vmatprep.subr.bf16.mxu0 0
    %1121 = vmatpush1.bf16.msra.mxu0 %v1080
    %1122 = vmatprep.subr.bf16.mxu0 0
    %1123 = vmatpush1.bf16.msra.mxu0 %v1079
    %1124 = vmatprep.subr.bf16.mxu0 0
    %1125 = vmatpush1.bf16.msra.mxu0 %v1078
    %1126 = vmatprep.subr.bf16.mxu0 0
    %1127 = vmatpush1.bf16.msra.mxu0 %v1077
    %1128 = vmatprep.subr.bf16.mxu0 0
    %1129 = vmatpush2.bf16.msra.mxu0 0
    %1130 = vmatprep.subr.bf16.mxu0 0
    %1131 = vmatpush2.bf16.msra.mxu0 0
    %1132 = vmatprep.subr.bf16.mxu0 0
    %1133 = vmatpush2.bf16.msra.mxu0 0
    %1134 = vmatprep.subr.bf16.mxu0 0
    %1135 = vmatpush2.bf16.msra.mxu0 0
    %1136 = vmatprep.subr.bf16.mxu0 0
    %1137 = vmatpush2.bf16.msra.mxu0 0
    %1138 = vmatprep.subr.bf16.mxu0 0
    %1139 = vmatpush2.bf16.msra.mxu0 0
    %1140 = vmatprep.subr.bf16.mxu0 0
    %1141 = vmatpush2.bf16.msra.mxu0 0
    %1142 = vmatprep.subr.bf16.mxu0 0
    %1143 = vmatpush2.bf16.msra.mxu0 %v1085
    %1144 = vmatprep.mubr.bf16.mxu0 %v1110
    %1145 = vmatmul.mubr.bf16.gmra.mxu0 %v1106
    %v1146 = vpop.f32.mrf.mxu0
    %v1147 = vadd.f32 %v1093, %v1146
    %v1148 = vpop.f32.mrf.mxu0
    %v1149 = vpop.f32.mrf.mxu0
    %v1150 = vadd.f32 %v1098, %v1149
    %v1151 = vpop.f32.mrf.mxu0
    %1152 = vdwg.mxu0
    %v1153 = vmax.f32 %v1147, 0.0
    %v1154 = vmax.f32 %v1150, 0.0
    %1155 = vrot.lane.b32.xlu0 %v1153, 9
    %v1156 = vpop.permute.xlu0 %1155
    %1157 = vrot.lane.b32.xlu0 %v1154, 9
    %v1158 = vpop.permute.xlu0 %1157
    %1159 = vrot.lane.b32.xlu0 %v1153, 8
    %v1160 = vpop.permute.xlu0 %1159
    %1161 = vrot.lane.b32.xlu0 %v1154, 8
    %v1162 = vpop.permute.xlu0 %1161
    %1163 = vrot.lane.b32.xlu0 %v1153, 7
    %v1164 = vpop.permute.xlu0 %1163
    %1165 = vrot.lane.b32.xlu0 %v1154, 7
    %v1166 = vpop.permute.xlu0 %1165
    %1167 = vrot.lane.b32.xlu0 %v1153, 1
    %v1168 = vpop.permute.xlu0 %1167
    %1169 = vrot.lane.b32.xlu0 %v1154, 1
    %v1170 = vpop.permute.xlu0 %1169
    %1171 = vrot.lane.b32.xlu0 %v1153, 127
    %v1172 = vpop.permute.xlu0 %1171
    %1173 = vrot.lane.b32.xlu0 %v1154, 127
    %v1174 = vpop.permute.xlu0 %1173
    %1175 = vrot.lane.b32.xlu0 %v1153, 121
    %v1176 = vpop.permute.xlu0 %1175
    %1177 = vrot.lane.b32.xlu0 %v1154, 121
    %v1178 = vpop.permute.xlu0 %1177
    %1179 = vrot.lane.b32.xlu0 %v1153, 120
    %v1180 = vpop.permute.xlu0 %1179
    %1181 = vrot.lane.b32.xlu0 %v1154, 120
    %v1182 = vpop.permute.xlu0 %1181
    %1183 = vrot.lane.b32.xlu0 %v1153, 119
    %v1184 = vpop.permute.xlu0 %1183
    %1185 = vrot.lane.b32.xlu0 %v1154, 119
    %v1186 = vpop.permute.xlu0 %1185
    %v1187 = vmul.f32 %v1156, %v620
    %v1188 = vmul.f32 %v1158, %v621
    %v1189 = vmul.f32 %v1160, %v622
    %v1190 = vmul.f32 %v1162, %v623
    %v1191 = vmul.f32 %v1164, %v624
    %v1192 = vmul.f32 %v1166, %v625
    %v1193 = vmul.f32 %v1168, %v626
    %v1194 = vmul.f32 %v1170, %v627
    %v1195 = vmul.f32 %v1153, %v628
    %v1196 = vmul.f32 %v1154, %v629
    %v1197 = vmul.f32 %v1172, %v630
    %v1198 = vmul.f32 %v1174, %v631
    %v1199 = vmul.f32 %v1176, %v632
    %v1200 = vmul.f32 %v1178, %v633
    %v1201 = vmul.f32 %v1180, %v634
    %v1202 = vmul.f32 %v1182, %v635
    %v1203 = vmul.f32 %v1184, %v636
    %v1204 = vmul.f32 %v1186, %v637
    %v1205 = vpack.c.bf16 %v1188, %v1187
    %v1206 = vpack.c.bf16 %v1190, %v1189
    %v1207 = vpack.c.bf16 %v1192, %v1191
    %v1208 = vpack.c.bf16 %v1194, %v1193
    %v1209 = vpack.c.bf16 %v1196, %v1195
    %v1210 = vpack.c.bf16 %v1198, %v1197
    %v1211 = vpack.c.bf16 %v1200, %v1199
    %v1212 = vpack.c.bf16 %v1202, %v1201
    %v1213 = vpack.c.bf16 %v1204, %v1203
    %v1214 = vld [vmem:[%s12] sm:$0xff]
    %v1215 = vld [vmem:[%s12 + $0x8] sm:$0xff]
    %v1216 = vld [vmem:[%s13] sm:$0xff]
    %v1217 = vld [vmem:[%s13 + $0x8] sm:$0xff]
    %1219 = vset.pattern.permute.xlu0 0
    %1220 = vperm.xlu0 %1219, %v1216
    %v1221 = vpop.permute.xlu0 %1220
    %1224 = vset.pattern.permute.xlu0 0
    %1225 = vperm.xlu0 %1224, %v1217
    %v1226 = vpop.permute.xlu0 %1225
    %v1230 = vunpack.c.l.b16 %v1214
    %v1231 = vunpack.c.h.b16 %v1214
    %v1232 = vunpack.c.l.b16 %v1215
    %v1233 = vunpack.c.h.b16 %v1215
    %v1234 = vpack.c.b16 %v1232, %v1230
    %v1235 = vpack.c.b16 %v1233, %v1231
    %v1238 = vsel %vm722, %v1235, 0
    %1240 = vmatprep.subr.bf16.mxu0 0
    %1241 = vmatpush1.bf16.msra.mxu0 %v1212
    %1242 = vmatprep.subr.bf16.mxu0 0
    %1243 = vmatpush1.bf16.msra.mxu0 %v1211
    %1244 = vmatprep.subr.bf16.mxu0 0
    %1245 = vmatpush1.bf16.msra.mxu0 %v1210
    %1246 = vmatprep.subr.bf16.mxu0 0
    %1247 = vmatpush1.bf16.msra.mxu0 %v1209
    %1248 = vmatprep.subr.bf16.mxu0 0
    %1249 = vmatpush1.bf16.msra.mxu0 %v1208
    %1250 = vmatprep.subr.bf16.mxu0 0
    %1251 = vmatpush1.bf16.msra.mxu0 %v1207
    %1252 = vmatprep.subr.bf16.mxu0 0
    %1253 = vmatpush1.bf16.msra.mxu0 %v1206
    %1254 = vmatprep.subr.bf16.mxu0 0
    %1255 = vmatpush1.bf16.msra.mxu0 %v1205
    %1256 = vmatprep.subr.bf16.mxu0 0
    %1257 = vmatpush2.bf16.msra.mxu0 0
    %1258 = vmatprep.subr.bf16.mxu0 0
    %1259 = vmatpush2.bf16.msra.mxu0 0
    %1260 = vmatprep.subr.bf16.mxu0 0
    %1261 = vmatpush2.bf16.msra.mxu0 0
    %1262 = vmatprep.subr.bf16.mxu0 0
    %1263 = vmatpush2.bf16.msra.mxu0 0
    %1264 = vmatprep.subr.bf16.mxu0 0
    %1265 = vmatpush2.bf16.msra.mxu0 0
    %1266 = vmatprep.subr.bf16.mxu0 0
    %1267 = vmatpush2.bf16.msra.mxu0 0
    %1268 = vmatprep.subr.bf16.mxu0 0
    %1269 = vmatpush2.bf16.msra.mxu0 0
    %1270 = vmatprep.subr.bf16.mxu0 0
    %1271 = vmatpush2.bf16.msra.mxu0 %v1213
    %1272 = vmatprep.mubr.bf16.mxu0 %v1238
    %1273 = vmatmul.mubr.bf16.gmra.mxu0 %v1234
    %v1274 = vpop.f32.mrf.mxu0
    %v1275 = vadd.f32 %v1221, %v1274
    %v1276 = vpop.f32.mrf.mxu0
    %v1277 = vpop.f32.mrf.mxu0
    %v1278 = vadd.f32 %v1226, %v1277
    %v1279 = vpop.f32.mrf.mxu0
    %1280 = vdwg.mxu0
    %v1281 = vadd.f32 %v1275, %v1025
    %v1282 = vadd.f32 %v1278, %v1026
    %v1283 = vmax.f32 %v1281, 0.0
    %v1284 = vmax.f32 %v1282, 0.0
    %1285 = vrot.lane.b32.xlu0 %v1283, 9
    %v1286 = vpop.permute.xlu0 %1285
    %1287 = vrot.lane.b32.xlu0 %v1284, 9
    %v1288 = vpop.permute.xlu0 %1287
    %1289 = vrot.lane.b32.xlu0 %v1283, 8
    %v1290 = vpop.permute.xlu0 %1289
    %1291 = vrot.lane.b32.xlu0 %v1284, 8
    %v1292 = vpop.permute.xlu0 %1291
    %1293 = vrot.lane.b32.xlu0 %v1283, 7
    %v1294 = vpop.permute.xlu0 %1293
    %1295 = vrot.lane.b32.xlu0 %v1284, 7
    %v1296 = vpop.permute.xlu0 %1295
    %1297 = vrot.lane.b32.xlu0 %v1283, 1
    %v1298 = vpop.permute.xlu0 %1297
    %1299 = vrot.lane.b32.xlu0 %v1284, 1
    %v1300 = vpop.permute.xlu0 %1299
    %1301 = vrot.lane.b32.xlu0 %v1283, 127
    %v1302 = vpop.permute.xlu0 %1301
    %1303 = vrot.lane.b32.xlu0 %v1284, 127
    %v1304 = vpop.permute.xlu0 %1303
    %1305 = vrot.lane.b32.xlu0 %v1283, 121
    %v1306 = vpop.permute.xlu0 %1305
    %1307 = vrot.lane.b32.xlu0 %v1284, 121
    %v1308 = vpop.permute.xlu0 %1307
    %1309 = vrot.lane.b32.xlu0 %v1283, 120
    %v1310 = vpop.permute.xlu0 %1309
    %1311 = vrot.lane.b32.xlu0 %v1284, 120
    %v1312 = vpop.permute.xlu0 %1311
    %1313 = vrot.lane.b32.xlu0 %v1283, 119
    %v1314 = vpop.permute.xlu0 %1313
    %1315 = vrot.lane.b32.xlu0 %v1284, 119
    %v1316 = vpop.permute.xlu0 %1315
    %v1317 = vmul.f32 %v1286, %v620
    %v1318 = vmul.f32 %v1288, %v621
    %v1319 = vmul.f32 %v1290, %v622
    %v1320 = vmul.f32 %v1292, %v623
    %v1321 = vmul.f32 %v1294, %v624
    %v1322 = vmul.f32 %v1296, %v625
    %v1323 = vmul.f32 %v1298, %v626
    %v1324 = vmul.f32 %v1300, %v627
    %v1325 = vmul.f32 %v1283, %v628
    %v1326 = vmul.f32 %v1284, %v629
    %v1327 = vmul.f32 %v1302, %v630
    %v1328 = vmul.f32 %v1304, %v631
    %v1329 = vmul.f32 %v1306, %v632
    %v1330 = vmul.f32 %v1308, %v633
    %v1331 = vmul.f32 %v1310, %v634
    %v1332 = vmul.f32 %v1312, %v635
    %v1333 = vmul.f32 %v1314, %v636
    %v1334 = vmul.f32 %v1316, %v637
    %v1335 = vpack.c.bf16 %v1318, %v1317
    %v1336 = vpack.c.bf16 %v1320, %v1319
    %v1337 = vpack.c.bf16 %v1322, %v1321
    %v1338 = vpack.c.bf16 %v1324, %v1323
    %v1339 = vpack.c.bf16 %v1326, %v1325
    %v1340 = vpack.c.bf16 %v1328, %v1327
    %v1341 = vpack.c.bf16 %v1330, %v1329
    %v1342 = vpack.c.bf16 %v1332, %v1331
    %v1343 = vpack.c.bf16 %v1334, %v1333
    %v1344 = vld [vmem:[%s14] sm:$0xff]
    %v1345 = vld [vmem:[%s14 + $0x8] sm:$0xff]
    %v1346 = vld [vmem:[%s14 + $0x10] sm:$0xff]
    %v1347 = vld [vmem:[%s14 + $0x18] sm:$0xff]
    %v1348 = vld [vmem:[%s14 + $0x20] sm:$0xff]
    %v1349 = vld [vmem:[%s15] sm:$0xff]
    %v1350 = vld [vmem:[%s15 + $0x8] sm:$0xff]
    %v1351 = vld [vmem:[%s15 + $0x10] sm:$0xff]
    %v1352 = vld [vmem:[%s15 + $0x18] sm:$0xff]
    %v1353 = vld [vmem:[%s15 + $0x20] sm:$0xff]
    %1355 = vset.pattern.permute.xlu0 0
    %1356 = vperm.xlu0 %1355, %v1349
    %v1357 = vpop.permute.xlu0 %1356
    %1360 = vset.pattern.permute.xlu0 0
    %1361 = vperm.xlu0 %1360, %v1350
    %v1362 = vpop.permute.xlu0 %1361
    %1365 = vset.pattern.permute.xlu0 0
    %1366 = vperm.xlu0 %1365, %v1351
    %v1367 = vpop.permute.xlu0 %1366
    %1370 = vset.pattern.permute.xlu0 0
    %1371 = vperm.xlu0 %1370, %v1352
    %v1372 = vpop.permute.xlu0 %1371
    %1375 = vset.pattern.permute.xlu0 0
    %1376 = vperm.xlu0 %1375, %v1353
    %v1377 = vpop.permute.xlu0 %1376
    %v1384 = vunpack.c.l.b16 %v1344
    %v1385 = vunpack.c.h.b16 %v1344
    %v1386 = vunpack.c.l.b16 %v1345
    %v1387 = vunpack.c.h.b16 %v1345
    %v1388 = vunpack.c.l.b16 %v1346
    %v1389 = vunpack.c.h.b16 %v1346
    %v1390 = vunpack.c.l.b16 %v1347
    %v1391 = vunpack.c.h.b16 %v1347
    %v1392 = vunpack.c.l.b16 %v1348
    %v1393 = vunpack.c.h.b16 %v1348
    %v1394 = vpack.c.b16 %v1386, %v1384
    %v1395 = vpack.c.b16 %v1387, %v1385
    %v1396 = vpack.c.b16 %v1390, %v1388
    %v1397 = vpack.c.b16 %v1391, %v1389
    %v1398 = vpack.c.b16 %v1392, %v1392
    %v1399 = vpack.c.b16 %v1393, %v1393
    %v1404 = vsel %vm722, %v1395, 0
    %v1407 = vsel %vm722, %v1397, 0
    %v1410 = vsel %vm722, %v1399, 0
    %1412 = vmatprep.subr.bf16.mxu0 0
    %1413 = vmatpush1.bf16.msra.mxu0 %v1342
    %1414 = vmatprep.subr.bf16.mxu0 0
    %1415 = vmatpush1.bf16.msra.mxu0 %v1341
    %1416 = vmatprep.subr.bf16.mxu0 0
    %1417 = vmatpush1.bf16.msra.mxu0 %v1340
    %1418 = vmatprep.subr.bf16.mxu0 0
    %1419 = vmatpush1.bf16.msra.mxu0 %v1339
    %1420 = vmatprep.subr.bf16.mxu0 0
    %1421 = vmatpush1.bf16.msra.mxu0 %v1338
    %1422 = vmatprep.subr.bf16.mxu0 0
    %1423 = vmatpush1.bf16.msra.mxu0 %v1337
    %1424 = vmatprep.subr.bf16.mxu0 0
    %1425 = vmatpush1.bf16.msra.mxu0 %v1336
    %1426 = vmatprep.subr.bf16.mxu0 0
    %1427 = vmatpush1.bf16.msra.mxu0 %v1335
    %1428 = vmatprep.subr.bf16.mxu0 0
    %1429 = vmatpush2.bf16.msra.mxu0 0
    %1430 = vmatprep.subr.bf16.mxu0 0
    %1431 = vmatpush2.bf16.msra.mxu0 0
    %1432 = vmatprep.subr.bf16.mxu0 0
    %1433 = vmatpush2.bf16.msra.mxu0 0
    %1434 = vmatprep.subr.bf16.mxu0 0
    %1435 = vmatpush2.bf16.msra.mxu0 0
    %1436 = vmatprep.subr.bf16.mxu0 0
    %1437 = vmatpush2.bf16.msra.mxu0 0
    %1438 = vmatprep.subr.bf16.mxu0 0
    %1439 = vmatpush2.bf16.msra.mxu0 0
    %1440 = vmatprep.subr.bf16.mxu0 0
    %1441 = vmatpush2.bf16.msra.mxu0 0
    %1442 = vmatprep.subr.bf16.mxu0 0
    %1443 = vmatpush2.bf16.msra.mxu0 %v1343
    %1444 = vmatprep.mubr.bf16.mxu0 %v1404
    %1445 = vmatmul.mubr.bf16.gmra.mxu0 %v1394
    %v1446 = vpop.f32.mrf.mxu0
    %v1447 = vadd.f32 %v1357, %v1446
    %v1448 = vpop.f32.mrf.mxu0
    %v1449 = vpop.f32.mrf.mxu0
    %v1450 = vadd.f32 %v1362, %v1449
    %v1451 = vpop.f32.mrf.mxu0
    %1452 = vmatprep.mubr.bf16.mxu0 %v1407
    %1453 = vmatmul.mubr.bf16.gmra.mxu0 %v1396
    %v1454 = vpop.f32.mrf.mxu0
    %v1455 = vadd.f32 %v1367, %v1454
    %v1456 = vpop.f32.mrf.mxu0
    %v1457 = vpop.f32.mrf.mxu0
    %v1458 = vadd.f32 %v1372, %v1457
    %v1459 = vpop.f32.mrf.mxu0
    %1460 = vmatprep.mubr.bf16.mxu0 %v1410
    %1461 = vmatmul.mubr.bf16.gmra.mxu0 %v1398
    %v1462 = vpop.f32.mrf.mxu0
    %v1463 = vadd.f32 %v1377, %v1462
    %v1464 = vpop.f32.mrf.mxu0
    %v1465 = vpop.f32.mrf.mxu0
    %v1466 = vpop.f32.mrf.mxu0
    %1467 = vdwg.mxu0
    %v1468 = vmax.f32 %v1447, 0.0
    %v1469 = vmax.f32 %v1450, 0.0
    %v1470 = vmax.f32 %v1455, 0.0
    %v1471 = vmax.f32 %v1458, 0.0
    %v1472 = vmax.f32 %v1463, 0.0
    %v1474 = vrot.slane %v1468, 1
    %v1476 = vrot.slane %v1468, 2
    %v1478 = vrot.slane %v1468, 3
    %v1480 = vrot.slane %v1468, 4
    %v1482 = vrot.slane %v1468, 5
    %v1484 = vrot.slane %v1468, 6
    %v1486 = vrot.slane %v1468, 7
    %v1489 = vrot.slane %v1469, 1
    %v1491 = vrot.slane %v1469, 2
    %v1493 = vrot.slane %v1469, 3
    %v1495 = vrot.slane %v1469, 4
    %v1497 = vrot.slane %v1469, 5
    %v1499 = vrot.slane %v1469, 6
    %v1501 = vrot.slane %v1469, 7
    %v1504 = vrot.slane %v1470, 1
    %v1506 = vrot.slane %v1470, 2
    %v1508 = vrot.slane %v1470, 3
    %v1510 = vrot.slane %v1470, 4
    %v1512 = vrot.slane %v1470, 5
    %v1514 = vrot.slane %v1470, 6
    %v1516 = vrot.slane %v1470, 7
    %v1519 = vrot.slane %v1471, 1
    %v1521 = vrot.slane %v1471, 2
    %v1523 = vrot.slane %v1471, 3
    %v1525 = vrot.slane %v1471, 4
    %v1527 = vrot.slane %v1471, 5
    %v1529 = vrot.slane %v1471, 6
    %v1531 = vrot.slane %v1471, 7
    %v1534 = vrot.slane %v1472, 1
    %v1536 = vrot.slane %v1472, 2
    %v1538 = vld [vmem:[%s1] sm:$0xff]
    %v1539 = vld [vmem:[%s1 + $0x8] sm:$0xff]
    %v1540 = vld [vmem:[%s1 + $0x10] sm:$0xff]
    %v1541 = vld [vmem:[%s1 + $0x18] sm:$0xff]
    %v1542 = vld [vmem:[%s1 + $0x20] sm:$0xff]
    %v1543 = vld [vmem:[%s1 + $0x28] sm:$0xff]
    %v1544 = vld [vmem:[%s1 + $0x30] sm:$0xff]
    %v1545 = vld [vmem:[%s1 + $0x38] sm:$0xff]
    %v1546 = vlaneseq
    %v1547 = vshrl.u32 %v1546, 7
    %v1548 = vsub.s32 0, %v1547
    %v1549 = vrot.slane %v1468, %v1548
    %v1550 = vlaneseq
    %v1551 = vshrl.u32 %v1550, 7
    %v1552 = vsub.s32 0, %v1551
    %v1553 = vrot.slane %v1474, %v1552
    %v1554 = vlaneseq
    %v1555 = vshrl.u32 %v1554, 7
    %v1556 = vsub.s32 0, %v1555
    %v1557 = vrot.slane %v1476, %v1556
    %v1558 = vlaneseq
    %v1559 = vshrl.u32 %v1558, 7
    %v1560 = vsub.s32 0, %v1559
    %v1561 = vrot.slane %v1478, %v1560
    %v1562 = vlaneseq
    %v1563 = vshrl.u32 %v1562, 7
    %v1564 = vsub.s32 0, %v1563
    %v1565 = vrot.slane %v1480, %v1564
    %v1566 = vlaneseq
    %v1567 = vshrl.u32 %v1566, 7
    %v1568 = vsub.s32 0, %v1567
    %v1569 = vrot.slane %v1482, %v1568
    %v1570 = vlaneseq
    %v1571 = vshrl.u32 %v1570, 7
    %v1572 = vsub.s32 0, %v1571
    %v1573 = vrot.slane %v1484, %v1572
    %v1574 = vlaneseq
    %v1575 = vshrl.u32 %v1574, 7
    %v1576 = vsub.s32 0, %v1575
    %v1577 = vrot.slane %v1486, %v1576
    %v1578 = vlaneseq
    %v1579 = vshrl.u32 %v1578, 7
    %v1580 = vsub.s32 0, %v1579
    %v1581 = vrot.slane %v1469, %v1580
    %v1582 = vlaneseq
    %v1583 = vshrl.u32 %v1582, 7
    %v1584 = vsub.s32 0, %v1583
    %v1585 = vrot.slane %v1489, %v1584
    %v1586 = vlaneseq
    %v1587 = vshrl.u32 %v1586, 7
    %v1588 = vsub.s32 0, %v1587
    %v1589 = vrot.slane %v1491, %v1588
    %v1590 = vlaneseq
    %v1591 = vshrl.u32 %v1590, 7
    %v1592 = vsub.s32 0, %v1591
    %v1593 = vrot.slane %v1493, %v1592
    %v1594 = vlaneseq
    %v1595 = vshrl.u32 %v1594, 7
    %v1596 = vsub.s32 0, %v1595
    %v1597 = vrot.slane %v1495, %v1596
    %v1598 = vlaneseq
    %v1599 = vshrl.u32 %v1598, 7
    %v1600 = vsub.s32 0, %v1599
    %v1601 = vrot.slane %v1497, %v1600
    %v1602 = vlaneseq
    %v1603 = vshrl.u32 %v1602, 7
    %v1604 = vsub.s32 0, %v1603
    %v1605 = vrot.slane %v1499, %v1604
    %v1606 = vlaneseq
    %v1607 = vshrl.u32 %v1606, 7
    %v1608 = vsub.s32 0, %v1607
    %v1609 = vrot.slane %v1501, %v1608
    %v1610 = vlaneseq
    %v1611 = vshrl.u32 %v1610, 7
    %v1612 = vsub.s32 0, %v1611
    %v1613 = vrot.slane %v1470, %v1612
    %v1614 = vlaneseq
    %v1615 = vshrl.u32 %v1614, 7
    %v1616 = vsub.s32 0, %v1615
    %v1617 = vrot.slane %v1504, %v1616
    %v1618 = vlaneseq
    %v1619 = vshrl.u32 %v1618, 7
    %v1620 = vsub.s32 0, %v1619
    %v1621 = vrot.slane %v1506, %v1620
    %v1622 = vlaneseq
    %v1623 = vshrl.u32 %v1622, 7
    %v1624 = vsub.s32 0, %v1623
    %v1625 = vrot.slane %v1508, %v1624
    %v1626 = vlaneseq
    %v1627 = vshrl.u32 %v1626, 7
    %v1628 = vsub.s32 0, %v1627
    %v1629 = vrot.slane %v1510, %v1628
    %v1630 = vlaneseq
    %v1631 = vshrl.u32 %v1630, 7
    %v1632 = vsub.s32 0, %v1631
    %v1633 = vrot.slane %v1512, %v1632
    %v1634 = vlaneseq
    %v1635 = vshrl.u32 %v1634, 7
    %v1636 = vsub.s32 0, %v1635
    %v1637 = vrot.slane %v1514, %v1636
    %v1638 = vlaneseq
    %v1639 = vshrl.u32 %v1638, 7
    %v1640 = vsub.s32 0, %v1639
    %v1641 = vrot.slane %v1516, %v1640
    %v1642 = vlaneseq
    %v1643 = vshrl.u32 %v1642, 7
    %v1644 = vsub.s32 0, %v1643
    %v1645 = vrot.slane %v1471, %v1644
    %v1646 = vlaneseq
    %v1647 = vshrl.u32 %v1646, 7
    %v1648 = vsub.s32 0, %v1647
    %v1649 = vrot.slane %v1519, %v1648
    %v1650 = vlaneseq
    %v1651 = vshrl.u32 %v1650, 7
    %v1652 = vsub.s32 0, %v1651
    %v1653 = vrot.slane %v1521, %v1652
    %v1654 = vlaneseq
    %v1655 = vshrl.u32 %v1654, 7
    %v1656 = vsub.s32 0, %v1655
    %v1657 = vrot.slane %v1523, %v1656
    %v1658 = vlaneseq
    %v1659 = vshrl.u32 %v1658, 7
    %v1660 = vsub.s32 0, %v1659
    %v1661 = vrot.slane %v1525, %v1660
    %v1662 = vlaneseq
    %v1663 = vshrl.u32 %v1662, 7
    %v1664 = vsub.s32 0, %v1663
    %v1665 = vrot.slane %v1527, %v1664
    %v1666 = vlaneseq
    %v1667 = vshrl.u32 %v1666, 7
    %v1668 = vsub.s32 0, %v1667
    %v1669 = vrot.slane %v1529, %v1668
    %v1670 = vlaneseq
    %v1671 = vshrl.u32 %v1670, 7
    %v1672 = vsub.s32 0, %v1671
    %v1673 = vrot.slane %v1531, %v1672
    %v1682 = vcombine.high %v1538, %v1538
    %v1684 = vunpack.c.l.s4 1983009808
    %v1685 = vunpack.c.0.s8 %v1684
    %v1686 = vlaneseq
    %v1687 = vshrl.u32 %v1686, 7
    %v1688 = vsub.s32 %v1685, %v1687
    %v1689 = vrot.slane %v1538, %v1688
    %v1691 = vunpack.c.l.s4 1983009808
    %v1692 = vunpack.c.0.s8 %v1691
    %v1693 = vlaneseq
    %v1694 = vshrl.u32 %v1693, 7
    %v1695 = vsub.s32 %v1692, %v1694
    %v1696 = vrot.slane %v1682, %v1695
    %v1697 = vcombine.high %v1689, %v1689
    %v1698 = vcombine.high %v1696, %v1696
    %v1699 = vcombine.high %v1539, %v1539
    %v1701 = vunpack.c.l.s4 1983009808
    %v1702 = vunpack.c.0.s8 %v1701
    %v1703 = vlaneseq
    %v1704 = vshrl.u32 %v1703, 7
    %v1705 = vsub.s32 %v1702, %v1704
    %v1706 = vrot.slane %v1539, %v1705
    %v1708 = vunpack.c.l.s4 1983009808
    %v1709 = vunpack.c.0.s8 %v1708
    %v1710 = vlaneseq
    %v1711 = vshrl.u32 %v1710, 7
    %v1712 = vsub.s32 %v1709, %v1711
    %v1713 = vrot.slane %v1699, %v1712
    %v1714 = vcombine.high %v1706, %v1706
    %v1715 = vcombine.high %v1713, %v1713
    %v1716 = vcombine.high %v1540, %v1540
    %v1718 = vunpack.c.l.s4 1983009808
    %v1719 = vunpack.c.0.s8 %v1718
    %v1720 = vlaneseq
    %v1721 = vshrl.u32 %v1720, 7
    %v1722 = vsub.s32 %v1719, %v1721
    %v1723 = vrot.slane %v1540, %v1722
    %v1725 = vunpack.c.l.s4 1983009808
    %v1726 = vunpack.c.0.s8 %v1725
    %v1727 = vlaneseq
    %v1728 = vshrl.u32 %v1727, 7
    %v1729 = vsub.s32 %v1726, %v1728
    %v1730 = vrot.slane %v1716, %v1729
    %v1731 = vcombine.high %v1723, %v1723
    %v1732 = vcombine.high %v1730, %v1730
    %v1733 = vcombine.high %v1541, %v1541
    %v1735 = vunpack.c.l.s4 1983009808
    %v1736 = vunpack.c.0.s8 %v1735
    %v1737 = vlaneseq
    %v1738 = vshrl.u32 %v1737, 7
    %v1739 = vsub.s32 %v1736, %v1738
    %v1740 = vrot.slane %v1541, %v1739
    %v1742 = vunpack.c.l.s4 1983009808
    %v1743 = vunpack.c.0.s8 %v1742
    %v1744 = vlaneseq
    %v1745 = vshrl.u32 %v1744, 7
    %v1746 = vsub.s32 %v1743, %v1745
    %v1747 = vrot.slane %v1733, %v1746
    %v1748 = vcombine.high %v1740, %v1740
    %v1749 = vcombine.high %v1747, %v1747
    %v1750 = vcombine.high %v1542, %v1542
    %v1752 = vunpack.c.l.s4 1983009808
    %v1753 = vunpack.c.0.s8 %v1752
    %v1754 = vlaneseq
    %v1755 = vshrl.u32 %v1754, 7
    %v1756 = vsub.s32 %v1753, %v1755
    %v1757 = vrot.slane %v1542, %v1756
    %v1759 = vunpack.c.l.s4 1983009808
    %v1760 = vunpack.c.0.s8 %v1759
    %v1761 = vlaneseq
    %v1762 = vshrl.u32 %v1761, 7
    %v1763 = vsub.s32 %v1760, %v1762
    %v1764 = vrot.slane %v1750, %v1763
    %v1765 = vcombine.high %v1757, %v1757
    %v1766 = vcombine.high %v1764, %v1764
    %v1767 = vcombine.high %v1543, %v1543
    %v1769 = vunpack.c.l.s4 1983009808
    %v1770 = vunpack.c.0.s8 %v1769
    %v1771 = vlaneseq
    %v1772 = vshrl.u32 %v1771, 7
    %v1773 = vsub.s32 %v1770, %v1772
    %v1774 = vrot.slane %v1543, %v1773
    %v1776 = vunpack.c.l.s4 1983009808
    %v1777 = vunpack.c.0.s8 %v1776
    %v1778 = vlaneseq
    %v1779 = vshrl.u32 %v1778, 7
    %v1780 = vsub.s32 %v1777, %v1779
    %v1781 = vrot.slane %v1767, %v1780
    %v1782 = vcombine.high %v1774, %v1774
    %v1783 = vcombine.high %v1781, %v1781
    %v1784 = vcombine.high %v1544, %v1544
    %v1786 = vunpack.c.l.s4 1983009808
    %v1787 = vunpack.c.0.s8 %v1786
    %v1788 = vlaneseq
    %v1789 = vshrl.u32 %v1788, 7
    %v1790 = vsub.s32 %v1787, %v1789
    %v1791 = vrot.slane %v1544, %v1790
    %v1793 = vunpack.c.l.s4 1983009808
    %v1794 = vunpack.c.0.s8 %v1793
    %v1795 = vlaneseq
    %v1796 = vshrl.u32 %v1795, 7
    %v1797 = vsub.s32 %v1794, %v1796
    %v1798 = vrot.slane %v1784, %v1797
    %v1799 = vcombine.high %v1791, %v1791
    %v1800 = vcombine.high %v1798, %v1798
    %v1801 = vcombine.high %v1545, %v1545
    %v1803 = vunpack.c.l.s4 1983009808
    %v1804 = vunpack.c.0.s8 %v1803
    %v1805 = vlaneseq
    %v1806 = vshrl.u32 %v1805, 7
    %v1807 = vsub.s32 %v1804, %v1806
    %v1808 = vrot.slane %v1545, %v1807
    %v1810 = vunpack.c.l.s4 1983009808
    %v1811 = vunpack.c.0.s8 %v1810
    %v1812 = vlaneseq
    %v1813 = vshrl.u32 %v1812, 7
    %v1814 = vsub.s32 %v1811, %v1813
    %v1815 = vrot.slane %v1801, %v1814
    %v1816 = vcombine.high %v1808, %v1808
    %v1817 = vcombine.high %v1815, %v1815
    %v1850 = vmul.f32 %v1549, %v1689
    %v1851 = vmul.f32 %v1553, %v1697
    %v1852 = vmul.f32 %v1557, %v1696
    %v1853 = vmul.f32 %v1561, %v1698
    %v1854 = vmul.f32 %v1565, %v1706
    %v1855 = vmul.f32 %v1569, %v1714
    %v1856 = vmul.f32 %v1573, %v1713
    %v1857 = vmul.f32 %v1577, %v1715
    %v1858 = vmul.f32 %v1581, %v1723
    %v1859 = vmul.f32 %v1585, %v1731
    %v1860 = vmul.f32 %v1589, %v1730
    %v1861 = vmul.f32 %v1593, %v1732
    %v1862 = vmul.f32 %v1597, %v1740
    %v1863 = vmul.f32 %v1601, %v1748
    %v1864 = vmul.f32 %v1605, %v1747
    %v1865 = vmul.f32 %v1609, %v1749
    %v1866 = vmul.f32 %v1613, %v1757
    %v1867 = vmul.f32 %v1617, %v1765
    %v1868 = vmul.f32 %v1621, %v1764
    %v1869 = vmul.f32 %v1625, %v1766
    %v1870 = vmul.f32 %v1629, %v1774
    %v1871 = vmul.f32 %v1633, %v1782
    %v1872 = vmul.f32 %v1637, %v1781
    %v1873 = vmul.f32 %v1641, %v1783
    %v1874 = vmul.f32 %v1645, %v1791
    %v1875 = vmul.f32 %v1649, %v1799
    %v1876 = vmul.f32 %v1653, %v1798
    %v1877 = vmul.f32 %v1657, %v1800
    %v1878 = vmul.f32 %v1661, %v1808
    %v1879 = vmul.f32 %v1665, %v1816
    %v1880 = vmul.f32 %v1669, %v1815
    %v1881 = vmul.f32 %v1673, %v1817
    %v1882 = vpack.c.bf16 %v1850, %v1850
    %v1883 = vpack.c.bf16 %v1851, %v1851
    %v1884 = vpack.c.bf16 %v1852, %v1852
    %v1885 = vpack.c.bf16 %v1853, %v1853
    %v1886 = vpack.c.bf16 %v1854, %v1854
    %v1887 = vpack.c.bf16 %v1855, %v1855
    %v1888 = vpack.c.bf16 %v1856, %v1856
    %v1889 = vpack.c.bf16 %v1857, %v1857
    %v1890 = vpack.c.bf16 %v1858, %v1858
    %v1891 = vpack.c.bf16 %v1859, %v1859
    %v1892 = vpack.c.bf16 %v1860, %v1860
    %v1893 = vpack.c.bf16 %v1861, %v1861
    %v1894 = vpack.c.bf16 %v1862, %v1862
    %v1895 = vpack.c.bf16 %v1863, %v1863
    %v1896 = vpack.c.bf16 %v1864, %v1864
    %v1897 = vpack.c.bf16 %v1865, %v1865
    %v1898 = vpack.c.bf16 %v1866, %v1866
    %v1899 = vpack.c.bf16 %v1867, %v1867
    %v1900 = vpack.c.bf16 %v1868, %v1868
    %v1901 = vpack.c.bf16 %v1869, %v1869
    %v1902 = vpack.c.bf16 %v1870, %v1870
    %v1903 = vpack.c.bf16 %v1871, %v1871
    %v1904 = vpack.c.bf16 %v1872, %v1872
    %v1905 = vpack.c.bf16 %v1873, %v1873
    %v1906 = vpack.c.bf16 %v1874, %v1874
    %v1907 = vpack.c.bf16 %v1875, %v1875
    %v1908 = vpack.c.bf16 %v1876, %v1876
    %v1909 = vpack.c.bf16 %v1877, %v1877
    %v1910 = vpack.c.bf16 %v1878, %v1878
    %v1911 = vpack.c.bf16 %v1879, %v1879
    %v1912 = vpack.c.bf16 %v1880, %v1880
    %v1913 = vpack.c.bf16 %v1881, %v1881
    %v1914 = vld [vmem:[%s2] sm:$0x3f]
    %v1915 = vlaneseq
    %v1916 = vshrl.u32 %v1915, 7
    %v1917 = vsub.s32 0, %v1916
    %v1918 = vrot.slane %v1472, %v1917
    %v1919 = vlaneseq
    %v1920 = vshrl.u32 %v1919, 7
    %v1921 = vsub.s32 0, %v1920
    %v1922 = vrot.slane %v1534, %v1921
    %v1923 = vlaneseq
    %v1924 = vshrl.u32 %v1923, 7
    %v1925 = vsub.s32 0, %v1924
    %v1926 = vrot.slane %v1536, %v1925
    %v1928 = vcombine.high %v1914, %v1914
    %v1930 = vunpack.c.l.s4 1983009808
    %v1931 = vunpack.c.0.s8 %v1930
    %v1932 = vlaneseq
    %v1933 = vshrl.u32 %v1932, 7
    %v1934 = vsub.s32 %v1931, %v1933
    %v1935 = vrot.slane %v1914, %v1934
    %v1937 = vunpack.c.l.s4 1983009808
    %v1938 = vunpack.c.0.s8 %v1937
    %v1939 = vlaneseq
    %v1940 = vshrl.u32 %v1939, 7
    %v1941 = vsub.s32 %v1938, %v1940
    %v1942 = vrot.slane %v1928, %v1941
    %v1943 = vcombine.high %v1935, %v1935
    %v1947 = vmul.f32 %v1918, %v1935
    %v1948 = vmul.f32 %v1922, %v1943
    %v1949 = vmul.f32 %v1926, %v1942
    %v1950 = vpack.c.bf16 %v1947, %v1947
    %v1951 = vpack.c.bf16 %v1948, %v1948
    %v1952 = vpack.c.bf16 %v1949, %v1949
    %v1953 = vld [vmem:[%s18] sm:$0xf]
    %v1954 = vld [vmem:[%s18 + $0x4] sm:$0xf]
    %v1955 = vld [vmem:[%s18 + $0x8] sm:$0xf]
    %v1956 = vld [vmem:[%s18 + $0xc] sm:$0xf]
    %v1957 = vld [vmem:[%s18 + $0x10] sm:$0xf]
    %v1958 = vld [vmem:[%s18 + $0x14] sm:$0xf]
    %v1959 = vld [vmem:[%s18 + $0x18] sm:$0xf]
    %v1960 = vld [vmem:[%s18 + $0x1c] sm:$0xf]
    %v1961 = vld [vmem:[%s18 + $0x20] sm:$0xf]
    %v1962 = vld [vmem:[%s18 + $0x24] sm:$0xf]
    %v1963 = vld [vmem:[%s18 + $0x28] sm:$0xf]
    %v1964 = vld [vmem:[%s18 + $0x2c] sm:$0xf]
    %v1965 = vld [vmem:[%s18 + $0x30] sm:$0xf]
    %v1966 = vld [vmem:[%s18 + $0x34] sm:$0xf]
    %v1967 = vld [vmem:[%s18 + $0x38] sm:$0xf]
    %v1968 = vld [vmem:[%s18 + $0x3c] sm:$0xf]
    %v1969 = vld [vmem:[%s18 + $0x40] sm:$0xf]
    %v1970 = vld [vmem:[%s18 + $0x44] sm:$0xf]
    %v1971 = vld [vmem:[%s18 + $0x48] sm:$0xf]
    %v1972 = vld [vmem:[%s18 + $0x4c] sm:$0xf]
    %v1973 = vld [vmem:[%s18 + $0x50] sm:$0xf]
    %v1974 = vld [vmem:[%s18 + $0x54] sm:$0xf]
    %v1975 = vld [vmem:[%s18 + $0x58] sm:$0xf]
    %v1976 = vld [vmem:[%s18 + $0x5c] sm:$0xf]
    %v1977 = vld [vmem:[%s18 + $0x60] sm:$0xf]
    %v1978 = vld [vmem:[%s18 + $0x64] sm:$0xf]
    %v1979 = vld [vmem:[%s18 + $0x68] sm:$0xf]
    %v1980 = vld [vmem:[%s18 + $0x6c] sm:$0xf]
    %v1981 = vld [vmem:[%s18 + $0x70] sm:$0xf]
    %v1982 = vld [vmem:[%s18 + $0x74] sm:$0xf]
    %v1983 = vld [vmem:[%s18 + $0x78] sm:$0xf]
    %v1984 = vld [vmem:[%s18 + $0x7c] sm:$0xf]
    %v1985 = vld [vmem:[%s18 + $0x80] sm:$0xf]
    %v1986 = vld [vmem:[%s18 + $0x84] sm:$0xf]
    %v1987 = vld [vmem:[%s18 + $0x88] sm:$0xf]
    %v1988 = vld [vmem:[%s18 + $0x8c] sm:$0xf]
    %v1989 = vld [vmem:[%s18 + $0x90] sm:$0xf]
    %v1990 = vld [vmem:[%s18 + $0x94] sm:$0xf]
    %v1991 = vld [vmem:[%s18 + $0x98] sm:$0xf]
    %v1992 = vld [vmem:[%s18 + $0x9c] sm:$0xf]
    %v1993 = vld [vmem:[%s18 + $0xa0] sm:$0xf]
    %v1994 = vld [vmem:[%s18 + $0xa4] sm:$0xf]
    %v1995 = vld [vmem:[%s18 + $0xa8] sm:$0xf]
    %v1996 = vld [vmem:[%s18 + $0xac] sm:$0xf]
    %v1997 = vld [vmem:[%s18 + $0xb0] sm:$0xf]
    %v1998 = vld [vmem:[%s18 + $0xb4] sm:$0xf]
    %v1999 = vld [vmem:[%s18 + $0xb8] sm:$0xf]
    %v2000 = vld [vmem:[%s18 + $0xbc] sm:$0xf]
    %v2001 = vld [vmem:[%s19] sm:$0x1]
    %v2003 = vlaneseq
    %v2004 = vshrl.u32 %v2003, 7
    %v2005 = vsub.s32 0, %v2004
    %v2006 = vrot.slane %v2001, %v2005
    %v2056 = vunpack.c.l.b16 %v1953
    %v2057 = vunpack.c.l.b16 %v1954
    %v2058 = vunpack.c.l.b16 %v1955
    %v2059 = vunpack.c.l.b16 %v1956
    %v2060 = vunpack.c.l.b16 %v1957
    %v2061 = vunpack.c.l.b16 %v1958
    %v2062 = vunpack.c.l.b16 %v1959
    %v2063 = vunpack.c.l.b16 %v1960
    %v2064 = vunpack.c.l.b16 %v1961
    %v2065 = vunpack.c.l.b16 %v1962
    %v2066 = vunpack.c.l.b16 %v1963
    %v2067 = vunpack.c.l.b16 %v1964
    %v2068 = vunpack.c.l.b16 %v1965
    %v2069 = vunpack.c.l.b16 %v1966
    %v2070 = vunpack.c.l.b16 %v1967
    %v2071 = vunpack.c.l.b16 %v1968
    %v2072 = vunpack.c.l.b16 %v1969
    %v2073 = vunpack.c.l.b16 %v1970
    %v2074 = vunpack.c.l.b16 %v1971
    %v2075 = vunpack.c.l.b16 %v1972
    %v2076 = vunpack.c.l.b16 %v1973
    %v2077 = vunpack.c.l.b16 %v1974
    %v2078 = vunpack.c.l.b16 %v1975
    %v2079 = vunpack.c.l.b16 %v1976
    %v2080 = vunpack.c.l.b16 %v1977
    %v2081 = vunpack.c.l.b16 %v1978
    %v2082 = vunpack.c.l.b16 %v1979
    %v2083 = vunpack.c.l.b16 %v1980
    %v2084 = vunpack.c.l.b16 %v1981
    %v2085 = vunpack.c.l.b16 %v1982
    %v2086 = vunpack.c.l.b16 %v1983
    %v2087 = vunpack.c.l.b16 %v1984
    %v2088 = vunpack.c.l.b16 %v1985
    %v2089 = vunpack.c.l.b16 %v1986
    %v2090 = vunpack.c.l.b16 %v1987
    %v2091 = vunpack.c.l.b16 %v1988
    %v2092 = vunpack.c.l.b16 %v1989
    %v2093 = vunpack.c.l.b16 %v1990
    %v2094 = vunpack.c.l.b16 %v1991
    %v2095 = vunpack.c.l.b16 %v1992
    %v2096 = vunpack.c.l.b16 %v1993
    %v2097 = vunpack.c.l.b16 %v1994
    %v2098 = vunpack.c.l.b16 %v1995
    %v2099 = vunpack.c.l.b16 %v1996
    %v2100 = vunpack.c.l.b16 %v1997
    %v2101 = vunpack.c.l.b16 %v1998
    %v2102 = vunpack.c.l.b16 %v1999
    %v2103 = vunpack.c.l.b16 %v2000
    %v2104 = vpack.c.b16 %v2057, %v2056
    %v2105 = vpack.c.b16 %v2059, %v2058
    %v2106 = vpack.c.b16 %v2061, %v2060
    %v2107 = vpack.c.b16 %v2063, %v2062
    %v2108 = vpack.c.b16 %v2065, %v2064
    %v2109 = vpack.c.b16 %v2067, %v2066
    %v2110 = vpack.c.b16 %v2069, %v2068
    %v2111 = vpack.c.b16 %v2071, %v2070
    %v2112 = vpack.c.b16 %v2073, %v2072
    %v2113 = vpack.c.b16 %v2075, %v2074
    %v2114 = vpack.c.b16 %v2077, %v2076
    %v2115 = vpack.c.b16 %v2079, %v2078
    %v2116 = vpack.c.b16 %v2081, %v2080
    %v2117 = vpack.c.b16 %v2083, %v2082
    %v2118 = vpack.c.b16 %v2085, %v2084
    %v2119 = vpack.c.b16 %v2087, %v2086
    %v2120 = vpack.c.b16 %v2089, %v2088
    %v2121 = vpack.c.b16 %v2091, %v2090
    %v2122 = vpack.c.b16 %v2093, %v2092
    %v2123 = vpack.c.b16 %v2095, %v2094
    %v2124 = vpack.c.b16 %v2097, %v2096
    %v2125 = vpack.c.b16 %v2099, %v2098
    %v2126 = vpack.c.b16 %v2101, %v2100
    %v2127 = vpack.c.b16 %v2103, %v2102
    %2152 = vmatprep.subr.bf16.mxu0 0
    %2153 = vmatpush1.bf16.msra.mxu0 %v2111
    %2154 = vmatprep.subr.bf16.mxu0 0
    %2155 = vmatpush1.bf16.msra.mxu0 %v2110
    %2156 = vmatprep.subr.bf16.mxu0 0
    %2157 = vmatpush1.bf16.msra.mxu0 %v2109
    %2158 = vmatprep.subr.bf16.mxu0 0
    %2159 = vmatpush1.bf16.msra.mxu0 %v2108
    %2160 = vmatprep.subr.bf16.mxu0 0
    %2161 = vmatpush1.bf16.msra.mxu0 %v2107
    %2162 = vmatprep.subr.bf16.mxu0 0
    %2163 = vmatpush1.bf16.msra.mxu0 %v2106
    %2164 = vmatprep.subr.bf16.mxu0 0
    %2165 = vmatpush1.bf16.msra.mxu0 %v2105
    %2166 = vmatprep.subr.bf16.mxu0 0
    %2167 = vmatpush1.bf16.msra.mxu0 %v2104
    %2168 = vmatprep.subr.bf16.mxu0 0
    %2169 = vmatpush2.bf16.msra.mxu0 %v2119
    %2170 = vmatprep.subr.bf16.mxu0 0
    %2171 = vmatpush2.bf16.msra.mxu0 %v2118
    %2172 = vmatprep.subr.bf16.mxu0 0
    %2173 = vmatpush2.bf16.msra.mxu0 %v2117
    %2174 = vmatprep.subr.bf16.mxu0 0
    %2175 = vmatpush2.bf16.msra.mxu0 %v2116
    %2176 = vmatprep.subr.bf16.mxu0 0
    %2177 = vmatpush2.bf16.msra.mxu0 %v2115
    %2178 = vmatprep.subr.bf16.mxu0 0
    %2179 = vmatpush2.bf16.msra.mxu0 %v2114
    %2180 = vmatprep.subr.bf16.mxu0 0
    %2181 = vmatpush2.bf16.msra.mxu0 %v2113
    %2182 = vmatprep.subr.bf16.mxu0 0
    %2183 = vmatpush2.bf16.msra.mxu0 %v2112
    %2184 = vmatprep.mubr.bf16.mxu0 %v1951
    %2185 = vmatmul.mubr.bf16.gmra.mxu0 %v1950
    %v2186 = vpop.f32.mrf.mxu0
    %v2187 = vadd.f32 %v2006, %v2186
    %v2188 = vpop.f32.mrf.mxu0
    %v2189 = vpop.f32.mrf.mxu0
    %v2190 = vpop.f32.mrf.mxu0
    %2191 = vdwg.mxu0
    %2192 = vmatprep.subr.bf16.mxu0 0
    %2193 = vmatpush1.bf16.msra.mxu0 %v2127
    %2194 = vmatprep.subr.bf16.mxu0 0
    %2195 = vmatpush1.bf16.msra.mxu0 %v2126
    %2196 = vmatprep.subr.bf16.mxu0 0
    %2197 = vmatpush1.bf16.msra.mxu0 %v2125
    %2198 = vmatprep.subr.bf16.mxu0 0
    %2199 = vmatpush1.bf16.msra.mxu0 %v2124
    %2200 = vmatprep.subr.bf16.mxu0 0
    %2201 = vmatpush1.bf16.msra.mxu0 %v2123
    %2202 = vmatprep.subr.bf16.mxu0 0
    %2203 = vmatpush1.bf16.msra.mxu0 %v2122
    %2204 = vmatprep.subr.bf16.mxu0 0
    %2205 = vmatpush1.bf16.msra.mxu0 %v2121
    %2206 = vmatprep.subr.bf16.mxu0 0
    %2207 = vmatpush1.bf16.msra.mxu0 %v2120
    %2208 = vmatprep.subr.bf16.mxu0 0
    %2209 = vmatpush2.bf16.msra.mxu0 0
    %2210 = vmatprep.subr.bf16.mxu0 0
    %2211 = vmatpush2.bf16.msra.mxu0 0
    %2212 = vmatprep.subr.bf16.mxu0 0
    %2213 = vmatpush2.bf16.msra.mxu0 0
    %2214 = vmatprep.subr.bf16.mxu0 0
    %2215 = vmatpush2.bf16.msra.mxu0 0
    %2216 = vmatprep.subr.bf16.mxu0 0
    %2217 = vmatpush2.bf16.msra.mxu0 0
    %2218 = vmatprep.subr.bf16.mxu0 0
    %2219 = vmatpush2.bf16.msra.mxu0 0
    %2220 = vmatprep.subr.bf16.mxu0 0
    %2221 = vmatpush2.bf16.msra.mxu0 0
    %2222 = vmatprep.subr.bf16.mxu0 0
    %2223 = vmatpush2.bf16.msra.mxu0 0
    %2224 = vmatprep.mubr.bf16.mxu0 0
    %2225 = vmatmul.mubr.bf16.gmra.mxu0 %v1952
    %v2226 = vpop.f32.mrf.mxu0
    %v2227 = vadd.f32 %v2187, %v2226
    %v2228 = vpop.f32.mrf.mxu0
    %v2229 = vpop.f32.mrf.mxu0
    %v2230 = vpop.f32.mrf.mxu0
    %2231 = vdwg.mxu0
    %v2232 = vtanh.pop %v2227
    %s2233 = smul.u32 4, 512
    %s2234 = smul.u32 %s2233, 1
    %s2235 = sshll.u32 %s2234, 4
    %2236 = dma.done [#allocation3], %s2235
    %v2237 = vld [vmem:[#allocation2] sm:$0xf]
    %v2238 = vld [vmem:[#allocation2 + $0x4] sm:$0xf]
    %v2239 = vld [vmem:[#allocation2 + $0x8] sm:$0xf]
    %v2240 = vld [vmem:[#allocation2 + $0xc] sm:$0xf]
    %v2241 = vld [vmem:[#allocation2 + $0x10] sm:$0xf]
    %v2242 = vld [vmem:[#allocation2 + $0x14] sm:$0xf]
    %v2243 = vld [vmem:[#allocation2 + $0x18] sm:$0xf]
    %v2244 = vld [vmem:[#allocation2 + $0x1c] sm:$0xf]
    %v2245 = vld [vmem:[#allocation2 + $0x20] sm:$0xf]
    %v2246 = vld [vmem:[#allocation2 + $0x24] sm:$0xf]
    %v2247 = vld [vmem:[#allocation2 + $0x28] sm:$0xf]
    %v2248 = vld [vmem:[#allocation2 + $0x2c] sm:$0xf]
    %v2249 = vld [vmem:[#allocation2 + $0x30] sm:$0xf]
    %v2250 = vld [vmem:[#allocation2 + $0x34] sm:$0xf]
    %v2251 = vld [vmem:[#allocation2 + $0x38] sm:$0xf]
    %v2252 = vld [vmem:[#allocation2 + $0x3c] sm:$0xf]
    %v2253 = vld [vmem:[#allocation2 + $0x40] sm:$0xf]
    %v2254 = vld [vmem:[#allocation2 + $0x44] sm:$0xf]
    %v2255 = vld [vmem:[#allocation2 + $0x48] sm:$0xf]
    %v2256 = vld [vmem:[#allocation2 + $0x4c] sm:$0xf]
    %v2257 = vld [vmem:[#allocation2 + $0x50] sm:$0xf]
    %v2258 = vld [vmem:[#allocation2 + $0x54] sm:$0xf]
    %v2259 = vld [vmem:[#allocation2 + $0x58] sm:$0xf]
    %v2260 = vld [vmem:[#allocation2 + $0x5c] sm:$0xf]
    %v2261 = vld [vmem:[#allocation2 + $0x60] sm:$0xf]
    %v2262 = vld [vmem:[#allocation2 + $0x64] sm:$0xf]
    %v2263 = vld [vmem:[#allocation2 + $0x68] sm:$0xf]
    %v2264 = vld [vmem:[#allocation2 + $0x6c] sm:$0xf]
    %v2265 = vld [vmem:[#allocation2 + $0x70] sm:$0xf]
    %v2266 = vld [vmem:[#allocation2 + $0x74] sm:$0xf]
    %v2267 = vld [vmem:[#allocation2 + $0x78] sm:$0xf]
    %v2268 = vld [vmem:[#allocation2 + $0x7c] sm:$0xf]
    %v2269 = vld [vmem:[#allocation2 + $0x80] sm:$0xf]
    %v2270 = vld [vmem:[#allocation2 + $0x84] sm:$0xf]
    %v2271 = vld [vmem:[#allocation2 + $0x88] sm:$0xf]
    %v2272 = vld [vmem:[#allocation2 + $0x8c] sm:$0xf]
    %v2273 = vld [vmem:[#allocation2 + $0x90] sm:$0xf]
    %v2274 = vld [vmem:[#allocation2 + $0x94] sm:$0xf]
    %v2275 = vld [vmem:[#allocation2 + $0x98] sm:$0xf]
    %v2276 = vld [vmem:[#allocation2 + $0x9c] sm:$0xf]
    %v2277 = vld [vmem:[#allocation2 + $0xa0] sm:$0xf]
    %v2278 = vld [vmem:[#allocation2 + $0xa4] sm:$0xf]
    %v2279 = vld [vmem:[#allocation2 + $0xa8] sm:$0xf]
    %v2280 = vld [vmem:[#allocation2 + $0xac] sm:$0xf]
    %v2281 = vld [vmem:[#allocation2 + $0xb0] sm:$0xf]
    %v2282 = vld [vmem:[#allocation2 + $0xb4] sm:$0xf]
    %v2283 = vld [vmem:[#allocation2 + $0xb8] sm:$0xf]
    %v2284 = vld [vmem:[#allocation2 + $0xbc] sm:$0xf]
    %v2285 = vld [vmem:[#allocation2 + $0xc0] sm:$0xf]
    %v2286 = vld [vmem:[#allocation2 + $0xc4] sm:$0xf]
    %v2287 = vld [vmem:[#allocation2 + $0xc8] sm:$0xf]
    %v2288 = vld [vmem:[#allocation2 + $0xcc] sm:$0xf]
    %v2289 = vld [vmem:[#allocation2 + $0xd0] sm:$0xf]
    %v2290 = vld [vmem:[#allocation2 + $0xd4] sm:$0xf]
    %v2291 = vld [vmem:[#allocation2 + $0xd8] sm:$0xf]
    %v2292 = vld [vmem:[#allocation2 + $0xdc] sm:$0xf]
    %v2293 = vld [vmem:[#allocation2 + $0xe0] sm:$0xf]
    %v2294 = vld [vmem:[#allocation2 + $0xe4] sm:$0xf]
    %v2295 = vld [vmem:[#allocation2 + $0xe8] sm:$0xf]
    %v2296 = vld [vmem:[#allocation2 + $0xec] sm:$0xf]
    %v2297 = vld [vmem:[#allocation2 + $0xf0] sm:$0xf]
    %v2298 = vld [vmem:[#allocation2 + $0xf4] sm:$0xf]
    %v2299 = vld [vmem:[#allocation2 + $0xf8] sm:$0xf]
    %v2300 = vld [vmem:[#allocation2 + $0xfc] sm:$0xf]
    %v2301 = vld [vmem:[#allocation2 + $0x100] sm:$0xf]
    %v2302 = vld [vmem:[#allocation2 + $0x104] sm:$0xf]
    %v2303 = vld [vmem:[#allocation2 + $0x108] sm:$0xf]
    %v2304 = vld [vmem:[#allocation2 + $0x10c] sm:$0xf]
    %v2305 = vld [vmem:[#allocation2 + $0x110] sm:$0xf]
    %v2306 = vld [vmem:[#allocation2 + $0x114] sm:$0xf]
    %v2307 = vld [vmem:[#allocation2 + $0x118] sm:$0xf]
    %v2308 = vld [vmem:[#allocation2 + $0x11c] sm:$0xf]
    %v2309 = vld [vmem:[#allocation2 + $0x120] sm:$0xf]
    %v2310 = vld [vmem:[#allocation2 + $0x124] sm:$0xf]
    %v2311 = vld [vmem:[#allocation2 + $0x128] sm:$0xf]
    %v2312 = vld [vmem:[#allocation2 + $0x12c] sm:$0xf]
    %v2313 = vld [vmem:[#allocation2 + $0x130] sm:$0xf]
    %v2314 = vld [vmem:[#allocation2 + $0x134] sm:$0xf]
    %v2315 = vld [vmem:[#allocation2 + $0x138] sm:$0xf]
    %v2316 = vld [vmem:[#allocation2 + $0x13c] sm:$0xf]
    %v2317 = vld [vmem:[#allocation2 + $0x140] sm:$0xf]
    %v2318 = vld [vmem:[#allocation2 + $0x144] sm:$0xf]
    %v2319 = vld [vmem:[#allocation2 + $0x148] sm:$0xf]
    %v2320 = vld [vmem:[#allocation2 + $0x14c] sm:$0xf]
    %v2321 = vld [vmem:[#allocation2 + $0x150] sm:$0xf]
    %v2322 = vld [vmem:[#allocation2 + $0x154] sm:$0xf]
    %v2323 = vld [vmem:[#allocation2 + $0x158] sm:$0xf]
    %v2324 = vld [vmem:[#allocation2 + $0x15c] sm:$0xf]
    %v2325 = vld [vmem:[#allocation2 + $0x160] sm:$0xf]
    %v2326 = vld [vmem:[#allocation2 + $0x164] sm:$0xf]
    %v2327 = vld [vmem:[#allocation2 + $0x168] sm:$0xf]
    %v2328 = vld [vmem:[#allocation2 + $0x16c] sm:$0xf]
    %v2329 = vld [vmem:[#allocation2 + $0x170] sm:$0xf]
    %v2330 = vld [vmem:[#allocation2 + $0x174] sm:$0xf]
    %v2331 = vld [vmem:[#allocation2 + $0x178] sm:$0xf]
    %v2332 = vld [vmem:[#allocation2 + $0x17c] sm:$0xf]
    %v2333 = vld [vmem:[#allocation2 + $0x180] sm:$0xf]
    %v2334 = vld [vmem:[#allocation2 + $0x184] sm:$0xf]
    %v2335 = vld [vmem:[#allocation2 + $0x188] sm:$0xf]
    %v2336 = vld [vmem:[#allocation2 + $0x18c] sm:$0xf]
    %v2337 = vld [vmem:[#allocation2 + $0x190] sm:$0xf]
    %v2338 = vld [vmem:[#allocation2 + $0x194] sm:$0xf]
    %v2339 = vld [vmem:[#allocation2 + $0x198] sm:$0xf]
    %v2340 = vld [vmem:[#allocation2 + $0x19c] sm:$0xf]
    %v2341 = vld [vmem:[#allocation2 + $0x1a0] sm:$0xf]
    %v2342 = vld [vmem:[#allocation2 + $0x1a4] sm:$0xf]
    %v2343 = vld [vmem:[#allocation2 + $0x1a8] sm:$0xf]
    %v2344 = vld [vmem:[#allocation2 + $0x1ac] sm:$0xf]
    %v2345 = vld [vmem:[#allocation2 + $0x1b0] sm:$0xf]
    %v2346 = vld [vmem:[#allocation2 + $0x1b4] sm:$0xf]
    %v2347 = vld [vmem:[#allocation2 + $0x1b8] sm:$0xf]
    %v2348 = vld [vmem:[#allocation2 + $0x1bc] sm:$0xf]
    %v2349 = vld [vmem:[#allocation2 + $0x1c0] sm:$0xf]
    %v2350 = vld [vmem:[#allocation2 + $0x1c4] sm:$0xf]
    %v2351 = vld [vmem:[#allocation2 + $0x1c8] sm:$0xf]
    %v2352 = vld [vmem:[#allocation2 + $0x1cc] sm:$0xf]
    %v2353 = vld [vmem:[#allocation2 + $0x1d0] sm:$0xf]
    %v2354 = vld [vmem:[#allocation2 + $0x1d4] sm:$0xf]
    %v2355 = vld [vmem:[#allocation2 + $0x1d8] sm:$0xf]
    %v2356 = vld [vmem:[#allocation2 + $0x1dc] sm:$0xf]
    %v2357 = vld [vmem:[#allocation2 + $0x1e0] sm:$0xf]
    %v2358 = vld [vmem:[#allocation2 + $0x1e4] sm:$0xf]
    %v2359 = vld [vmem:[#allocation2 + $0x1e8] sm:$0xf]
    %v2360 = vld [vmem:[#allocation2 + $0x1ec] sm:$0xf]
    %v2361 = vld [vmem:[#allocation2 + $0x1f0] sm:$0xf]
    %v2362 = vld [vmem:[#allocation2 + $0x1f4] sm:$0xf]
    %v2363 = vld [vmem:[#allocation2 + $0x1f8] sm:$0xf]
    %v2364 = vld [vmem:[#allocation2 + $0x1fc] sm:$0xf]
    %v2365 = vld [vmem:[#allocation2 + $0x200] sm:$0xf]
    %v2366 = vld [vmem:[#allocation2 + $0x204] sm:$0xf]
    %v2367 = vld [vmem:[#allocation2 + $0x208] sm:$0xf]
    %v2368 = vld [vmem:[#allocation2 + $0x20c] sm:$0xf]
    %v2369 = vld [vmem:[#allocation2 + $0x210] sm:$0xf]
    %v2370 = vld [vmem:[#allocation2 + $0x214] sm:$0xf]
    %v2371 = vld [vmem:[#allocation2 + $0x218] sm:$0xf]
    %v2372 = vld [vmem:[#allocation2 + $0x21c] sm:$0xf]
    %v2373 = vld [vmem:[#allocation2 + $0x220] sm:$0xf]
    %v2374 = vld [vmem:[#allocation2 + $0x224] sm:$0xf]
    %v2375 = vld [vmem:[#allocation2 + $0x228] sm:$0xf]
    %v2376 = vld [vmem:[#allocation2 + $0x22c] sm:$0xf]
    %v2377 = vld [vmem:[#allocation2 + $0x230] sm:$0xf]
    %v2378 = vld [vmem:[#allocation2 + $0x234] sm:$0xf]
    %v2379 = vld [vmem:[#allocation2 + $0x238] sm:$0xf]
    %v2380 = vld [vmem:[#allocation2 + $0x23c] sm:$0xf]
    %v2381 = vld [vmem:[#allocation2 + $0x240] sm:$0xf]
    %v2382 = vld [vmem:[#allocation2 + $0x244] sm:$0xf]
    %v2383 = vld [vmem:[#allocation2 + $0x248] sm:$0xf]
    %v2384 = vld [vmem:[#allocation2 + $0x24c] sm:$0xf]
    %v2385 = vld [vmem:[#allocation2 + $0x250] sm:$0xf]
    %v2386 = vld [vmem:[#allocation2 + $0x254] sm:$0xf]
    %v2387 = vld [vmem:[#allocation2 + $0x258] sm:$0xf]
    %v2388 = vld [vmem:[#allocation2 + $0x25c] sm:$0xf]
    %v2389 = vld [vmem:[#allocation2 + $0x260] sm:$0xf]
    %v2390 = vld [vmem:[#allocation2 + $0x264] sm:$0xf]
    %v2391 = vld [vmem:[#allocation2 + $0x268] sm:$0xf]
    %v2392 = vld [vmem:[#allocation2 + $0x26c] sm:$0xf]
    %v2393 = vld [vmem:[#allocation2 + $0x270] sm:$0xf]
    %v2394 = vld [vmem:[#allocation2 + $0x274] sm:$0xf]
    %v2395 = vld [vmem:[#allocation2 + $0x278] sm:$0xf]
    %v2396 = vld [vmem:[#allocation2 + $0x27c] sm:$0xf]
    %v2397 = vld [vmem:[#allocation2 + $0x280] sm:$0xf]
    %v2398 = vld [vmem:[#allocation2 + $0x284] sm:$0xf]
    %v2399 = vld [vmem:[#allocation2 + $0x288] sm:$0xf]
    %v2400 = vld [vmem:[#allocation2 + $0x28c] sm:$0xf]
    %v2401 = vld [vmem:[#allocation2 + $0x290] sm:$0xf]
    %v2402 = vld [vmem:[#allocation2 + $0x294] sm:$0xf]
    %v2403 = vld [vmem:[#allocation2 + $0x298] sm:$0xf]
    %v2404 = vld [vmem:[#allocation2 + $0x29c] sm:$0xf]
    %v2405 = vld [vmem:[#allocation2 + $0x2a0] sm:$0xf]
    %v2406 = vld [vmem:[#allocation2 + $0x2a4] sm:$0xf]
    %v2407 = vld [vmem:[#allocation2 + $0x2a8] sm:$0xf]
    %v2408 = vld [vmem:[#allocation2 + $0x2ac] sm:$0xf]
    %v2409 = vld [vmem:[#allocation2 + $0x2b0] sm:$0xf]
    %v2410 = vld [vmem:[#allocation2 + $0x2b4] sm:$0xf]
    %v2411 = vld [vmem:[#allocation2 + $0x2b8] sm:$0xf]
    %v2412 = vld [vmem:[#allocation2 + $0x2bc] sm:$0xf]
    %v2413 = vld [vmem:[#allocation2 + $0x2c0] sm:$0xf]
    %v2414 = vld [vmem:[#allocation2 + $0x2c4] sm:$0xf]
    %v2415 = vld [vmem:[#allocation2 + $0x2c8] sm:$0xf]
    %v2416 = vld [vmem:[#allocation2 + $0x2cc] sm:$0xf]
    %v2417 = vld [vmem:[#allocation2 + $0x2d0] sm:$0xf]
    %v2418 = vld [vmem:[#allocation2 + $0x2d4] sm:$0xf]
    %v2419 = vld [vmem:[#allocation2 + $0x2d8] sm:$0xf]
    %v2420 = vld [vmem:[#allocation2 + $0x2dc] sm:$0xf]
    %v2421 = vld [vmem:[#allocation2 + $0x2e0] sm:$0xf]
    %v2422 = vld [vmem:[#allocation2 + $0x2e4] sm:$0xf]
    %v2423 = vld [vmem:[#allocation2 + $0x2e8] sm:$0xf]
    %v2424 = vld [vmem:[#allocation2 + $0x2ec] sm:$0xf]
    %v2425 = vld [vmem:[#allocation2 + $0x2f0] sm:$0xf]
    %v2426 = vld [vmem:[#allocation2 + $0x2f4] sm:$0xf]
    %v2427 = vld [vmem:[#allocation2 + $0x2f8] sm:$0xf]
    %v2428 = vld [vmem:[#allocation2 + $0x2fc] sm:$0xf]
    %v2429 = vld [vmem:[#allocation2 + $0x300] sm:$0xf]
    %v2430 = vld [vmem:[#allocation2 + $0x304] sm:$0xf]
    %v2431 = vld [vmem:[#allocation2 + $0x308] sm:$0xf]
    %v2432 = vld [vmem:[#allocation2 + $0x30c] sm:$0xf]
    %v2433 = vld [vmem:[#allocation2 + $0x310] sm:$0xf]
    %v2434 = vld [vmem:[#allocation2 + $0x314] sm:$0xf]
    %v2435 = vld [vmem:[#allocation2 + $0x318] sm:$0xf]
    %v2436 = vld [vmem:[#allocation2 + $0x31c] sm:$0xf]
    %v2437 = vld [vmem:[#allocation2 + $0x320] sm:$0xf]
    %v2438 = vld [vmem:[#allocation2 + $0x324] sm:$0xf]
    %v2439 = vld [vmem:[#allocation2 + $0x328] sm:$0xf]
    %v2440 = vld [vmem:[#allocation2 + $0x32c] sm:$0xf]
    %v2441 = vld [vmem:[#allocation2 + $0x330] sm:$0xf]
    %v2442 = vld [vmem:[#allocation2 + $0x334] sm:$0xf]
    %v2443 = vld [vmem:[#allocation2 + $0x338] sm:$0xf]
    %v2444 = vld [vmem:[#allocation2 + $0x33c] sm:$0xf]
    %v2445 = vld [vmem:[#allocation2 + $0x340] sm:$0xf]
    %v2446 = vld [vmem:[#allocation2 + $0x344] sm:$0xf]
    %v2447 = vld [vmem:[#allocation2 + $0x348] sm:$0xf]
    %v2448 = vld [vmem:[#allocation2 + $0x34c] sm:$0xf]
    %v2449 = vld [vmem:[#allocation2 + $0x350] sm:$0xf]
    %v2450 = vld [vmem:[#allocation2 + $0x354] sm:$0xf]
    %v2451 = vld [vmem:[#allocation2 + $0x358] sm:$0xf]
    %v2452 = vld [vmem:[#allocation2 + $0x35c] sm:$0xf]
    %v2453 = vld [vmem:[#allocation2 + $0x360] sm:$0xf]
    %v2454 = vld [vmem:[#allocation2 + $0x364] sm:$0xf]
    %v2455 = vld [vmem:[#allocation2 + $0x368] sm:$0xf]
    %v2456 = vld [vmem:[#allocation2 + $0x36c] sm:$0xf]
    %v2457 = vld [vmem:[#allocation2 + $0x370] sm:$0xf]
    %v2458 = vld [vmem:[#allocation2 + $0x374] sm:$0xf]
    %v2459 = vld [vmem:[#allocation2 + $0x378] sm:$0xf]
    %v2460 = vld [vmem:[#allocation2 + $0x37c] sm:$0xf]
    %v2461 = vld [vmem:[#allocation2 + $0x380] sm:$0xf]
    %v2462 = vld [vmem:[#allocation2 + $0x384] sm:$0xf]
    %v2463 = vld [vmem:[#allocation2 + $0x388] sm:$0xf]
    %v2464 = vld [vmem:[#allocation2 + $0x38c] sm:$0xf]
    %v2465 = vld [vmem:[#allocation2 + $0x390] sm:$0xf]
    %v2466 = vld [vmem:[#allocation2 + $0x394] sm:$0xf]
    %v2467 = vld [vmem:[#allocation2 + $0x398] sm:$0xf]
    %v2468 = vld [vmem:[#allocation2 + $0x39c] sm:$0xf]
    %v2469 = vld [vmem:[#allocation2 + $0x3a0] sm:$0xf]
    %v2470 = vld [vmem:[#allocation2 + $0x3a4] sm:$0xf]
    %v2471 = vld [vmem:[#allocation2 + $0x3a8] sm:$0xf]
    %v2472 = vld [vmem:[#allocation2 + $0x3ac] sm:$0xf]
    %v2473 = vld [vmem:[#allocation2 + $0x3b0] sm:$0xf]
    %v2474 = vld [vmem:[#allocation2 + $0x3b4] sm:$0xf]
    %v2475 = vld [vmem:[#allocation2 + $0x3b8] sm:$0xf]
    %v2476 = vld [vmem:[#allocation2 + $0x3bc] sm:$0xf]
    %v2477 = vld [vmem:[#allocation2 + $0x3c0] sm:$0xf]
    %v2478 = vld [vmem:[#allocation2 + $0x3c4] sm:$0xf]
    %v2479 = vld [vmem:[#allocation2 + $0x3c8] sm:$0xf]
    %v2480 = vld [vmem:[#allocation2 + $0x3cc] sm:$0xf]
    %v2481 = vld [vmem:[#allocation2 + $0x3d0] sm:$0xf]
    %v2482 = vld [vmem:[#allocation2 + $0x3d4] sm:$0xf]
    %v2483 = vld [vmem:[#allocation2 + $0x3d8] sm:$0xf]
    %v2484 = vld [vmem:[#allocation2 + $0x3dc] sm:$0xf]
    %v2485 = vld [vmem:[#allocation2 + $0x3e0] sm:$0xf]
    %v2486 = vld [vmem:[#allocation2 + $0x3e4] sm:$0xf]
    %v2487 = vld [vmem:[#allocation2 + $0x3e8] sm:$0xf]
    %v2488 = vld [vmem:[#allocation2 + $0x3ec] sm:$0xf]
    %v2489 = vld [vmem:[#allocation2 + $0x3f0] sm:$0xf]
    %v2490 = vld [vmem:[#allocation2 + $0x3f4] sm:$0xf]
    %v2491 = vld [vmem:[#allocation2 + $0x3f8] sm:$0xf]
    %v2492 = vld [vmem:[#allocation2 + $0x3fc] sm:$0xf]
    %v2493 = vld [vmem:[#allocation2 + $0x400] sm:$0xf]
    %v2494 = vld [vmem:[#allocation2 + $0x404] sm:$0xf]
    %v2495 = vld [vmem:[#allocation2 + $0x408] sm:$0xf]
    %v2496 = vld [vmem:[#allocation2 + $0x40c] sm:$0xf]
    %v2497 = vld [vmem:[#allocation2 + $0x410] sm:$0xf]
    %v2498 = vld [vmem:[#allocation2 + $0x414] sm:$0xf]
    %v2499 = vld [vmem:[#allocation2 + $0x418] sm:$0xf]
    %v2500 = vld [vmem:[#allocation2 + $0x41c] sm:$0xf]
    %v2501 = vld [vmem:[#allocation2 + $0x420] sm:$0xf]
    %v2502 = vld [vmem:[#allocation2 + $0x424] sm:$0xf]
    %v2503 = vld [vmem:[#allocation2 + $0x428] sm:$0xf]
    %v2504 = vld [vmem:[#allocation2 + $0x42c] sm:$0xf]
    %v2505 = vld [vmem:[#allocation2 + $0x430] sm:$0xf]
    %v2506 = vld [vmem:[#allocation2 + $0x434] sm:$0xf]
    %v2507 = vld [vmem:[#allocation2 + $0x438] sm:$0xf]
    %v2508 = vld [vmem:[#allocation2 + $0x43c] sm:$0xf]
    %v2509 = vld [vmem:[#allocation2 + $0x440] sm:$0xf]
    %v2510 = vld [vmem:[#allocation2 + $0x444] sm:$0xf]
    %v2511 = vld [vmem:[#allocation2 + $0x448] sm:$0xf]
    %v2512 = vld [vmem:[#allocation2 + $0x44c] sm:$0xf]
    %v2513 = vld [vmem:[#allocation2 + $0x450] sm:$0xf]
    %v2514 = vld [vmem:[#allocation2 + $0x454] sm:$0xf]
    %v2515 = vld [vmem:[#allocation2 + $0x458] sm:$0xf]
    %v2516 = vld [vmem:[#allocation2 + $0x45c] sm:$0xf]
    %v2517 = vld [vmem:[#allocation2 + $0x460] sm:$0xf]
    %v2518 = vld [vmem:[#allocation2 + $0x464] sm:$0xf]
    %v2519 = vld [vmem:[#allocation2 + $0x468] sm:$0xf]
    %v2520 = vld [vmem:[#allocation2 + $0x46c] sm:$0xf]
    %v2521 = vld [vmem:[#allocation2 + $0x470] sm:$0xf]
    %v2522 = vld [vmem:[#allocation2 + $0x474] sm:$0xf]
    %v2523 = vld [vmem:[#allocation2 + $0x478] sm:$0xf]
    %v2524 = vld [vmem:[#allocation2 + $0x47c] sm:$0xf]
    %v2525 = vld [vmem:[#allocation2 + $0x480] sm:$0xf]
    %v2526 = vld [vmem:[#allocation2 + $0x484] sm:$0xf]
    %v2527 = vld [vmem:[#allocation2 + $0x488] sm:$0xf]
    %v2528 = vld [vmem:[#allocation2 + $0x48c] sm:$0xf]
    %v2529 = vld [vmem:[#allocation2 + $0x490] sm:$0xf]
    %v2530 = vld [vmem:[#allocation2 + $0x494] sm:$0xf]
    %v2531 = vld [vmem:[#allocation2 + $0x498] sm:$0xf]
    %v2532 = vld [vmem:[#allocation2 + $0x49c] sm:$0xf]
    %v2533 = vld [vmem:[#allocation2 + $0x4a0] sm:$0xf]
    %v2534 = vld [vmem:[#allocation2 + $0x4a4] sm:$0xf]
    %v2535 = vld [vmem:[#allocation2 + $0x4a8] sm:$0xf]
    %v2536 = vld [vmem:[#allocation2 + $0x4ac] sm:$0xf]
    %v2537 = vld [vmem:[#allocation2 + $0x4b0] sm:$0xf]
    %v2538 = vld [vmem:[#allocation2 + $0x4b4] sm:$0xf]
    %v2539 = vld [vmem:[#allocation2 + $0x4b8] sm:$0xf]
    %v2540 = vld [vmem:[#allocation2 + $0x4bc] sm:$0xf]
    %v2541 = vld [vmem:[#allocation2 + $0x4c0] sm:$0xf]
    %v2542 = vld [vmem:[#allocation2 + $0x4c4] sm:$0xf]
    %v2543 = vld [vmem:[#allocation2 + $0x4c8] sm:$0xf]
    %v2544 = vld [vmem:[#allocation2 + $0x4cc] sm:$0xf]
    %v2545 = vld [vmem:[#allocation2 + $0x4d0] sm:$0xf]
    %v2546 = vld [vmem:[#allocation2 + $0x4d4] sm:$0xf]
    %v2547 = vld [vmem:[#allocation2 + $0x4d8] sm:$0xf]
    %v2548 = vld [vmem:[#allocation2 + $0x4dc] sm:$0xf]
    %v2549 = vld [vmem:[#allocation2 + $0x4e0] sm:$0xf]
    %v2550 = vld [vmem:[#allocation2 + $0x4e4] sm:$0xf]
    %v2551 = vld [vmem:[#allocation2 + $0x4e8] sm:$0xf]
    %v2552 = vld [vmem:[#allocation2 + $0x4ec] sm:$0xf]
    %v2553 = vld [vmem:[#allocation2 + $0x4f0] sm:$0xf]
    %v2554 = vld [vmem:[#allocation2 + $0x4f4] sm:$0xf]
    %v2555 = vld [vmem:[#allocation2 + $0x4f8] sm:$0xf]
    %v2556 = vld [vmem:[#allocation2 + $0x4fc] sm:$0xf]
    %v2557 = vld [vmem:[#allocation2 + $0x500] sm:$0xf]
    %v2558 = vld [vmem:[#allocation2 + $0x504] sm:$0xf]
    %v2559 = vld [vmem:[#allocation2 + $0x508] sm:$0xf]
    %v2560 = vld [vmem:[#allocation2 + $0x50c] sm:$0xf]
    %v2561 = vld [vmem:[#allocation2 + $0x510] sm:$0xf]
    %v2562 = vld [vmem:[#allocation2 + $0x514] sm:$0xf]
    %v2563 = vld [vmem:[#allocation2 + $0x518] sm:$0xf]
    %v2564 = vld [vmem:[#allocation2 + $0x51c] sm:$0xf]
    %v2565 = vld [vmem:[#allocation2 + $0x520] sm:$0xf]
    %v2566 = vld [vmem:[#allocation2 + $0x524] sm:$0xf]
    %v2567 = vld [vmem:[#allocation2 + $0x528] sm:$0xf]
    %v2568 = vld [vmem:[#allocation2 + $0x52c] sm:$0xf]
    %v2569 = vld [vmem:[#allocation2 + $0x530] sm:$0xf]
    %v2570 = vld [vmem:[#allocation2 + $0x534] sm:$0xf]
    %v2571 = vld [vmem:[#allocation2 + $0x538] sm:$0xf]
    %v2572 = vld [vmem:[#allocation2 + $0x53c] sm:$0xf]
    %v2573 = vld [vmem:[#allocation2 + $0x540] sm:$0xf]
    %v2574 = vld [vmem:[#allocation2 + $0x544] sm:$0xf]
    %v2575 = vld [vmem:[#allocation2 + $0x548] sm:$0xf]
    %v2576 = vld [vmem:[#allocation2 + $0x54c] sm:$0xf]
    %v2577 = vld [vmem:[#allocation2 + $0x550] sm:$0xf]
    %v2578 = vld [vmem:[#allocation2 + $0x554] sm:$0xf]
    %v2579 = vld [vmem:[#allocation2 + $0x558] sm:$0xf]
    %v2580 = vld [vmem:[#allocation2 + $0x55c] sm:$0xf]
    %v2581 = vld [vmem:[#allocation2 + $0x560] sm:$0xf]
    %v2582 = vld [vmem:[#allocation2 + $0x564] sm:$0xf]
    %v2583 = vld [vmem:[#allocation2 + $0x568] sm:$0xf]
    %v2584 = vld [vmem:[#allocation2 + $0x56c] sm:$0xf]
    %v2585 = vld [vmem:[#allocation2 + $0x570] sm:$0xf]
    %v2586 = vld [vmem:[#allocation2 + $0x574] sm:$0xf]
    %v2587 = vld [vmem:[#allocation2 + $0x578] sm:$0xf]
    %v2588 = vld [vmem:[#allocation2 + $0x57c] sm:$0xf]
    %v2589 = vld [vmem:[#allocation2 + $0x580] sm:$0xf]
    %v2590 = vld [vmem:[#allocation2 + $0x584] sm:$0xf]
    %v2591 = vld [vmem:[#allocation2 + $0x588] sm:$0xf]
    %v2592 = vld [vmem:[#allocation2 + $0x58c] sm:$0xf]
    %v2593 = vld [vmem:[#allocation2 + $0x590] sm:$0xf]
    %v2594 = vld [vmem:[#allocation2 + $0x594] sm:$0xf]
    %v2595 = vld [vmem:[#allocation2 + $0x598] sm:$0xf]
    %v2596 = vld [vmem:[#allocation2 + $0x59c] sm:$0xf]
    %v2597 = vld [vmem:[#allocation2 + $0x5a0] sm:$0xf]
    %v2598 = vld [vmem:[#allocation2 + $0x5a4] sm:$0xf]
    %v2599 = vld [vmem:[#allocation2 + $0x5a8] sm:$0xf]
    %v2600 = vld [vmem:[#allocation2 + $0x5ac] sm:$0xf]
    %v2601 = vld [vmem:[#allocation2 + $0x5b0] sm:$0xf]
    %v2602 = vld [vmem:[#allocation2 + $0x5b4] sm:$0xf]
    %v2603 = vld [vmem:[#allocation2 + $0x5b8] sm:$0xf]
    %v2604 = vld [vmem:[#allocation2 + $0x5bc] sm:$0xf]
    %v2605 = vld [vmem:[#allocation2 + $0x5c0] sm:$0xf]
    %v2606 = vld [vmem:[#allocation2 + $0x5c4] sm:$0xf]
    %v2607 = vld [vmem:[#allocation2 + $0x5c8] sm:$0xf]
    %v2608 = vld [vmem:[#allocation2 + $0x5cc] sm:$0xf]
    %v2609 = vld [vmem:[#allocation2 + $0x5d0] sm:$0xf]
    %v2610 = vld [vmem:[#allocation2 + $0x5d4] sm:$0xf]
    %v2611 = vld [vmem:[#allocation2 + $0x5d8] sm:$0xf]
    %v2612 = vld [vmem:[#allocation2 + $0x5dc] sm:$0xf]
    %v2613 = vld [vmem:[#allocation2 + $0x5e0] sm:$0xf]
    %v2614 = vld [vmem:[#allocation2 + $0x5e4] sm:$0xf]
    %v2615 = vld [vmem:[#allocation2 + $0x5e8] sm:$0xf]
    %v2616 = vld [vmem:[#allocation2 + $0x5ec] sm:$0xf]
    %v2617 = vld [vmem:[#allocation2 + $0x5f0] sm:$0xf]
    %v2618 = vld [vmem:[#allocation2 + $0x5f4] sm:$0xf]
    %v2619 = vld [vmem:[#allocation2 + $0x5f8] sm:$0xf]
    %v2620 = vld [vmem:[#allocation2 + $0x5fc] sm:$0xf]
    %v2621 = vld [vmem:[#allocation2 + $0x600] sm:$0xf]
    %v2622 = vld [vmem:[#allocation2 + $0x604] sm:$0xf]
    %v2623 = vld [vmem:[#allocation2 + $0x608] sm:$0xf]
    %v2624 = vld [vmem:[#allocation2 + $0x60c] sm:$0xf]
    %v2625 = vld [vmem:[#allocation2 + $0x610] sm:$0xf]
    %v2626 = vld [vmem:[#allocation2 + $0x614] sm:$0xf]
    %v2627 = vld [vmem:[#allocation2 + $0x618] sm:$0xf]
    %v2628 = vld [vmem:[#allocation2 + $0x61c] sm:$0xf]
    %v2629 = vld [vmem:[#allocation2 + $0x620] sm:$0xf]
    %v2630 = vld [vmem:[#allocation2 + $0x624] sm:$0xf]
    %v2631 = vld [vmem:[#allocation2 + $0x628] sm:$0xf]
    %v2632 = vld [vmem:[#allocation2 + $0x62c] sm:$0xf]
    %v2633 = vld [vmem:[#allocation2 + $0x630] sm:$0xf]
    %v2634 = vld [vmem:[#allocation2 + $0x634] sm:$0xf]
    %v2635 = vld [vmem:[#allocation2 + $0x638] sm:$0xf]
    %v2636 = vld [vmem:[#allocation2 + $0x63c] sm:$0xf]
    %v2637 = vld [vmem:[#allocation2 + $0x640] sm:$0xf]
    %v2638 = vld [vmem:[#allocation2 + $0x644] sm:$0xf]
    %v2639 = vld [vmem:[#allocation2 + $0x648] sm:$0xf]
    %v2640 = vld [vmem:[#allocation2 + $0x64c] sm:$0xf]
    %v2641 = vld [vmem:[#allocation2 + $0x650] sm:$0xf]
    %v2642 = vld [vmem:[#allocation2 + $0x654] sm:$0xf]
    %v2643 = vld [vmem:[#allocation2 + $0x658] sm:$0xf]
    %v2644 = vld [vmem:[#allocation2 + $0x65c] sm:$0xf]
    %v2645 = vld [vmem:[#allocation2 + $0x660] sm:$0xf]
    %v2646 = vld [vmem:[#allocation2 + $0x664] sm:$0xf]
    %v2647 = vld [vmem:[#allocation2 + $0x668] sm:$0xf]
    %v2648 = vld [vmem:[#allocation2 + $0x66c] sm:$0xf]
    %v2649 = vld [vmem:[#allocation2 + $0x670] sm:$0xf]
    %v2650 = vld [vmem:[#allocation2 + $0x674] sm:$0xf]
    %v2651 = vld [vmem:[#allocation2 + $0x678] sm:$0xf]
    %v2652 = vld [vmem:[#allocation2 + $0x67c] sm:$0xf]
    %v2653 = vld [vmem:[#allocation2 + $0x680] sm:$0xf]
    %v2654 = vld [vmem:[#allocation2 + $0x684] sm:$0xf]
    %v2655 = vld [vmem:[#allocation2 + $0x688] sm:$0xf]
    %v2656 = vld [vmem:[#allocation2 + $0x68c] sm:$0xf]
    %v2657 = vld [vmem:[#allocation2 + $0x690] sm:$0xf]
    %v2658 = vld [vmem:[#allocation2 + $0x694] sm:$0xf]
    %v2659 = vld [vmem:[#allocation2 + $0x698] sm:$0xf]
    %v2660 = vld [vmem:[#allocation2 + $0x69c] sm:$0xf]
    %v2661 = vld [vmem:[#allocation2 + $0x6a0] sm:$0xf]
    %v2662 = vld [vmem:[#allocation2 + $0x6a4] sm:$0xf]
    %v2663 = vld [vmem:[#allocation2 + $0x6a8] sm:$0xf]
    %v2664 = vld [vmem:[#allocation2 + $0x6ac] sm:$0xf]
    %v2665 = vld [vmem:[#allocation2 + $0x6b0] sm:$0xf]
    %v2666 = vld [vmem:[#allocation2 + $0x6b4] sm:$0xf]
    %v2667 = vld [vmem:[#allocation2 + $0x6b8] sm:$0xf]
    %v2668 = vld [vmem:[#allocation2 + $0x6bc] sm:$0xf]
    %v2669 = vld [vmem:[#allocation2 + $0x6c0] sm:$0xf]
    %v2670 = vld [vmem:[#allocation2 + $0x6c4] sm:$0xf]
    %v2671 = vld [vmem:[#allocation2 + $0x6c8] sm:$0xf]
    %v2672 = vld [vmem:[#allocation2 + $0x6cc] sm:$0xf]
    %v2673 = vld [vmem:[#allocation2 + $0x6d0] sm:$0xf]
    %v2674 = vld [vmem:[#allocation2 + $0x6d4] sm:$0xf]
    %v2675 = vld [vmem:[#allocation2 + $0x6d8] sm:$0xf]
    %v2676 = vld [vmem:[#allocation2 + $0x6dc] sm:$0xf]
    %v2677 = vld [vmem:[#allocation2 + $0x6e0] sm:$0xf]
    %v2678 = vld [vmem:[#allocation2 + $0x6e4] sm:$0xf]
    %v2679 = vld [vmem:[#allocation2 + $0x6e8] sm:$0xf]
    %v2680 = vld [vmem:[#allocation2 + $0x6ec] sm:$0xf]
    %v2681 = vld [vmem:[#allocation2 + $0x6f0] sm:$0xf]
    %v2682 = vld [vmem:[#allocation2 + $0x6f4] sm:$0xf]
    %v2683 = vld [vmem:[#allocation2 + $0x6f8] sm:$0xf]
    %v2684 = vld [vmem:[#allocation2 + $0x6fc] sm:$0xf]
    %v2685 = vld [vmem:[#allocation2 + $0x700] sm:$0xf]
    %v2686 = vld [vmem:[#allocation2 + $0x704] sm:$0xf]
    %v2687 = vld [vmem:[#allocation2 + $0x708] sm:$0xf]
    %v2688 = vld [vmem:[#allocation2 + $0x70c] sm:$0xf]
    %v2689 = vld [vmem:[#allocation2 + $0x710] sm:$0xf]
    %v2690 = vld [vmem:[#allocation2 + $0x714] sm:$0xf]
    %v2691 = vld [vmem:[#allocation2 + $0x718] sm:$0xf]
    %v2692 = vld [vmem:[#allocation2 + $0x71c] sm:$0xf]
    %v2693 = vld [vmem:[#allocation2 + $0x720] sm:$0xf]
    %v2694 = vld [vmem:[#allocation2 + $0x724] sm:$0xf]
    %v2695 = vld [vmem:[#allocation2 + $0x728] sm:$0xf]
    %v2696 = vld [vmem:[#allocation2 + $0x72c] sm:$0xf]
    %v2697 = vld [vmem:[#allocation2 + $0x730] sm:$0xf]
    %v2698 = vld [vmem:[#allocation2 + $0x734] sm:$0xf]
    %v2699 = vld [vmem:[#allocation2 + $0x738] sm:$0xf]
    %v2700 = vld [vmem:[#allocation2 + $0x73c] sm:$0xf]
    %v2701 = vld [vmem:[#allocation2 + $0x740] sm:$0xf]
    %v2702 = vld [vmem:[#allocation2 + $0x744] sm:$0xf]
    %v2703 = vld [vmem:[#allocation2 + $0x748] sm:$0xf]
    %v2704 = vld [vmem:[#allocation2 + $0x74c] sm:$0xf]
    %v2705 = vld [vmem:[#allocation2 + $0x750] sm:$0xf]
    %v2706 = vld [vmem:[#allocation2 + $0x754] sm:$0xf]
    %v2707 = vld [vmem:[#allocation2 + $0x758] sm:$0xf]
    %v2708 = vld [vmem:[#allocation2 + $0x75c] sm:$0xf]
    %v2709 = vld [vmem:[#allocation2 + $0x760] sm:$0xf]
    %v2710 = vld [vmem:[#allocation2 + $0x764] sm:$0xf]
    %v2711 = vld [vmem:[#allocation2 + $0x768] sm:$0xf]
    %v2712 = vld [vmem:[#allocation2 + $0x76c] sm:$0xf]
    %v2713 = vld [vmem:[#allocation2 + $0x770] sm:$0xf]
    %v2714 = vld [vmem:[#allocation2 + $0x774] sm:$0xf]
    %v2715 = vld [vmem:[#allocation2 + $0x778] sm:$0xf]
    %v2716 = vld [vmem:[#allocation2 + $0x77c] sm:$0xf]
    %v2717 = vld [vmem:[#allocation2 + $0x780] sm:$0xf]
    %v2718 = vld [vmem:[#allocation2 + $0x784] sm:$0xf]
    %v2719 = vld [vmem:[#allocation2 + $0x788] sm:$0xf]
    %v2720 = vld [vmem:[#allocation2 + $0x78c] sm:$0xf]
    %v2721 = vld [vmem:[#allocation2 + $0x790] sm:$0xf]
    %v2722 = vld [vmem:[#allocation2 + $0x794] sm:$0xf]
    %v2723 = vld [vmem:[#allocation2 + $0x798] sm:$0xf]
    %v2724 = vld [vmem:[#allocation2 + $0x79c] sm:$0xf]
    %v2725 = vld [vmem:[#allocation2 + $0x7a0] sm:$0xf]
    %v2726 = vld [vmem:[#allocation2 + $0x7a4] sm:$0xf]
    %v2727 = vld [vmem:[#allocation2 + $0x7a8] sm:$0xf]
    %v2728 = vld [vmem:[#allocation2 + $0x7ac] sm:$0xf]
    %v2729 = vld [vmem:[#allocation2 + $0x7b0] sm:$0xf]
    %v2730 = vld [vmem:[#allocation2 + $0x7b4] sm:$0xf]
    %v2731 = vld [vmem:[#allocation2 + $0x7b8] sm:$0xf]
    %v2732 = vld [vmem:[#allocation2 + $0x7bc] sm:$0xf]
    %v2733 = vld [vmem:[#allocation2 + $0x7c0] sm:$0xf]
    %v2734 = vld [vmem:[#allocation2 + $0x7c4] sm:$0xf]
    %v2735 = vld [vmem:[#allocation2 + $0x7c8] sm:$0xf]
    %v2736 = vld [vmem:[#allocation2 + $0x7cc] sm:$0xf]
    %v2737 = vld [vmem:[#allocation2 + $0x7d0] sm:$0xf]
    %v2738 = vld [vmem:[#allocation2 + $0x7d4] sm:$0xf]
    %v2739 = vld [vmem:[#allocation2 + $0x7d8] sm:$0xf]
    %v2740 = vld [vmem:[#allocation2 + $0x7dc] sm:$0xf]
    %v2741 = vld [vmem:[#allocation2 + $0x7e0] sm:$0xf]
    %v2742 = vld [vmem:[#allocation2 + $0x7e4] sm:$0xf]
    %v2743 = vld [vmem:[#allocation2 + $0x7e8] sm:$0xf]
    %v2744 = vld [vmem:[#allocation2 + $0x7ec] sm:$0xf]
    %v2745 = vld [vmem:[#allocation2 + $0x7f0] sm:$0xf]
    %v2746 = vld [vmem:[#allocation2 + $0x7f4] sm:$0xf]
    %v2747 = vld [vmem:[#allocation2 + $0x7f8] sm:$0xf]
    %v2748 = vld [vmem:[#allocation2 + $0x7fc] sm:$0xf]
    %v2749 = vld [vmem:[%s17] sm:$0x1]
    %v2751 = vlaneseq
    %v2752 = vshrl.u32 %v2751, 7
    %v2753 = vsub.s32 0, %v2752
    %v2754 = vrot.slane %v2749, %v2753
    %v3268 = vunpack.c.l.b16 %v2237
    %v3269 = vunpack.c.l.b16 %v2238
    %v3270 = vunpack.c.l.b16 %v2239
    %v3271 = vunpack.c.l.b16 %v2240
    %v3272 = vunpack.c.l.b16 %v2241
    %v3273 = vunpack.c.l.b16 %v2242
    %v3274 = vunpack.c.l.b16 %v2243
    %v3275 = vunpack.c.l.b16 %v2244
    %v3276 = vunpack.c.l.b16 %v2245
    %v3277 = vunpack.c.l.b16 %v2246
    %v3278 = vunpack.c.l.b16 %v2247
    %v3279 = vunpack.c.l.b16 %v2248
    %v3280 = vunpack.c.l.b16 %v2249
    %v3281 = vunpack.c.l.b16 %v2250
    %v3282 = vunpack.c.l.b16 %v2251
    %v3283 = vunpack.c.l.b16 %v2252
    %v3284 = vunpack.c.l.b16 %v2253
    %v3285 = vunpack.c.l.b16 %v2254
    %v3286 = vunpack.c.l.b16 %v2255
    %v3287 = vunpack.c.l.b16 %v2256
    %v3288 = vunpack.c.l.b16 %v2257
    %v3289 = vunpack.c.l.b16 %v2258
    %v3290 = vunpack.c.l.b16 %v2259
    %v3291 = vunpack.c.l.b16 %v2260
    %v3292 = vunpack.c.l.b16 %v2261
    %v3293 = vunpack.c.l.b16 %v2262
    %v3294 = vunpack.c.l.b16 %v2263
    %v3295 = vunpack.c.l.b16 %v2264
    %v3296 = vunpack.c.l.b16 %v2265
    %v3297 = vunpack.c.l.b16 %v2266
    %v3298 = vunpack.c.l.b16 %v2267
    %v3299 = vunpack.c.l.b16 %v2268
    %v3300 = vunpack.c.l.b16 %v2269
    %v3301 = vunpack.c.l.b16 %v2270
    %v3302 = vunpack.c.l.b16 %v2271
    %v3303 = vunpack.c.l.b16 %v2272
    %v3304 = vunpack.c.l.b16 %v2273
    %v3305 = vunpack.c.l.b16 %v2274
    %v3306 = vunpack.c.l.b16 %v2275
    %v3307 = vunpack.c.l.b16 %v2276
    %v3308 = vunpack.c.l.b16 %v2277
    %v3309 = vunpack.c.l.b16 %v2278
    %v3310 = vunpack.c.l.b16 %v2279
    %v3311 = vunpack.c.l.b16 %v2280
    %v3312 = vunpack.c.l.b16 %v2281
    %v3313 = vunpack.c.l.b16 %v2282
    %v3314 = vunpack.c.l.b16 %v2283
    %v3315 = vunpack.c.l.b16 %v2284
    %v3316 = vunpack.c.l.b16 %v2285
    %v3317 = vunpack.c.l.b16 %v2286
    %v3318 = vunpack.c.l.b16 %v2287
    %v3319 = vunpack.c.l.b16 %v2288
    %v3320 = vunpack.c.l.b16 %v2289
    %v3321 = vunpack.c.l.b16 %v2290
    %v3322 = vunpack.c.l.b16 %v2291
    %v3323 = vunpack.c.l.b16 %v2292
    %v3324 = vunpack.c.l.b16 %v2293
    %v3325 = vunpack.c.l.b16 %v2294
    %v3326 = vunpack.c.l.b16 %v2295
    %v3327 = vunpack.c.l.b16 %v2296
    %v3328 = vunpack.c.l.b16 %v2297
    %v3329 = vunpack.c.l.b16 %v2298
    %v3330 = vunpack.c.l.b16 %v2299
    %v3331 = vunpack.c.l.b16 %v2300
    %v3332 = vunpack.c.l.b16 %v2301
    %v3333 = vunpack.c.l.b16 %v2302
    %v3334 = vunpack.c.l.b16 %v2303
    %v3335 = vunpack.c.l.b16 %v2304
    %v3336 = vunpack.c.l.b16 %v2305
    %v3337 = vunpack.c.l.b16 %v2306
    %v3338 = vunpack.c.l.b16 %v2307
    %v3339 = vunpack.c.l.b16 %v2308
    %v3340 = vunpack.c.l.b16 %v2309
    %v3341 = vunpack.c.l.b16 %v2310
    %v3342 = vunpack.c.l.b16 %v2311
    %v3343 = vunpack.c.l.b16 %v2312
    %v3344 = vunpack.c.l.b16 %v2313
    %v3345 = vunpack.c.l.b16 %v2314
    %v3346 = vunpack.c.l.b16 %v2315
    %v3347 = vunpack.c.l.b16 %v2316
    %v3348 = vunpack.c.l.b16 %v2317
    %v3349 = vunpack.c.l.b16 %v2318
    %v3350 = vunpack.c.l.b16 %v2319
    %v3351 = vunpack.c.l.b16 %v2320
    %v3352 = vunpack.c.l.b16 %v2321
    %v3353 = vunpack.c.l.b16 %v2322
    %v3354 = vunpack.c.l.b16 %v2323
    %v3355 = vunpack.c.l.b16 %v2324
    %v3356 = vunpack.c.l.b16 %v2325
    %v3357 = vunpack.c.l.b16 %v2326
    %v3358 = vunpack.c.l.b16 %v2327
    %v3359 = vunpack.c.l.b16 %v2328
    %v3360 = vunpack.c.l.b16 %v2329
    %v3361 = vunpack.c.l.b16 %v2330
    %v3362 = vunpack.c.l.b16 %v2331
    %v3363 = vunpack.c.l.b16 %v2332
    %v3364 = vunpack.c.l.b16 %v2333
    %v3365 = vunpack.c.l.b16 %v2334
    %v3366 = vunpack.c.l.b16 %v2335
    %v3367 = vunpack.c.l.b16 %v2336
    %v3368 = vunpack.c.l.b16 %v2337
    %v3369 = vunpack.c.l.b16 %v2338
    %v3370 = vunpack.c.l.b16 %v2339
    %v3371 = vunpack.c.l.b16 %v2340
    %v3372 = vunpack.c.l.b16 %v2341
    %v3373 = vunpack.c.l.b16 %v2342
    %v3374 = vunpack.c.l.b16 %v2343
    %v3375 = vunpack.c.l.b16 %v2344
    %v3376 = vunpack.c.l.b16 %v2345
    %v3377 = vunpack.c.l.b16 %v2346
    %v3378 = vunpack.c.l.b16 %v2347
    %v3379 = vunpack.c.l.b16 %v2348
    %v3380 = vunpack.c.l.b16 %v2349
    %v3381 = vunpack.c.l.b16 %v2350
    %v3382 = vunpack.c.l.b16 %v2351
    %v3383 = vunpack.c.l.b16 %v2352
    %v3384 = vunpack.c.l.b16 %v2353
    %v3385 = vunpack.c.l.b16 %v2354
    %v3386 = vunpack.c.l.b16 %v2355
    %v3387 = vunpack.c.l.b16 %v2356
    %v3388 = vunpack.c.l.b16 %v2357
    %v3389 = vunpack.c.l.b16 %v2358
    %v3390 = vunpack.c.l.b16 %v2359
    %v3391 = vunpack.c.l.b16 %v2360
    %v3392 = vunpack.c.l.b16 %v2361
    %v3393 = vunpack.c.l.b16 %v2362
    %v3394 = vunpack.c.l.b16 %v2363
    %v3395 = vunpack.c.l.b16 %v2364
    %v3396 = vunpack.c.l.b16 %v2365
    %v3397 = vunpack.c.l.b16 %v2366
    %v3398 = vunpack.c.l.b16 %v2367
    %v3399 = vunpack.c.l.b16 %v2368
    %v3400 = vunpack.c.l.b16 %v2369
    %v3401 = vunpack.c.l.b16 %v2370
    %v3402 = vunpack.c.l.b16 %v2371
    %v3403 = vunpack.c.l.b16 %v2372
    %v3404 = vunpack.c.l.b16 %v2373
    %v3405 = vunpack.c.l.b16 %v2374
    %v3406 = vunpack.c.l.b16 %v2375
    %v3407 = vunpack.c.l.b16 %v2376
    %v3408 = vunpack.c.l.b16 %v2377
    %v3409 = vunpack.c.l.b16 %v2378
    %v3410 = vunpack.c.l.b16 %v2379
    %v3411 = vunpack.c.l.b16 %v2380
    %v3412 = vunpack.c.l.b16 %v2381
    %v3413 = vunpack.c.l.b16 %v2382
    %v3414 = vunpack.c.l.b16 %v2383
    %v3415 = vunpack.c.l.b16 %v2384
    %v3416 = vunpack.c.l.b16 %v2385
    %v3417 = vunpack.c.l.b16 %v2386
    %v3418 = vunpack.c.l.b16 %v2387
    %v3419 = vunpack.c.l.b16 %v2388
    %v3420 = vunpack.c.l.b16 %v2389
    %v3421 = vunpack.c.l.b16 %v2390
    %v3422 = vunpack.c.l.b16 %v2391
    %v3423 = vunpack.c.l.b16 %v2392
    %v3424 = vunpack.c.l.b16 %v2393
    %v3425 = vunpack.c.l.b16 %v2394
    %v3426 = vunpack.c.l.b16 %v2395
    %v3427 = vunpack.c.l.b16 %v2396
    %v3428 = vunpack.c.l.b16 %v2397
    %v3429 = vunpack.c.l.b16 %v2398
    %v3430 = vunpack.c.l.b16 %v2399
    %v3431 = vunpack.c.l.b16 %v2400
    %v3432 = vunpack.c.l.b16 %v2401
    %v3433 = vunpack.c.l.b16 %v2402
    %v3434 = vunpack.c.l.b16 %v2403
    %v3435 = vunpack.c.l.b16 %v2404
    %v3436 = vunpack.c.l.b16 %v2405
    %v3437 = vunpack.c.l.b16 %v2406
    %v3438 = vunpack.c.l.b16 %v2407
    %v3439 = vunpack.c.l.b16 %v2408
    %v3440 = vunpack.c.l.b16 %v2409
    %v3441 = vunpack.c.l.b16 %v2410
    %v3442 = vunpack.c.l.b16 %v2411
    %v3443 = vunpack.c.l.b16 %v2412
    %v3444 = vunpack.c.l.b16 %v2413
    %v3445 = vunpack.c.l.b16 %v2414
    %v3446 = vunpack.c.l.b16 %v2415
    %v3447 = vunpack.c.l.b16 %v2416
    %v3448 = vunpack.c.l.b16 %v2417
    %v3449 = vunpack.c.l.b16 %v2418
    %v3450 = vunpack.c.l.b16 %v2419
    %v3451 = vunpack.c.l.b16 %v2420
    %v3452 = vunpack.c.l.b16 %v2421
    %v3453 = vunpack.c.l.b16 %v2422
    %v3454 = vunpack.c.l.b16 %v2423
    %v3455 = vunpack.c.l.b16 %v2424
    %v3456 = vunpack.c.l.b16 %v2425
    %v3457 = vunpack.c.l.b16 %v2426
    %v3458 = vunpack.c.l.b16 %v2427
    %v3459 = vunpack.c.l.b16 %v2428
    %v3460 = vunpack.c.l.b16 %v2429
    %v3461 = vunpack.c.l.b16 %v2430
    %v3462 = vunpack.c.l.b16 %v2431
    %v3463 = vunpack.c.l.b16 %v2432
    %v3464 = vunpack.c.l.b16 %v2433
    %v3465 = vunpack.c.l.b16 %v2434
    %v3466 = vunpack.c.l.b16 %v2435
    %v3467 = vunpack.c.l.b16 %v2436
    %v3468 = vunpack.c.l.b16 %v2437
    %v3469 = vunpack.c.l.b16 %v2438
    %v3470 = vunpack.c.l.b16 %v2439
    %v3471 = vunpack.c.l.b16 %v2440
    %v3472 = vunpack.c.l.b16 %v2441
    %v3473 = vunpack.c.l.b16 %v2442
    %v3474 = vunpack.c.l.b16 %v2443
    %v3475 = vunpack.c.l.b16 %v2444
    %v3476 = vunpack.c.l.b16 %v2445
    %v3477 = vunpack.c.l.b16 %v2446
    %v3478 = vunpack.c.l.b16 %v2447
    %v3479 = vunpack.c.l.b16 %v2448
    %v3480 = vunpack.c.l.b16 %v2449
    %v3481 = vunpack.c.l.b16 %v2450
    %v3482 = vunpack.c.l.b16 %v2451
    %v3483 = vunpack.c.l.b16 %v2452
    %v3484 = vunpack.c.l.b16 %v2453
    %v3485 = vunpack.c.l.b16 %v2454
    %v3486 = vunpack.c.l.b16 %v2455
    %v3487 = vunpack.c.l.b16 %v2456
    %v3488 = vunpack.c.l.b16 %v2457
    %v3489 = vunpack.c.l.b16 %v2458
    %v3490 = vunpack.c.l.b16 %v2459
    %v3491 = vunpack.c.l.b16 %v2460
    %v3492 = vunpack.c.l.b16 %v2461
    %v3493 = vunpack.c.l.b16 %v2462
    %v3494 = vunpack.c.l.b16 %v2463
    %v3495 = vunpack.c.l.b16 %v2464
    %v3496 = vunpack.c.l.b16 %v2465
    %v3497 = vunpack.c.l.b16 %v2466
    %v3498 = vunpack.c.l.b16 %v2467
    %v3499 = vunpack.c.l.b16 %v2468
    %v3500 = vunpack.c.l.b16 %v2469
    %v3501 = vunpack.c.l.b16 %v2470
    %v3502 = vunpack.c.l.b16 %v2471
    %v3503 = vunpack.c.l.b16 %v2472
    %v3504 = vunpack.c.l.b16 %v2473
    %v3505 = vunpack.c.l.b16 %v2474
    %v3506 = vunpack.c.l.b16 %v2475
    %v3507 = vunpack.c.l.b16 %v2476
    %v3508 = vunpack.c.l.b16 %v2477
    %v3509 = vunpack.c.l.b16 %v2478
    %v3510 = vunpack.c.l.b16 %v2479
    %v3511 = vunpack.c.l.b16 %v2480
    %v3512 = vunpack.c.l.b16 %v2481
    %v3513 = vunpack.c.l.b16 %v2482
    %v3514 = vunpack.c.l.b16 %v2483
    %v3515 = vunpack.c.l.b16 %v2484
    %v3516 = vunpack.c.l.b16 %v2485
    %v3517 = vunpack.c.l.b16 %v2486
    %v3518 = vunpack.c.l.b16 %v2487
    %v3519 = vunpack.c.l.b16 %v2488
    %v3520 = vunpack.c.l.b16 %v2489
    %v3521 = vunpack.c.l.b16 %v2490
    %v3522 = vunpack.c.l.b16 %v2491
    %v3523 = vunpack.c.l.b16 %v2492
    %v3524 = vunpack.c.l.b16 %v2493
    %v3525 = vunpack.c.l.b16 %v2494
    %v3526 = vunpack.c.l.b16 %v2495
    %v3527 = vunpack.c.l.b16 %v2496
    %v3528 = vunpack.c.l.b16 %v2497
    %v3529 = vunpack.c.l.b16 %v2498
    %v3530 = vunpack.c.l.b16 %v2499
    %v3531 = vunpack.c.l.b16 %v2500
    %v3532 = vunpack.c.l.b16 %v2501
    %v3533 = vunpack.c.l.b16 %v2502
    %v3534 = vunpack.c.l.b16 %v2503
    %v3535 = vunpack.c.l.b16 %v2504
    %v3536 = vunpack.c.l.b16 %v2505
    %v3537 = vunpack.c.l.b16 %v2506
    %v3538 = vunpack.c.l.b16 %v2507
    %v3539 = vunpack.c.l.b16 %v2508
    %v3540 = vunpack.c.l.b16 %v2509
    %v3541 = vunpack.c.l.b16 %v2510
    %v3542 = vunpack.c.l.b16 %v2511
    %v3543 = vunpack.c.l.b16 %v2512
    %v3544 = vunpack.c.l.b16 %v2513
    %v3545 = vunpack.c.l.b16 %v2514
    %v3546 = vunpack.c.l.b16 %v2515
    %v3547 = vunpack.c.l.b16 %v2516
    %v3548 = vunpack.c.l.b16 %v2517
    %v3549 = vunpack.c.l.b16 %v2518
    %v3550 = vunpack.c.l.b16 %v2519
    %v3551 = vunpack.c.l.b16 %v2520
    %v3552 = vunpack.c.l.b16 %v2521
    %v3553 = vunpack.c.l.b16 %v2522
    %v3554 = vunpack.c.l.b16 %v2523
    %v3555 = vunpack.c.l.b16 %v2524
    %v3556 = vunpack.c.l.b16 %v2525
    %v3557 = vunpack.c.l.b16 %v2526
    %v3558 = vunpack.c.l.b16 %v2527
    %v3559 = vunpack.c.l.b16 %v2528
    %v3560 = vunpack.c.l.b16 %v2529
    %v3561 = vunpack.c.l.b16 %v2530
    %v3562 = vunpack.c.l.b16 %v2531
    %v3563 = vunpack.c.l.b16 %v2532
    %v3564 = vunpack.c.l.b16 %v2533
    %v3565 = vunpack.c.l.b16 %v2534
    %v3566 = vunpack.c.l.b16 %v2535
    %v3567 = vunpack.c.l.b16 %v2536
    %v3568 = vunpack.c.l.b16 %v2537
    %v3569 = vunpack.c.l.b16 %v2538
    %v3570 = vunpack.c.l.b16 %v2539
    %v3571 = vunpack.c.l.b16 %v2540
    %v3572 = vunpack.c.l.b16 %v2541
    %v3573 = vunpack.c.l.b16 %v2542
    %v3574 = vunpack.c.l.b16 %v2543
    %v3575 = vunpack.c.l.b16 %v2544
    %v3576 = vunpack.c.l.b16 %v2545
    %v3577 = vunpack.c.l.b16 %v2546
    %v3578 = vunpack.c.l.b16 %v2547
    %v3579 = vunpack.c.l.b16 %v2548
    %v3580 = vunpack.c.l.b16 %v2549
    %v3581 = vunpack.c.l.b16 %v2550
    %v3582 = vunpack.c.l.b16 %v2551
    %v3583 = vunpack.c.l.b16 %v2552
    %v3584 = vunpack.c.l.b16 %v2553
    %v3585 = vunpack.c.l.b16 %v2554
    %v3586 = vunpack.c.l.b16 %v2555
    %v3587 = vunpack.c.l.b16 %v2556
    %v3588 = vunpack.c.l.b16 %v2557
    %v3589 = vunpack.c.l.b16 %v2558
    %v3590 = vunpack.c.l.b16 %v2559
    %v3591 = vunpack.c.l.b16 %v2560
    %v3592 = vunpack.c.l.b16 %v2561
    %v3593 = vunpack.c.l.b16 %v2562
    %v3594 = vunpack.c.l.b16 %v2563
    %v3595 = vunpack.c.l.b16 %v2564
    %v3596 = vunpack.c.l.b16 %v2565
    %v3597 = vunpack.c.l.b16 %v2566
    %v3598 = vunpack.c.l.b16 %v2567
    %v3599 = vunpack.c.l.b16 %v2568
    %v3600 = vunpack.c.l.b16 %v2569
    %v3601 = vunpack.c.l.b16 %v2570
    %v3602 = vunpack.c.l.b16 %v2571
    %v3603 = vunpack.c.l.b16 %v2572
    %v3604 = vunpack.c.l.b16 %v2573
    %v3605 = vunpack.c.l.b16 %v2574
    %v3606 = vunpack.c.l.b16 %v2575
    %v3607 = vunpack.c.l.b16 %v2576
    %v3608 = vunpack.c.l.b16 %v2577
    %v3609 = vunpack.c.l.b16 %v2578
    %v3610 = vunpack.c.l.b16 %v2579
    %v3611 = vunpack.c.l.b16 %v2580
    %v3612 = vunpack.c.l.b16 %v2581
    %v3613 = vunpack.c.l.b16 %v2582
    %v3614 = vunpack.c.l.b16 %v2583
    %v3615 = vunpack.c.l.b16 %v2584
    %v3616 = vunpack.c.l.b16 %v2585
    %v3617 = vunpack.c.l.b16 %v2586
    %v3618 = vunpack.c.l.b16 %v2587
    %v3619 = vunpack.c.l.b16 %v2588
    %v3620 = vunpack.c.l.b16 %v2589
    %v3621 = vunpack.c.l.b16 %v2590
    %v3622 = vunpack.c.l.b16 %v2591
    %v3623 = vunpack.c.l.b16 %v2592
    %v3624 = vunpack.c.l.b16 %v2593
    %v3625 = vunpack.c.l.b16 %v2594
    %v3626 = vunpack.c.l.b16 %v2595
    %v3627 = vunpack.c.l.b16 %v2596
    %v3628 = vunpack.c.l.b16 %v2597
    %v3629 = vunpack.c.l.b16 %v2598
    %v3630 = vunpack.c.l.b16 %v2599
    %v3631 = vunpack.c.l.b16 %v2600
    %v3632 = vunpack.c.l.b16 %v2601
    %v3633 = vunpack.c.l.b16 %v2602
    %v3634 = vunpack.c.l.b16 %v2603
    %v3635 = vunpack.c.l.b16 %v2604
    %v3636 = vunpack.c.l.b16 %v2605
    %v3637 = vunpack.c.l.b16 %v2606
    %v3638 = vunpack.c.l.b16 %v2607
    %v3639 = vunpack.c.l.b16 %v2608
    %v3640 = vunpack.c.l.b16 %v2609
    %v3641 = vunpack.c.l.b16 %v2610
    %v3642 = vunpack.c.l.b16 %v2611
    %v3643 = vunpack.c.l.b16 %v2612
    %v3644 = vunpack.c.l.b16 %v2613
    %v3645 = vunpack.c.l.b16 %v2614
    %v3646 = vunpack.c.l.b16 %v2615
    %v3647 = vunpack.c.l.b16 %v2616
    %v3648 = vunpack.c.l.b16 %v2617
    %v3649 = vunpack.c.l.b16 %v2618
    %v3650 = vunpack.c.l.b16 %v2619
    %v3651 = vunpack.c.l.b16 %v2620
    %v3652 = vunpack.c.l.b16 %v2621
    %v3653 = vunpack.c.l.b16 %v2622
    %v3654 = vunpack.c.l.b16 %v2623
    %v3655 = vunpack.c.l.b16 %v2624
    %v3656 = vunpack.c.l.b16 %v2625
    %v3657 = vunpack.c.l.b16 %v2626
    %v3658 = vunpack.c.l.b16 %v2627
    %v3659 = vunpack.c.l.b16 %v2628
    %v3660 = vunpack.c.l.b16 %v2629
    %v3661 = vunpack.c.l.b16 %v2630
    %v3662 = vunpack.c.l.b16 %v2631
    %v3663 = vunpack.c.l.b16 %v2632
    %v3664 = vunpack.c.l.b16 %v2633
    %v3665 = vunpack.c.l.b16 %v2634
    %v3666 = vunpack.c.l.b16 %v2635
    %v3667 = vunpack.c.l.b16 %v2636
    %v3668 = vunpack.c.l.b16 %v2637
    %v3669 = vunpack.c.l.b16 %v2638
    %v3670 = vunpack.c.l.b16 %v2639
    %v3671 = vunpack.c.l.b16 %v2640
    %v3672 = vunpack.c.l.b16 %v2641
    %v3673 = vunpack.c.l.b16 %v2642
    %v3674 = vunpack.c.l.b16 %v2643
    %v3675 = vunpack.c.l.b16 %v2644
    %v3676 = vunpack.c.l.b16 %v2645
    %v3677 = vunpack.c.l.b16 %v2646
    %v3678 = vunpack.c.l.b16 %v2647
    %v3679 = vunpack.c.l.b16 %v2648
    %v3680 = vunpack.c.l.b16 %v2649
    %v3681 = vunpack.c.l.b16 %v2650
    %v3682 = vunpack.c.l.b16 %v2651
    %v3683 = vunpack.c.l.b16 %v2652
    %v3684 = vunpack.c.l.b16 %v2653
    %v3685 = vunpack.c.l.b16 %v2654
    %v3686 = vunpack.c.l.b16 %v2655
    %v3687 = vunpack.c.l.b16 %v2656
    %v3688 = vunpack.c.l.b16 %v2657
    %v3689 = vunpack.c.l.b16 %v2658
    %v3690 = vunpack.c.l.b16 %v2659
    %v3691 = vunpack.c.l.b16 %v2660
    %v3692 = vunpack.c.l.b16 %v2661
    %v3693 = vunpack.c.l.b16 %v2662
    %v3694 = vunpack.c.l.b16 %v2663
    %v3695 = vunpack.c.l.b16 %v2664
    %v3696 = vunpack.c.l.b16 %v2665
    %v3697 = vunpack.c.l.b16 %v2666
    %v3698 = vunpack.c.l.b16 %v2667
    %v3699 = vunpack.c.l.b16 %v2668
    %v3700 = vunpack.c.l.b16 %v2669
    %v3701 = vunpack.c.l.b16 %v2670
    %v3702 = vunpack.c.l.b16 %v2671
    %v3703 = vunpack.c.l.b16 %v2672
    %v3704 = vunpack.c.l.b16 %v2673
    %v3705 = vunpack.c.l.b16 %v2674
    %v3706 = vunpack.c.l.b16 %v2675
    %v3707 = vunpack.c.l.b16 %v2676
    %v3708 = vunpack.c.l.b16 %v2677
    %v3709 = vunpack.c.l.b16 %v2678
    %v3710 = vunpack.c.l.b16 %v2679
    %v3711 = vunpack.c.l.b16 %v2680
    %v3712 = vunpack.c.l.b16 %v2681
    %v3713 = vunpack.c.l.b16 %v2682
    %v3714 = vunpack.c.l.b16 %v2683
    %v3715 = vunpack.c.l.b16 %v2684
    %v3716 = vunpack.c.l.b16 %v2685
    %v3717 = vunpack.c.l.b16 %v2686
    %v3718 = vunpack.c.l.b16 %v2687
    %v3719 = vunpack.c.l.b16 %v2688
    %v3720 = vunpack.c.l.b16 %v2689
    %v3721 = vunpack.c.l.b16 %v2690
    %v3722 = vunpack.c.l.b16 %v2691
    %v3723 = vunpack.c.l.b16 %v2692
    %v3724 = vunpack.c.l.b16 %v2693
    %v3725 = vunpack.c.l.b16 %v2694
    %v3726 = vunpack.c.l.b16 %v2695
    %v3727 = vunpack.c.l.b16 %v2696
    %v3728 = vunpack.c.l.b16 %v2697
    %v3729 = vunpack.c.l.b16 %v2698
    %v3730 = vunpack.c.l.b16 %v2699
    %v3731 = vunpack.c.l.b16 %v2700
    %v3732 = vunpack.c.l.b16 %v2701
    %v3733 = vunpack.c.l.b16 %v2702
    %v3734 = vunpack.c.l.b16 %v2703
    %v3735 = vunpack.c.l.b16 %v2704
    %v3736 = vunpack.c.l.b16 %v2705
    %v3737 = vunpack.c.l.b16 %v2706
    %v3738 = vunpack.c.l.b16 %v2707
    %v3739 = vunpack.c.l.b16 %v2708
    %v3740 = vunpack.c.l.b16 %v2709
    %v3741 = vunpack.c.l.b16 %v2710
    %v3742 = vunpack.c.l.b16 %v2711
    %v3743 = vunpack.c.l.b16 %v2712
    %v3744 = vunpack.c.l.b16 %v2713
    %v3745 = vunpack.c.l.b16 %v2714
    %v3746 = vunpack.c.l.b16 %v2715
    %v3747 = vunpack.c.l.b16 %v2716
    %v3748 = vunpack.c.l.b16 %v2717
    %v3749 = vunpack.c.l.b16 %v2718
    %v3750 = vunpack.c.l.b16 %v2719
    %v3751 = vunpack.c.l.b16 %v2720
    %v3752 = vunpack.c.l.b16 %v2721
    %v3753 = vunpack.c.l.b16 %v2722
    %v3754 = vunpack.c.l.b16 %v2723
    %v3755 = vunpack.c.l.b16 %v2724
    %v3756 = vunpack.c.l.b16 %v2725
    %v3757 = vunpack.c.l.b16 %v2726
    %v3758 = vunpack.c.l.b16 %v2727
    %v3759 = vunpack.c.l.b16 %v2728
    %v3760 = vunpack.c.l.b16 %v2729
    %v3761 = vunpack.c.l.b16 %v2730
    %v3762 = vunpack.c.l.b16 %v2731
    %v3763 = vunpack.c.l.b16 %v2732
    %v3764 = vunpack.c.l.b16 %v2733
    %v3765 = vunpack.c.l.b16 %v2734
    %v3766 = vunpack.c.l.b16 %v2735
    %v3767 = vunpack.c.l.b16 %v2736
    %v3768 = vunpack.c.l.b16 %v2737
    %v3769 = vunpack.c.l.b16 %v2738
    %v3770 = vunpack.c.l.b16 %v2739
    %v3771 = vunpack.c.l.b16 %v2740
    %v3772 = vunpack.c.l.b16 %v2741
    %v3773 = vunpack.c.l.b16 %v2742
    %v3774 = vunpack.c.l.b16 %v2743
    %v3775 = vunpack.c.l.b16 %v2744
    %v3776 = vunpack.c.l.b16 %v2745
    %v3777 = vunpack.c.l.b16 %v2746
    %v3778 = vunpack.c.l.b16 %v2747
    %v3779 = vunpack.c.l.b16 %v2748
    %v3780 = vpack.c.b16 %v3269, %v3268
    %v3781 = vpack.c.b16 %v3271, %v3270
    %v3782 = vpack.c.b16 %v3273, %v3272
    %v3783 = vpack.c.b16 %v3275, %v3274
    %v3784 = vpack.c.b16 %v3277, %v3276
    %v3785 = vpack.c.b16 %v3279, %v3278
    %v3786 = vpack.c.b16 %v3281, %v3280
    %v3787 = vpack.c.b16 %v3283, %v3282
    %v3788 = vpack.c.b16 %v3285, %v3284
    %v3789 = vpack.c.b16 %v3287, %v3286
    %v3790 = vpack.c.b16 %v3289, %v3288
    %v3791 = vpack.c.b16 %v3291, %v3290
    %v3792 = vpack.c.b16 %v3293, %v3292
    %v3793 = vpack.c.b16 %v3295, %v3294
    %v3794 = vpack.c.b16 %v3297, %v3296
    %v3795 = vpack.c.b16 %v3299, %v3298
    %v3796 = vpack.c.b16 %v3301, %v3300
    %v3797 = vpack.c.b16 %v3303, %v3302
    %v3798 = vpack.c.b16 %v3305, %v3304
    %v3799 = vpack.c.b16 %v3307, %v3306
    %v3800 = vpack.c.b16 %v3309, %v3308
    %v3801 = vpack.c.b16 %v3311, %v3310
    %v3802 = vpack.c.b16 %v3313, %v3312
    %v3803 = vpack.c.b16 %v3315, %v3314
    %v3804 = vpack.c.b16 %v3317, %v3316
    %v3805 = vpack.c.b16 %v3319, %v3318
    %v3806 = vpack.c.b16 %v3321, %v3320
    %v3807 = vpack.c.b16 %v3323, %v3322
    %v3808 = vpack.c.b16 %v3325, %v3324
    %v3809 = vpack.c.b16 %v3327, %v3326
    %v3810 = vpack.c.b16 %v3329, %v3328
    %v3811 = vpack.c.b16 %v3331, %v3330
    %v3812 = vpack.c.b16 %v3333, %v3332
    %v3813 = vpack.c.b16 %v3335, %v3334
    %v3814 = vpack.c.b16 %v3337, %v3336
    %v3815 = vpack.c.b16 %v3339, %v3338
    %v3816 = vpack.c.b16 %v3341, %v3340
    %v3817 = vpack.c.b16 %v3343, %v3342
    %v3818 = vpack.c.b16 %v3345, %v3344
    %v3819 = vpack.c.b16 %v3347, %v3346
    %v3820 = vpack.c.b16 %v3349, %v3348
    %v3821 = vpack.c.b16 %v3351, %v3350
    %v3822 = vpack.c.b16 %v3353, %v3352
    %v3823 = vpack.c.b16 %v3355, %v3354
    %v3824 = vpack.c.b16 %v3357, %v3356
    %v3825 = vpack.c.b16 %v3359, %v3358
    %v3826 = vpack.c.b16 %v3361, %v3360
    %v3827 = vpack.c.b16 %v3363, %v3362
    %v3828 = vpack.c.b16 %v3365, %v3364
    %v3829 = vpack.c.b16 %v3367, %v3366
    %v3830 = vpack.c.b16 %v3369, %v3368
    %v3831 = vpack.c.b16 %v3371, %v3370
    %v3832 = vpack.c.b16 %v3373, %v3372
    %v3833 = vpack.c.b16 %v3375, %v3374
    %v3834 = vpack.c.b16 %v3377, %v3376
    %v3835 = vpack.c.b16 %v3379, %v3378
    %v3836 = vpack.c.b16 %v3381, %v3380
    %v3837 = vpack.c.b16 %v3383, %v3382
    %v3838 = vpack.c.b16 %v3385, %v3384
    %v3839 = vpack.c.b16 %v3387, %v3386
    %v3840 = vpack.c.b16 %v3389, %v3388
    %v3841 = vpack.c.b16 %v3391, %v3390
    %v3842 = vpack.c.b16 %v3393, %v3392
    %v3843 = vpack.c.b16 %v3395, %v3394
    %v3844 = vpack.c.b16 %v3397, %v3396
    %v3845 = vpack.c.b16 %v3399, %v3398
    %v3846 = vpack.c.b16 %v3401, %v3400
    %v3847 = vpack.c.b16 %v3403, %v3402
    %v3848 = vpack.c.b16 %v3405, %v3404
    %v3849 = vpack.c.b16 %v3407, %v3406
    %v3850 = vpack.c.b16 %v3409, %v3408
    %v3851 = vpack.c.b16 %v3411, %v3410
    %v3852 = vpack.c.b16 %v3413, %v3412
    %v3853 = vpack.c.b16 %v3415, %v3414
    %v3854 = vpack.c.b16 %v3417, %v3416
    %v3855 = vpack.c.b16 %v3419, %v3418
    %v3856 = vpack.c.b16 %v3421, %v3420
    %v3857 = vpack.c.b16 %v3423, %v3422
    %v3858 = vpack.c.b16 %v3425, %v3424
    %v3859 = vpack.c.b16 %v3427, %v3426
    %v3860 = vpack.c.b16 %v3429, %v3428
    %v3861 = vpack.c.b16 %v3431, %v3430
    %v3862 = vpack.c.b16 %v3433, %v3432
    %v3863 = vpack.c.b16 %v3435, %v3434
    %v3864 = vpack.c.b16 %v3437, %v3436
    %v3865 = vpack.c.b16 %v3439, %v3438
    %v3866 = vpack.c.b16 %v3441, %v3440
    %v3867 = vpack.c.b16 %v3443, %v3442
    %v3868 = vpack.c.b16 %v3445, %v3444
    %v3869 = vpack.c.b16 %v3447, %v3446
    %v3870 = vpack.c.b16 %v3449, %v3448
    %v3871 = vpack.c.b16 %v3451, %v3450
    %v3872 = vpack.c.b16 %v3453, %v3452
    %v3873 = vpack.c.b16 %v3455, %v3454
    %v3874 = vpack.c.b16 %v3457, %v3456
    %v3875 = vpack.c.b16 %v3459, %v3458
    %v3876 = vpack.c.b16 %v3461, %v3460
    %v3877 = vpack.c.b16 %v3463, %v3462
    %v3878 = vpack.c.b16 %v3465, %v3464
    %v3879 = vpack.c.b16 %v3467, %v3466
    %v3880 = vpack.c.b16 %v3469, %v3468
    %v3881 = vpack.c.b16 %v3471, %v3470
    %v3882 = vpack.c.b16 %v3473, %v3472
    %v3883 = vpack.c.b16 %v3475, %v3474
    %v3884 = vpack.c.b16 %v3477, %v3476
    %v3885 = vpack.c.b16 %v3479, %v3478
    %v3886 = vpack.c.b16 %v3481, %v3480
    %v3887 = vpack.c.b16 %v3483, %v3482
    %v3888 = vpack.c.b16 %v3485, %v3484
    %v3889 = vpack.c.b16 %v3487, %v3486
    %v3890 = vpack.c.b16 %v3489, %v3488
    %v3891 = vpack.c.b16 %v3491, %v3490
    %v3892 = vpack.c.b16 %v3493, %v3492
    %v3893 = vpack.c.b16 %v3495, %v3494
    %v3894 = vpack.c.b16 %v3497, %v3496
    %v3895 = vpack.c.b16 %v3499, %v3498
    %v3896 = vpack.c.b16 %v3501, %v3500
    %v3897 = vpack.c.b16 %v3503, %v3502
    %v3898 = vpack.c.b16 %v3505, %v3504
    %v3899 = vpack.c.b16 %v3507, %v3506
    %v3900 = vpack.c.b16 %v3509, %v3508
    %v3901 = vpack.c.b16 %v3511, %v3510
    %v3902 = vpack.c.b16 %v3513, %v3512
    %v3903 = vpack.c.b16 %v3515, %v3514
    %v3904 = vpack.c.b16 %v3517, %v3516
    %v3905 = vpack.c.b16 %v3519, %v3518
    %v3906 = vpack.c.b16 %v3521, %v3520
    %v3907 = vpack.c.b16 %v3523, %v3522
    %v3908 = vpack.c.b16 %v3525, %v3524
    %v3909 = vpack.c.b16 %v3527, %v3526
    %v3910 = vpack.c.b16 %v3529, %v3528
    %v3911 = vpack.c.b16 %v3531, %v3530
    %v3912 = vpack.c.b16 %v3533, %v3532
    %v3913 = vpack.c.b16 %v3535, %v3534
    %v3914 = vpack.c.b16 %v3537, %v3536
    %v3915 = vpack.c.b16 %v3539, %v3538
    %v3916 = vpack.c.b16 %v3541, %v3540
    %v3917 = vpack.c.b16 %v3543, %v3542
    %v3918 = vpack.c.b16 %v3545, %v3544
    %v3919 = vpack.c.b16 %v3547, %v3546
    %v3920 = vpack.c.b16 %v3549, %v3548
    %v3921 = vpack.c.b16 %v3551, %v3550
    %v3922 = vpack.c.b16 %v3553, %v3552
    %v3923 = vpack.c.b16 %v3555, %v3554
    %v3924 = vpack.c.b16 %v3557, %v3556
    %v3925 = vpack.c.b16 %v3559, %v3558
    %v3926 = vpack.c.b16 %v3561, %v3560
    %v3927 = vpack.c.b16 %v3563, %v3562
    %v3928 = vpack.c.b16 %v3565, %v3564
    %v3929 = vpack.c.b16 %v3567, %v3566
    %v3930 = vpack.c.b16 %v3569, %v3568
    %v3931 = vpack.c.b16 %v3571, %v3570
    %v3932 = vpack.c.b16 %v3573, %v3572
    %v3933 = vpack.c.b16 %v3575, %v3574
    %v3934 = vpack.c.b16 %v3577, %v3576
    %v3935 = vpack.c.b16 %v3579, %v3578
    %v3936 = vpack.c.b16 %v3581, %v3580
    %v3937 = vpack.c.b16 %v3583, %v3582
    %v3938 = vpack.c.b16 %v3585, %v3584
    %v3939 = vpack.c.b16 %v3587, %v3586
    %v3940 = vpack.c.b16 %v3589, %v3588
    %v3941 = vpack.c.b16 %v3591, %v3590
    %v3942 = vpack.c.b16 %v3593, %v3592
    %v3943 = vpack.c.b16 %v3595, %v3594
    %v3944 = vpack.c.b16 %v3597, %v3596
    %v3945 = vpack.c.b16 %v3599, %v3598
    %v3946 = vpack.c.b16 %v3601, %v3600
    %v3947 = vpack.c.b16 %v3603, %v3602
    %v3948 = vpack.c.b16 %v3605, %v3604
    %v3949 = vpack.c.b16 %v3607, %v3606
    %v3950 = vpack.c.b16 %v3609, %v3608
    %v3951 = vpack.c.b16 %v3611, %v3610
    %v3952 = vpack.c.b16 %v3613, %v3612
    %v3953 = vpack.c.b16 %v3615, %v3614
    %v3954 = vpack.c.b16 %v3617, %v3616
    %v3955 = vpack.c.b16 %v3619, %v3618
    %v3956 = vpack.c.b16 %v3621, %v3620
    %v3957 = vpack.c.b16 %v3623, %v3622
    %v3958 = vpack.c.b16 %v3625, %v3624
    %v3959 = vpack.c.b16 %v3627, %v3626
    %v3960 = vpack.c.b16 %v3629, %v3628
    %v3961 = vpack.c.b16 %v3631, %v3630
    %v3962 = vpack.c.b16 %v3633, %v3632
    %v3963 = vpack.c.b16 %v3635, %v3634
    %v3964 = vpack.c.b16 %v3637, %v3636
    %v3965 = vpack.c.b16 %v3639, %v3638
    %v3966 = vpack.c.b16 %v3641, %v3640
    %v3967 = vpack.c.b16 %v3643, %v3642
    %v3968 = vpack.c.b16 %v3645, %v3644
    %v3969 = vpack.c.b16 %v3647, %v3646
    %v3970 = vpack.c.b16 %v3649, %v3648
    %v3971 = vpack.c.b16 %v3651, %v3650
    %v3972 = vpack.c.b16 %v3653, %v3652
    %v3973 = vpack.c.b16 %v3655, %v3654
    %v3974 = vpack.c.b16 %v3657, %v3656
    %v3975 = vpack.c.b16 %v3659, %v3658
    %v3976 = vpack.c.b16 %v3661, %v3660
    %v3977 = vpack.c.b16 %v3663, %v3662
    %v3978 = vpack.c.b16 %v3665, %v3664
    %v3979 = vpack.c.b16 %v3667, %v3666
    %v3980 = vpack.c.b16 %v3669, %v3668
    %v3981 = vpack.c.b16 %v3671, %v3670
    %v3982 = vpack.c.b16 %v3673, %v3672
    %v3983 = vpack.c.b16 %v3675, %v3674
    %v3984 = vpack.c.b16 %v3677, %v3676
    %v3985 = vpack.c.b16 %v3679, %v3678
    %v3986 = vpack.c.b16 %v3681, %v3680
    %v3987 = vpack.c.b16 %v3683, %v3682
    %v3988 = vpack.c.b16 %v3685, %v3684
    %v3989 = vpack.c.b16 %v3687, %v3686
    %v3990 = vpack.c.b16 %v3689, %v3688
    %v3991 = vpack.c.b16 %v3691, %v3690
    %v3992 = vpack.c.b16 %v3693, %v3692
    %v3993 = vpack.c.b16 %v3695, %v3694
    %v3994 = vpack.c.b16 %v3697, %v3696
    %v3995 = vpack.c.b16 %v3699, %v3698
    %v3996 = vpack.c.b16 %v3701, %v3700
    %v3997 = vpack.c.b16 %v3703, %v3702
    %v3998 = vpack.c.b16 %v3705, %v3704
    %v3999 = vpack.c.b16 %v3707, %v3706
    %v4000 = vpack.c.b16 %v3709, %v3708
    %v4001 = vpack.c.b16 %v3711, %v3710
    %v4002 = vpack.c.b16 %v3713, %v3712
    %v4003 = vpack.c.b16 %v3715, %v3714
    %v4004 = vpack.c.b16 %v3717, %v3716
    %v4005 = vpack.c.b16 %v3719, %v3718
    %v4006 = vpack.c.b16 %v3721, %v3720
    %v4007 = vpack.c.b16 %v3723, %v3722
    %v4008 = vpack.c.b16 %v3725, %v3724
    %v4009 = vpack.c.b16 %v3727, %v3726
    %v4010 = vpack.c.b16 %v3729, %v3728
    %v4011 = vpack.c.b16 %v3731, %v3730
    %v4012 = vpack.c.b16 %v3733, %v3732
    %v4013 = vpack.c.b16 %v3735, %v3734
    %v4014 = vpack.c.b16 %v3737, %v3736
    %v4015 = vpack.c.b16 %v3739, %v3738
    %v4016 = vpack.c.b16 %v3741, %v3740
    %v4017 = vpack.c.b16 %v3743, %v3742
    %v4018 = vpack.c.b16 %v3745, %v3744
    %v4019 = vpack.c.b16 %v3747, %v3746
    %v4020 = vpack.c.b16 %v3749, %v3748
    %v4021 = vpack.c.b16 %v3751, %v3750
    %v4022 = vpack.c.b16 %v3753, %v3752
    %v4023 = vpack.c.b16 %v3755, %v3754
    %v4024 = vpack.c.b16 %v3757, %v3756
    %v4025 = vpack.c.b16 %v3759, %v3758
    %v4026 = vpack.c.b16 %v3761, %v3760
    %v4027 = vpack.c.b16 %v3763, %v3762
    %v4028 = vpack.c.b16 %v3765, %v3764
    %v4029 = vpack.c.b16 %v3767, %v3766
    %v4030 = vpack.c.b16 %v3769, %v3768
    %v4031 = vpack.c.b16 %v3771, %v3770
    %v4032 = vpack.c.b16 %v3773, %v3772
    %v4033 = vpack.c.b16 %v3775, %v3774
    %v4034 = vpack.c.b16 %v3777, %v3776
    %v4035 = vpack.c.b16 %v3779, %v3778
    %4292 = vmatprep.subr.bf16.mxu0 0
    %4293 = vmatpush1.bf16.msra.mxu0 %v3787
    %4294 = vmatprep.subr.bf16.mxu0 0
    %4295 = vmatpush1.bf16.msra.mxu0 %v3786
    %4296 = vmatprep.subr.bf16.mxu0 0
    %4297 = vmatpush1.bf16.msra.mxu0 %v3785
    %4298 = vmatprep.subr.bf16.mxu0 0
    %4299 = vmatpush1.bf16.msra.mxu0 %v3784
    %4300 = vmatprep.subr.bf16.mxu0 0
    %4301 = vmatpush1.bf16.msra.mxu0 %v3783
    %4302 = vmatprep.subr.bf16.mxu0 0
    %4303 = vmatpush1.bf16.msra.mxu0 %v3782
    %4304 = vmatprep.subr.bf16.mxu0 0
    %4305 = vmatpush1.bf16.msra.mxu0 %v3781
    %4306 = vmatprep.subr.bf16.mxu0 0
    %4307 = vmatpush1.bf16.msra.mxu0 %v3780
    %4308 = vmatprep.subr.bf16.mxu0 0
    %4309 = vmatpush2.bf16.msra.mxu0 %v3795
    %4310 = vmatprep.subr.bf16.mxu0 0
    %4311 = vmatpush2.bf16.msra.mxu0 %v3794
    %4312 = vmatprep.subr.bf16.mxu0 0
    %4313 = vmatpush2.bf16.msra.mxu0 %v3793
    %4314 = vmatprep.subr.bf16.mxu0 0
    %4315 = vmatpush2.bf16.msra.mxu0 %v3792
    %4316 = vmatprep.subr.bf16.mxu0 0
    %4317 = vmatpush2.bf16.msra.mxu0 %v3791
    %4318 = vmatprep.subr.bf16.mxu0 0
    %4319 = vmatpush2.bf16.msra.mxu0 %v3790
    %4320 = vmatprep.subr.bf16.mxu0 0
    %4321 = vmatpush2.bf16.msra.mxu0 %v3789
    %4322 = vmatprep.subr.bf16.mxu0 0
    %4323 = vmatpush2.bf16.msra.mxu0 %v3788
    %4324 = vmatprep.mubr.bf16.mxu0 %v1883
    %4325 = vmatmul.mubr.bf16.gmra.mxu0 %v1882
    %v4326 = vpop.f32.mrf.mxu0
    %v4327 = vadd.f32 %v2754, %v4326
    %v4328 = vpop.f32.mrf.mxu0
    %v4329 = vpop.f32.mrf.mxu0
    %v4330 = vpop.f32.mrf.mxu0
    %4331 = vdwg.mxu0
    %4332 = vmatprep.subr.bf16.mxu0 0
    %4333 = vmatpush1.bf16.msra.mxu0 %v3803
    %4334 = vmatprep.subr.bf16.mxu0 0
    %4335 = vmatpush1.bf16.msra.mxu0 %v3802
    %4336 = vmatprep.subr.bf16.mxu0 0
    %4337 = vmatpush1.bf16.msra.mxu0 %v3801
    %4338 = vmatprep.subr.bf16.mxu0 0
    %4339 = vmatpush1.bf16.msra.mxu0 %v3800
    %4340 = vmatprep.subr.bf16.mxu0 0
    %4341 = vmatpush1.bf16.msra.mxu0 %v3799
    %4342 = vmatprep.subr.bf16.mxu0 0
    %4343 = vmatpush1.bf16.msra.mxu0 %v3798
    %4344 = vmatprep.subr.bf16.mxu0 0
    %4345 = vmatpush1.bf16.msra.mxu0 %v3797
    %4346 = vmatprep.subr.bf16.mxu0 0
    %4347 = vmatpush1.bf16.msra.mxu0 %v3796
    %4348 = vmatprep.subr.bf16.mxu0 0
    %4349 = vmatpush2.bf16.msra.mxu0 %v3811
    %4350 = vmatprep.subr.bf16.mxu0 0
    %4351 = vmatpush2.bf16.msra.mxu0 %v3810
    %4352 = vmatprep.subr.bf16.mxu0 0
    %4353 = vmatpush2.bf16.msra.mxu0 %v3809
    %4354 = vmatprep.subr.bf16.mxu0 0
    %4355 = vmatpush2.bf16.msra.mxu0 %v3808
    %4356 = vmatprep.subr.bf16.mxu0 0
    %4357 = vmatpush2.bf16.msra.mxu0 %v3807
    %4358 = vmatprep.subr.bf16.mxu0 0
    %4359 = vmatpush2.bf16.msra.mxu0 %v3806
    %4360 = vmatprep.subr.bf16.mxu0 0
    %4361 = vmatpush2.bf16.msra.mxu0 %v3805
    %4362 = vmatprep.subr.bf16.mxu0 0
    %4363 = vmatpush2.bf16.msra.mxu0 %v3804
    %4364 = vmatprep.mubr.bf16.mxu0 %v1885
    %4365 = vmatmul.mubr.bf16.gmra.mxu0 %v1884
    %v4366 = vpop.f32.mrf.mxu0
    %v4367 = vadd.f32 %v4327, %v4366
    %v4368 = vpop.f32.mrf.mxu0
    %v4369 = vpop.f32.mrf.mxu0
    %v4370 = vpop.f32.mrf.mxu0
    %4371 = vdwg.mxu0
    %4372 = vmatprep.subr.bf16.mxu0 0
    %4373 = vmatpush1.bf16.msra.mxu0 %v3819
    %4374 = vmatprep.subr.bf16.mxu0 0
    %4375 = vmatpush1.bf16.msra.mxu0 %v3818
    %4376 = vmatprep.subr.bf16.mxu0 0
    %4377 = vmatpush1.bf16.msra.mxu0 %v3817
    %4378 = vmatprep.subr.bf16.mxu0 0
    %4379 = vmatpush1.bf16.msra.mxu0 %v3816
    %4380 = vmatprep.subr.bf16.mxu0 0
    %4381 = vmatpush1.bf16.msra.mxu0 %v3815
    %4382 = vmatprep.subr.bf16.mxu0 0
    %4383 = vmatpush1.bf16.msra.mxu0 %v3814
    %4384 = vmatprep.subr.bf16.mxu0 0
    %4385 = vmatpush1.bf16.msra.mxu0 %v3813
    %4386 = vmatprep.subr.bf16.mxu0 0
    %4387 = vmatpush1.bf16.msra.mxu0 %v3812
    %4388 = vmatprep.subr.bf16.mxu0 0
    %4389 = vmatpush2.bf16.msra.mxu0 %v3827
    %4390 = vmatprep.subr.bf16.mxu0 0
    %4391 = vmatpush2.bf16.msra.mxu0 %v3826
    %4392 = vmatprep.subr.bf16.mxu0 0
    %4393 = vmatpush2.bf16.msra.mxu0 %v3825
    %4394 = vmatprep.subr.bf16.mxu0 0
    %4395 = vmatpush2.bf16.msra.mxu0 %v3824
    %4396 = vmatprep.subr.bf16.mxu0 0
    %4397 = vmatpush2.bf16.msra.mxu0 %v3823
    %4398 = vmatprep.subr.bf16.mxu0 0
    %4399 = vmatpush2.bf16.msra.mxu0 %v3822
    %4400 = vmatprep.subr.bf16.mxu0 0
    %4401 = vmatpush2.bf16.msra.mxu0 %v3821
    %4402 = vmatprep.subr.bf16.mxu0 0
    %4403 = vmatpush2.bf16.msra.mxu0 %v3820
    %4404 = vmatprep.mubr.bf16.mxu0 %v1887
    %4405 = vmatmul.mubr.bf16.gmra.mxu0 %v1886
    %v4406 = vpop.f32.mrf.mxu0
    %v4407 = vadd.f32 %v4367, %v4406
    %v4408 = vpop.f32.mrf.mxu0
    %v4409 = vpop.f32.mrf.mxu0
    %v4410 = vpop.f32.mrf.mxu0
    %4411 = vdwg.mxu0
    %4412 = vmatprep.subr.bf16.mxu0 0
    %4413 = vmatpush1.bf16.msra.mxu0 %v3835
    %4414 = vmatprep.subr.bf16.mxu0 0
    %4415 = vmatpush1.bf16.msra.mxu0 %v3834
    %4416 = vmatprep.subr.bf16.mxu0 0
    %4417 = vmatpush1.bf16.msra.mxu0 %v3833
    %4418 = vmatprep.subr.bf16.mxu0 0
    %4419 = vmatpush1.bf16.msra.mxu0 %v3832
    %4420 = vmatprep.subr.bf16.mxu0 0
    %4421 = vmatpush1.bf16.msra.mxu0 %v3831
    %4422 = vmatprep.subr.bf16.mxu0 0
    %4423 = vmatpush1.bf16.msra.mxu0 %v3830
    %4424 = vmatprep.subr.bf16.mxu0 0
    %4425 = vmatpush1.bf16.msra.mxu0 %v3829
    %4426 = vmatprep.subr.bf16.mxu0 0
    %4427 = vmatpush1.bf16.msra.mxu0 %v3828
    %4428 = vmatprep.subr.bf16.mxu0 0
    %4429 = vmatpush2.bf16.msra.mxu0 %v3843
    %4430 = vmatprep.subr.bf16.mxu0 0
    %4431 = vmatpush2.bf16.msra.mxu0 %v3842
    %4432 = vmatprep.subr.bf16.mxu0 0
    %4433 = vmatpush2.bf16.msra.mxu0 %v3841
    %4434 = vmatprep.subr.bf16.mxu0 0
    %4435 = vmatpush2.bf16.msra.mxu0 %v3840
    %4436 = vmatprep.subr.bf16.mxu0 0
    %4437 = vmatpush2.bf16.msra.mxu0 %v3839
    %4438 = vmatprep.subr.bf16.mxu0 0
    %4439 = vmatpush2.bf16.msra.mxu0 %v3838
    %4440 = vmatprep.subr.bf16.mxu0 0
    %4441 = vmatpush2.bf16.msra.mxu0 %v3837
    %4442 = vmatprep.subr.bf16.mxu0 0
    %4443 = vmatpush2.bf16.msra.mxu0 %v3836
    %4444 = vmatprep.mubr.bf16.mxu0 %v1889
    %4445 = vmatmul.mubr.bf16.gmra.mxu0 %v1888
    %v4446 = vpop.f32.mrf.mxu0
    %v4447 = vadd.f32 %v4407, %v4446
    %v4448 = vpop.f32.mrf.mxu0
    %v4449 = vpop.f32.mrf.mxu0
    %v4450 = vpop.f32.mrf.mxu0
    %4451 = vdwg.mxu0
    %4452 = vmatprep.subr.bf16.mxu0 0
    %4453 = vmatpush1.bf16.msra.mxu0 %v3851
    %4454 = vmatprep.subr.bf16.mxu0 0
    %4455 = vmatpush1.bf16.msra.mxu0 %v3850
    %4456 = vmatprep.subr.bf16.mxu0 0
    %4457 = vmatpush1.bf16.msra.mxu0 %v3849
    %4458 = vmatprep.subr.bf16.mxu0 0
    %4459 = vmatpush1.bf16.msra.mxu0 %v3848
    %4460 = vmatprep.subr.bf16.mxu0 0
    %4461 = vmatpush1.bf16.msra.mxu0 %v3847
    %4462 = vmatprep.subr.bf16.mxu0 0
    %4463 = vmatpush1.bf16.msra.mxu0 %v3846
    %4464 = vmatprep.subr.bf16.mxu0 0
    %4465 = vmatpush1.bf16.msra.mxu0 %v3845
    %4466 = vmatprep.subr.bf16.mxu0 0
    %4467 = vmatpush1.bf16.msra.mxu0 %v3844
    %4468 = vmatprep.subr.bf16.mxu0 0
    %4469 = vmatpush2.bf16.msra.mxu0 %v3859
    %4470 = vmatprep.subr.bf16.mxu0 0
    %4471 = vmatpush2.bf16.msra.mxu0 %v3858
    %4472 = vmatprep.subr.bf16.mxu0 0
    %4473 = vmatpush2.bf16.msra.mxu0 %v3857
    %4474 = vmatprep.subr.bf16.mxu0 0
    %4475 = vmatpush2.bf16.msra.mxu0 %v3856
    %4476 = vmatprep.subr.bf16.mxu0 0
    %4477 = vmatpush2.bf16.msra.mxu0 %v3855
    %4478 = vmatprep.subr.bf16.mxu0 0
    %4479 = vmatpush2.bf16.msra.mxu0 %v3854
    %4480 = vmatprep.subr.bf16.mxu0 0
    %4481 = vmatpush2.bf16.msra.mxu0 %v3853
    %4482 = vmatprep.subr.bf16.mxu0 0
    %4483 = vmatpush2.bf16.msra.mxu0 %v3852
    %4484 = vmatprep.mubr.bf16.mxu0 %v1891
    %4485 = vmatmul.mubr.bf16.gmra.mxu0 %v1890
    %v4486 = vpop.f32.mrf.mxu0
    %v4487 = vadd.f32 %v4447, %v4486
    %v4488 = vpop.f32.mrf.mxu0
    %v4489 = vpop.f32.mrf.mxu0
    %v4490 = vpop.f32.mrf.mxu0
    %4491 = vdwg.mxu0
    %4492 = vmatprep.subr.bf16.mxu0 0
    %4493 = vmatpush1.bf16.msra.mxu0 %v3867
    %4494 = vmatprep.subr.bf16.mxu0 0
    %4495 = vmatpush1.bf16.msra.mxu0 %v3866
    %4496 = vmatprep.subr.bf16.mxu0 0
    %4497 = vmatpush1.bf16.msra.mxu0 %v3865
    %4498 = vmatprep.subr.bf16.mxu0 0
    %4499 = vmatpush1.bf16.msra.mxu0 %v3864
    %4500 = vmatprep.subr.bf16.mxu0 0
    %4501 = vmatpush1.bf16.msra.mxu0 %v3863
    %4502 = vmatprep.subr.bf16.mxu0 0
    %4503 = vmatpush1.bf16.msra.mxu0 %v3862
    %4504 = vmatprep.subr.bf16.mxu0 0
    %4505 = vmatpush1.bf16.msra.mxu0 %v3861
    %4506 = vmatprep.subr.bf16.mxu0 0
    %4507 = vmatpush1.bf16.msra.mxu0 %v3860
    %4508 = vmatprep.subr.bf16.mxu0 0
    %4509 = vmatpush2.bf16.msra.mxu0 %v3875
    %4510 = vmatprep.subr.bf16.mxu0 0
    %4511 = vmatpush2.bf16.msra.mxu0 %v3874
    %4512 = vmatprep.subr.bf16.mxu0 0
    %4513 = vmatpush2.bf16.msra.mxu0 %v3873
    %4514 = vmatprep.subr.bf16.mxu0 0
    %4515 = vmatpush2.bf16.msra.mxu0 %v3872
    %4516 = vmatprep.subr.bf16.mxu0 0
    %4517 = vmatpush2.bf16.msra.mxu0 %v3871
    %4518 = vmatprep.subr.bf16.mxu0 0
    %4519 = vmatpush2.bf16.msra.mxu0 %v3870
    %4520 = vmatprep.subr.bf16.mxu0 0
    %4521 = vmatpush2.bf16.msra.mxu0 %v3869
    %4522 = vmatprep.subr.bf16.mxu0 0
    %4523 = vmatpush2.bf16.msra.mxu0 %v3868
    %4524 = vmatprep.mubr.bf16.mxu0 %v1893
    %4525 = vmatmul.mubr.bf16.gmra.mxu0 %v1892
    %v4526 = vpop.f32.mrf.mxu0
    %v4527 = vadd.f32 %v4487, %v4526
    %v4528 = vpop.f32.mrf.mxu0
    %v4529 = vpop.f32.mrf.mxu0
    %v4530 = vpop.f32.mrf.mxu0
    %4531 = vdwg.mxu0
    %4532 = vmatprep.subr.bf16.mxu0 0
    %4533 = vmatpush1.bf16.msra.mxu0 %v3883
    %4534 = vmatprep.subr.bf16.mxu0 0
    %4535 = vmatpush1.bf16.msra.mxu0 %v3882
    %4536 = vmatprep.subr.bf16.mxu0 0
    %4537 = vmatpush1.bf16.msra.mxu0 %v3881
    %4538 = vmatprep.subr.bf16.mxu0 0
    %4539 = vmatpush1.bf16.msra.mxu0 %v3880
    %4540 = vmatprep.subr.bf16.mxu0 0
    %4541 = vmatpush1.bf16.msra.mxu0 %v3879
    %4542 = vmatprep.subr.bf16.mxu0 0
    %4543 = vmatpush1.bf16.msra.mxu0 %v3878
    %4544 = vmatprep.subr.bf16.mxu0 0
    %4545 = vmatpush1.bf16.msra.mxu0 %v3877
    %4546 = vmatprep.subr.bf16.mxu0 0
    %4547 = vmatpush1.bf16.msra.mxu0 %v3876
    %4548 = vmatprep.subr.bf16.mxu0 0
    %4549 = vmatpush2.bf16.msra.mxu0 %v3891
    %4550 = vmatprep.subr.bf16.mxu0 0
    %4551 = vmatpush2.bf16.msra.mxu0 %v3890
    %4552 = vmatprep.subr.bf16.mxu0 0
    %4553 = vmatpush2.bf16.msra.mxu0 %v3889
    %4554 = vmatprep.subr.bf16.mxu0 0
    %4555 = vmatpush2.bf16.msra.mxu0 %v3888
    %4556 = vmatprep.subr.bf16.mxu0 0
    %4557 = vmatpush2.bf16.msra.mxu0 %v3887
    %4558 = vmatprep.subr.bf16.mxu0 0
    %4559 = vmatpush2.bf16.msra.mxu0 %v3886
    %4560 = vmatprep.subr.bf16.mxu0 0
    %4561 = vmatpush2.bf16.msra.mxu0 %v3885
    %4562 = vmatprep.subr.bf16.mxu0 0
    %4563 = vmatpush2.bf16.msra.mxu0 %v3884
    %4564 = vmatprep.mubr.bf16.mxu0 %v1895
    %4565 = vmatmul.mubr.bf16.gmra.mxu0 %v1894
    %v4566 = vpop.f32.mrf.mxu0
    %v4567 = vadd.f32 %v4527, %v4566
    %v4568 = vpop.f32.mrf.mxu0
    %v4569 = vpop.f32.mrf.mxu0
    %v4570 = vpop.f32.mrf.mxu0
    %4571 = vdwg.mxu0
    %4572 = vmatprep.subr.bf16.mxu0 0
    %4573 = vmatpush1.bf16.msra.mxu0 %v3899
    %4574 = vmatprep.subr.bf16.mxu0 0
    %4575 = vmatpush1.bf16.msra.mxu0 %v3898
    %4576 = vmatprep.subr.bf16.mxu0 0
    %4577 = vmatpush1.bf16.msra.mxu0 %v3897
    %4578 = vmatprep.subr.bf16.mxu0 0
    %4579 = vmatpush1.bf16.msra.mxu0 %v3896
    %4580 = vmatprep.subr.bf16.mxu0 0
    %4581 = vmatpush1.bf16.msra.mxu0 %v3895
    %4582 = vmatprep.subr.bf16.mxu0 0
    %4583 = vmatpush1.bf16.msra.mxu0 %v3894
    %4584 = vmatprep.subr.bf16.mxu0 0
    %4585 = vmatpush1.bf16.msra.mxu0 %v3893
    %4586 = vmatprep.subr.bf16.mxu0 0
    %4587 = vmatpush1.bf16.msra.mxu0 %v3892
    %4588 = vmatprep.subr.bf16.mxu0 0
    %4589 = vmatpush2.bf16.msra.mxu0 %v3907
    %4590 = vmatprep.subr.bf16.mxu0 0
    %4591 = vmatpush2.bf16.msra.mxu0 %v3906
    %4592 = vmatprep.subr.bf16.mxu0 0
    %4593 = vmatpush2.bf16.msra.mxu0 %v3905
    %4594 = vmatprep.subr.bf16.mxu0 0
    %4595 = vmatpush2.bf16.msra.mxu0 %v3904
    %4596 = vmatprep.subr.bf16.mxu0 0
    %4597 = vmatpush2.bf16.msra.mxu0 %v3903
    %4598 = vmatprep.subr.bf16.mxu0 0
    %4599 = vmatpush2.bf16.msra.mxu0 %v3902
    %4600 = vmatprep.subr.bf16.mxu0 0
    %4601 = vmatpush2.bf16.msra.mxu0 %v3901
    %4602 = vmatprep.subr.bf16.mxu0 0
    %4603 = vmatpush2.bf16.msra.mxu0 %v3900
    %4604 = vmatprep.mubr.bf16.mxu0 %v1897
    %4605 = vmatmul.mubr.bf16.gmra.mxu0 %v1896
    %v4606 = vpop.f32.mrf.mxu0
    %v4607 = vadd.f32 %v4567, %v4606
    %v4608 = vpop.f32.mrf.mxu0
    %v4609 = vpop.f32.mrf.mxu0
    %v4610 = vpop.f32.mrf.mxu0
    %4611 = vdwg.mxu0
    %4612 = vmatprep.subr.bf16.mxu0 0
    %4613 = vmatpush1.bf16.msra.mxu0 %v3915
    %4614 = vmatprep.subr.bf16.mxu0 0
    %4615 = vmatpush1.bf16.msra.mxu0 %v3914
    %4616 = vmatprep.subr.bf16.mxu0 0
    %4617 = vmatpush1.bf16.msra.mxu0 %v3913
    %4618 = vmatprep.subr.bf16.mxu0 0
    %4619 = vmatpush1.bf16.msra.mxu0 %v3912
    %4620 = vmatprep.subr.bf16.mxu0 0
    %4621 = vmatpush1.bf16.msra.mxu0 %v3911
    %4622 = vmatprep.subr.bf16.mxu0 0
    %4623 = vmatpush1.bf16.msra.mxu0 %v3910
    %4624 = vmatprep.subr.bf16.mxu0 0
    %4625 = vmatpush1.bf16.msra.mxu0 %v3909
    %4626 = vmatprep.subr.bf16.mxu0 0
    %4627 = vmatpush1.bf16.msra.mxu0 %v3908
    %4628 = vmatprep.subr.bf16.mxu0 0
    %4629 = vmatpush2.bf16.msra.mxu0 %v3923
    %4630 = vmatprep.subr.bf16.mxu0 0
    %4631 = vmatpush2.bf16.msra.mxu0 %v3922
    %4632 = vmatprep.subr.bf16.mxu0 0
    %4633 = vmatpush2.bf16.msra.mxu0 %v3921
    %4634 = vmatprep.subr.bf16.mxu0 0
    %4635 = vmatpush2.bf16.msra.mxu0 %v3920
    %4636 = vmatprep.subr.bf16.mxu0 0
    %4637 = vmatpush2.bf16.msra.mxu0 %v3919
    %4638 = vmatprep.subr.bf16.mxu0 0
    %4639 = vmatpush2.bf16.msra.mxu0 %v3918
    %4640 = vmatprep.subr.bf16.mxu0 0
    %4641 = vmatpush2.bf16.msra.mxu0 %v3917
    %4642 = vmatprep.subr.bf16.mxu0 0
    %4643 = vmatpush2.bf16.msra.mxu0 %v3916
    %4644 = vmatprep.mubr.bf16.mxu0 %v1899
    %4645 = vmatmul.mubr.bf16.gmra.mxu0 %v1898
    %v4646 = vpop.f32.mrf.mxu0
    %v4647 = vadd.f32 %v4607, %v4646
    %v4648 = vpop.f32.mrf.mxu0
    %v4649 = vpop.f32.mrf.mxu0
    %v4650 = vpop.f32.mrf.mxu0
    %4651 = vdwg.mxu0
    %4652 = vmatprep.subr.bf16.mxu0 0
    %4653 = vmatpush1.bf16.msra.mxu0 %v3931
    %4654 = vmatprep.subr.bf16.mxu0 0
    %4655 = vmatpush1.bf16.msra.mxu0 %v3930
    %4656 = vmatprep.subr.bf16.mxu0 0
    %4657 = vmatpush1.bf16.msra.mxu0 %v3929
    %4658 = vmatprep.subr.bf16.mxu0 0
    %4659 = vmatpush1.bf16.msra.mxu0 %v3928
    %4660 = vmatprep.subr.bf16.mxu0 0
    %4661 = vmatpush1.bf16.msra.mxu0 %v3927
    %4662 = vmatprep.subr.bf16.mxu0 0
    %4663 = vmatpush1.bf16.msra.mxu0 %v3926
    %4664 = vmatprep.subr.bf16.mxu0 0
    %4665 = vmatpush1.bf16.msra.mxu0 %v3925
    %4666 = vmatprep.subr.bf16.mxu0 0
    %4667 = vmatpush1.bf16.msra.mxu0 %v3924
    %4668 = vmatprep.subr.bf16.mxu0 0
    %4669 = vmatpush2.bf16.msra.mxu0 %v3939
    %4670 = vmatprep.subr.bf16.mxu0 0
    %4671 = vmatpush2.bf16.msra.mxu0 %v3938
    %4672 = vmatprep.subr.bf16.mxu0 0
    %4673 = vmatpush2.bf16.msra.mxu0 %v3937
    %4674 = vmatprep.subr.bf16.mxu0 0
    %4675 = vmatpush2.bf16.msra.mxu0 %v3936
    %4676 = vmatprep.subr.bf16.mxu0 0
    %4677 = vmatpush2.bf16.msra.mxu0 %v3935
    %4678 = vmatprep.subr.bf16.mxu0 0
    %4679 = vmatpush2.bf16.msra.mxu0 %v3934
    %4680 = vmatprep.subr.bf16.mxu0 0
    %4681 = vmatpush2.bf16.msra.mxu0 %v3933
    %4682 = vmatprep.subr.bf16.mxu0 0
    %4683 = vmatpush2.bf16.msra.mxu0 %v3932
    %4684 = vmatprep.mubr.bf16.mxu0 %v1901
    %4685 = vmatmul.mubr.bf16.gmra.mxu0 %v1900
    %v4686 = vpop.f32.mrf.mxu0
    %v4687 = vadd.f32 %v4647, %v4686
    %v4688 = vpop.f32.mrf.mxu0
    %v4689 = vpop.f32.mrf.mxu0
    %v4690 = vpop.f32.mrf.mxu0
    %4691 = vdwg.mxu0
    %4692 = vmatprep.subr.bf16.mxu0 0
    %4693 = vmatpush1.bf16.msra.mxu0 %v3947
    %4694 = vmatprep.subr.bf16.mxu0 0
    %4695 = vmatpush1.bf16.msra.mxu0 %v3946
    %4696 = vmatprep.subr.bf16.mxu0 0
    %4697 = vmatpush1.bf16.msra.mxu0 %v3945
    %4698 = vmatprep.subr.bf16.mxu0 0
    %4699 = vmatpush1.bf16.msra.mxu0 %v3944
    %4700 = vmatprep.subr.bf16.mxu0 0
    %4701 = vmatpush1.bf16.msra.mxu0 %v3943
    %4702 = vmatprep.subr.bf16.mxu0 0
    %4703 = vmatpush1.bf16.msra.mxu0 %v3942
    %4704 = vmatprep.subr.bf16.mxu0 0
    %4705 = vmatpush1.bf16.msra.mxu0 %v3941
    %4706 = vmatprep.subr.bf16.mxu0 0
    %4707 = vmatpush1.bf16.msra.mxu0 %v3940
    %4708 = vmatprep.subr.bf16.mxu0 0
    %4709 = vmatpush2.bf16.msra.mxu0 %v3955
    %4710 = vmatprep.subr.bf16.mxu0 0
    %4711 = vmatpush2.bf16.msra.mxu0 %v3954
    %4712 = vmatprep.subr.bf16.mxu0 0
    %4713 = vmatpush2.bf16.msra.mxu0 %v3953
    %4714 = vmatprep.subr.bf16.mxu0 0
    %4715 = vmatpush2.bf16.msra.mxu0 %v3952
    %4716 = vmatprep.subr.bf16.mxu0 0
    %4717 = vmatpush2.bf16.msra.mxu0 %v3951
    %4718 = vmatprep.subr.bf16.mxu0 0
    %4719 = vmatpush2.bf16.msra.mxu0 %v3950
    %4720 = vmatprep.subr.bf16.mxu0 0
    %4721 = vmatpush2.bf16.msra.mxu0 %v3949
    %4722 = vmatprep.subr.bf16.mxu0 0
    %4723 = vmatpush2.bf16.msra.mxu0 %v3948
    %4724 = vmatprep.mubr.bf16.mxu0 %v1903
    %4725 = vmatmul.mubr.bf16.gmra.mxu0 %v1902
    %v4726 = vpop.f32.mrf.mxu0
    %v4727 = vadd.f32 %v4687, %v4726
    %v4728 = vpop.f32.mrf.mxu0
    %v4729 = vpop.f32.mrf.mxu0
    %v4730 = vpop.f32.mrf.mxu0
    %4731 = vdwg.mxu0
    %4732 = vmatprep.subr.bf16.mxu0 0
    %4733 = vmatpush1.bf16.msra.mxu0 %v3963
    %4734 = vmatprep.subr.bf16.mxu0 0
    %4735 = vmatpush1.bf16.msra.mxu0 %v3962
    %4736 = vmatprep.subr.bf16.mxu0 0
    %4737 = vmatpush1.bf16.msra.mxu0 %v3961
    %4738 = vmatprep.subr.bf16.mxu0 0
    %4739 = vmatpush1.bf16.msra.mxu0 %v3960
    %4740 = vmatprep.subr.bf16.mxu0 0
    %4741 = vmatpush1.bf16.msra.mxu0 %v3959
    %4742 = vmatprep.subr.bf16.mxu0 0
    %4743 = vmatpush1.bf16.msra.mxu0 %v3958
    %4744 = vmatprep.subr.bf16.mxu0 0
    %4745 = vmatpush1.bf16.msra.mxu0 %v3957
    %4746 = vmatprep.subr.bf16.mxu0 0
    %4747 = vmatpush1.bf16.msra.mxu0 %v3956
    %4748 = vmatprep.subr.bf16.mxu0 0
    %4749 = vmatpush2.bf16.msra.mxu0 %v3971
    %4750 = vmatprep.subr.bf16.mxu0 0
    %4751 = vmatpush2.bf16.msra.mxu0 %v3970
    %4752 = vmatprep.subr.bf16.mxu0 0
    %4753 = vmatpush2.bf16.msra.mxu0 %v3969
    %4754 = vmatprep.subr.bf16.mxu0 0
    %4755 = vmatpush2.bf16.msra.mxu0 %v3968
    %4756 = vmatprep.subr.bf16.mxu0 0
    %4757 = vmatpush2.bf16.msra.mxu0 %v3967
    %4758 = vmatprep.subr.bf16.mxu0 0
    %4759 = vmatpush2.bf16.msra.mxu0 %v3966
    %4760 = vmatprep.subr.bf16.mxu0 0
    %4761 = vmatpush2.bf16.msra.mxu0 %v3965
    %4762 = vmatprep.subr.bf16.mxu0 0
    %4763 = vmatpush2.bf16.msra.mxu0 %v3964
    %4764 = vmatprep.mubr.bf16.mxu0 %v1905
    %4765 = vmatmul.mubr.bf16.gmra.mxu0 %v1904
    %v4766 = vpop.f32.mrf.mxu0
    %v4767 = vadd.f32 %v4727, %v4766
    %v4768 = vpop.f32.mrf.mxu0
    %v4769 = vpop.f32.mrf.mxu0
    %v4770 = vpop.f32.mrf.mxu0
    %4771 = vdwg.mxu0
    %4772 = vmatprep.subr.bf16.mxu0 0
    %4773 = vmatpush1.bf16.msra.mxu0 %v3979
    %4774 = vmatprep.subr.bf16.mxu0 0
    %4775 = vmatpush1.bf16.msra.mxu0 %v3978
    %4776 = vmatprep.subr.bf16.mxu0 0
    %4777 = vmatpush1.bf16.msra.mxu0 %v3977
    %4778 = vmatprep.subr.bf16.mxu0 0
    %4779 = vmatpush1.bf16.msra.mxu0 %v3976
    %4780 = vmatprep.subr.bf16.mxu0 0
    %4781 = vmatpush1.bf16.msra.mxu0 %v3975
    %4782 = vmatprep.subr.bf16.mxu0 0
    %4783 = vmatpush1.bf16.msra.mxu0 %v3974
    %4784 = vmatprep.subr.bf16.mxu0 0
    %4785 = vmatpush1.bf16.msra.mxu0 %v3973
    %4786 = vmatprep.subr.bf16.mxu0 0
    %4787 = vmatpush1.bf16.msra.mxu0 %v3972
    %4788 = vmatprep.subr.bf16.mxu0 0
    %4789 = vmatpush2.bf16.msra.mxu0 %v3987
    %4790 = vmatprep.subr.bf16.mxu0 0
    %4791 = vmatpush2.bf16.msra.mxu0 %v3986
    %4792 = vmatprep.subr.bf16.mxu0 0
    %4793 = vmatpush2.bf16.msra.mxu0 %v3985
    %4794 = vmatprep.subr.bf16.mxu0 0
    %4795 = vmatpush2.bf16.msra.mxu0 %v3984
    %4796 = vmatprep.subr.bf16.mxu0 0
    %4797 = vmatpush2.bf16.msra.mxu0 %v3983
    %4798 = vmatprep.subr.bf16.mxu0 0
    %4799 = vmatpush2.bf16.msra.mxu0 %v3982
    %4800 = vmatprep.subr.bf16.mxu0 0
    %4801 = vmatpush2.bf16.msra.mxu0 %v3981
    %4802 = vmatprep.subr.bf16.mxu0 0
    %4803 = vmatpush2.bf16.msra.mxu0 %v3980
    %4804 = vmatprep.mubr.bf16.mxu0 %v1907
    %4805 = vmatmul.mubr.bf16.gmra.mxu0 %v1906
    %v4806 = vpop.f32.mrf.mxu0
    %v4807 = vadd.f32 %v4767, %v4806
    %v4808 = vpop.f32.mrf.mxu0
    %v4809 = vpop.f32.mrf.mxu0
    %v4810 = vpop.f32.mrf.mxu0
    %4811 = vdwg.mxu0
    %4812 = vmatprep.subr.bf16.mxu0 0
    %4813 = vmatpush1.bf16.msra.mxu0 %v3995
    %4814 = vmatprep.subr.bf16.mxu0 0
    %4815 = vmatpush1.bf16.msra.mxu0 %v3994
    %4816 = vmatprep.subr.bf16.mxu0 0
    %4817 = vmatpush1.bf16.msra.mxu0 %v3993
    %4818 = vmatprep.subr.bf16.mxu0 0
    %4819 = vmatpush1.bf16.msra.mxu0 %v3992
    %4820 = vmatprep.subr.bf16.mxu0 0
    %4821 = vmatpush1.bf16.msra.mxu0 %v3991
    %4822 = vmatprep.subr.bf16.mxu0 0
    %4823 = vmatpush1.bf16.msra.mxu0 %v3990
    %4824 = vmatprep.subr.bf16.mxu0 0
    %4825 = vmatpush1.bf16.msra.mxu0 %v3989
    %4826 = vmatprep.subr.bf16.mxu0 0
    %4827 = vmatpush1.bf16.msra.mxu0 %v3988
    %4828 = vmatprep.subr.bf16.mxu0 0
    %4829 = vmatpush2.bf16.msra.mxu0 %v4003
    %4830 = vmatprep.subr.bf16.mxu0 0
    %4831 = vmatpush2.bf16.msra.mxu0 %v4002
    %4832 = vmatprep.subr.bf16.mxu0 0
    %4833 = vmatpush2.bf16.msra.mxu0 %v4001
    %4834 = vmatprep.subr.bf16.mxu0 0
    %4835 = vmatpush2.bf16.msra.mxu0 %v4000
    %4836 = vmatprep.subr.bf16.mxu0 0
    %4837 = vmatpush2.bf16.msra.mxu0 %v3999
    %4838 = vmatprep.subr.bf16.mxu0 0
    %4839 = vmatpush2.bf16.msra.mxu0 %v3998
    %4840 = vmatprep.subr.bf16.mxu0 0
    %4841 = vmatpush2.bf16.msra.mxu0 %v3997
    %4842 = vmatprep.subr.bf16.mxu0 0
    %4843 = vmatpush2.bf16.msra.mxu0 %v3996
    %4844 = vmatprep.mubr.bf16.mxu0 %v1909
    %4845 = vmatmul.mubr.bf16.gmra.mxu0 %v1908
    %v4846 = vpop.f32.mrf.mxu0
    %v4847 = vadd.f32 %v4807, %v4846
    %v4848 = vpop.f32.mrf.mxu0
    %v4849 = vpop.f32.mrf.mxu0
    %v4850 = vpop.f32.mrf.mxu0
    %4851 = vdwg.mxu0
    %4852 = vmatprep.subr.bf16.mxu0 0
    %4853 = vmatpush1.bf16.msra.mxu0 %v4011
    %4854 = vmatprep.subr.bf16.mxu0 0
    %4855 = vmatpush1.bf16.msra.mxu0 %v4010
    %4856 = vmatprep.subr.bf16.mxu0 0
    %4857 = vmatpush1.bf16.msra.mxu0 %v4009
    %4858 = vmatprep.subr.bf16.mxu0 0
    %4859 = vmatpush1.bf16.msra.mxu0 %v4008
    %4860 = vmatprep.subr.bf16.mxu0 0
    %4861 = vmatpush1.bf16.msra.mxu0 %v4007
    %4862 = vmatprep.subr.bf16.mxu0 0
    %4863 = vmatpush1.bf16.msra.mxu0 %v4006
    %4864 = vmatprep.subr.bf16.mxu0 0
    %4865 = vmatpush1.bf16.msra.mxu0 %v4005
    %4866 = vmatprep.subr.bf16.mxu0 0
    %4867 = vmatpush1.bf16.msra.mxu0 %v4004
    %4868 = vmatprep.subr.bf16.mxu0 0
    %4869 = vmatpush2.bf16.msra.mxu0 %v4019
    %4870 = vmatprep.subr.bf16.mxu0 0
    %4871 = vmatpush2.bf16.msra.mxu0 %v4018
    %4872 = vmatprep.subr.bf16.mxu0 0
    %4873 = vmatpush2.bf16.msra.mxu0 %v4017
    %4874 = vmatprep.subr.bf16.mxu0 0
    %4875 = vmatpush2.bf16.msra.mxu0 %v4016
    %4876 = vmatprep.subr.bf16.mxu0 0
    %4877 = vmatpush2.bf16.msra.mxu0 %v4015
    %4878 = vmatprep.subr.bf16.mxu0 0
    %4879 = vmatpush2.bf16.msra.mxu0 %v4014
    %4880 = vmatprep.subr.bf16.mxu0 0
    %4881 = vmatpush2.bf16.msra.mxu0 %v4013
    %4882 = vmatprep.subr.bf16.mxu0 0
    %4883 = vmatpush2.bf16.msra.mxu0 %v4012
    %4884 = vmatprep.mubr.bf16.mxu0 %v1911
    %4885 = vmatmul.mubr.bf16.gmra.mxu0 %v1910
    %v4886 = vpop.f32.mrf.mxu0
    %v4887 = vadd.f32 %v4847, %v4886
    %v4888 = vpop.f32.mrf.mxu0
    %v4889 = vpop.f32.mrf.mxu0
    %v4890 = vpop.f32.mrf.mxu0
    %4891 = vdwg.mxu0
    %4892 = vmatprep.subr.bf16.mxu0 0
    %4893 = vmatpush1.bf16.msra.mxu0 %v4027
    %4894 = vmatprep.subr.bf16.mxu0 0
    %4895 = vmatpush1.bf16.msra.mxu0 %v4026
    %4896 = vmatprep.subr.bf16.mxu0 0
    %4897 = vmatpush1.bf16.msra.mxu0 %v4025
    %4898 = vmatprep.subr.bf16.mxu0 0
    %4899 = vmatpush1.bf16.msra.mxu0 %v4024
    %4900 = vmatprep.subr.bf16.mxu0 0
    %4901 = vmatpush1.bf16.msra.mxu0 %v4023
    %4902 = vmatprep.subr.bf16.mxu0 0
    %4903 = vmatpush1.bf16.msra.mxu0 %v4022
    %4904 = vmatprep.subr.bf16.mxu0 0
    %4905 = vmatpush1.bf16.msra.mxu0 %v4021
    %4906 = vmatprep.subr.bf16.mxu0 0
    %4907 = vmatpush1.bf16.msra.mxu0 %v4020
    %4908 = vmatprep.subr.bf16.mxu0 0
    %4909 = vmatpush2.bf16.msra.mxu0 %v4035
    %4910 = vmatprep.subr.bf16.mxu0 0
    %4911 = vmatpush2.bf16.msra.mxu0 %v4034
    %4912 = vmatprep.subr.bf16.mxu0 0
    %4913 = vmatpush2.bf16.msra.mxu0 %v4033
    %4914 = vmatprep.subr.bf16.mxu0 0
    %4915 = vmatpush2.bf16.msra.mxu0 %v4032
    %4916 = vmatprep.subr.bf16.mxu0 0
    %4917 = vmatpush2.bf16.msra.mxu0 %v4031
    %4918 = vmatprep.subr.bf16.mxu0 0
    %4919 = vmatpush2.bf16.msra.mxu0 %v4030
    %4920 = vmatprep.subr.bf16.mxu0 0
    %4921 = vmatpush2.bf16.msra.mxu0 %v4029
    %4922 = vmatprep.subr.bf16.mxu0 0
    %4923 = vmatpush2.bf16.msra.mxu0 %v4028
    %4924 = vmatprep.mubr.bf16.mxu0 %v1913
    %4925 = vmatmul.mubr.bf16.gmra.mxu0 %v1912
    %v4926 = vpop.f32.mrf.mxu0
    %v4927 = vadd.f32 %v4887, %v4926
    %v4928 = vpop.f32.mrf.mxu0
    %v4929 = vpop.f32.mrf.mxu0
    %v4930 = vpop.f32.mrf.mxu0
    %4931 = vdwg.mxu0
    %4932 = vst [vmem:[#allocation4] sm:$0x3] %v4927
    %4933 = vst [vmem:[%s21] sm:$0x3] %v2232
    // Predicated region
    $region112: #{resnet_forward.1} parent=1 // pred_check
      _
    $region113: #{resnet_forward.1} parent=1 // pred_check_branch
      %4935 = sbr.rel (0) target = $region115
    $region114: #{resnet_forward.1} parent=1 // pred_region
      %s4937 = ssub.s32 32, 32
      %4938 = vsyncadd [#allocation5], %s4937
      %s4940 = sshll.u32 [#allocation4], 4
      %s4941 = int_to_ptr.vmem [resolvable:$true] %s4940
      %4943 = dma.vmem_to_hbm [thread:$0]  %s4941, 32, %s20, [#allocation5]
    $region115: #{resnet_forward.1} parent=1 // pred_fallthru
      _
    // Predicated region
    $region116: #{resnet_forward.1} parent=1 // pred_check
      _
    $region117: #{resnet_forward.1} parent=1 // pred_check_branch
      %4945 = sbr.rel (0) target = $region119
    $region118: #{resnet_forward.1} parent=1 // pred_region
      _
    $region119: #{resnet_forward.1} parent=1 // pred_fallthru
      _
    // Predicated region
    $region120: #{resnet_forward.1} parent=1 // pred_check
      _
    $region121: #{resnet_forward.1} parent=1 // pred_check_branch
      %4947 = sbr.rel (0) target = $region123
    $region122: #{resnet_forward.1} parent=1 // pred_region
      %4948 = dma.done [#allocation5], 32
    $region123: #{resnet_forward.1} parent=1 // pred_fallthru
      _
    // Predicated region
    $region124: #{resnet_forward.1} parent=1 // pred_check
      _
    $region125: #{resnet_forward.1} parent=1 // pred_check_branch
      %4950 = sbr.rel (0) target = $region127
    $region126: #{resnet_forward.1} parent=1 // pred_region
      _
    $region127: #{resnet_forward.1} parent=1 // pred_fallthru
      _
    %4951 = vsyncpa [#allocation5], 1
  %4952 = vsyncmov [#allocation3]
  %s4953 = vpop.sfrf %4952
  %p4954 = scmp.eq.s32.totalorder %s4953, 0
  %p4955 = pneg %p4954
  %4957 = shalt.err (%p4955)

</llo_original>
